<compile_context>
chip_gen: v5e
topology: v5e:2x2
jax: 0.10.0
libtpu: 0.0.40
codegen_flags: <defaults>
</compile_context>

<pallas_src>
import functools
import numpy as np

import jax
import jax.numpy as jnp
from jax import lax
from jax.experimental import pallas as pl
from jax.experimental.pallas import tpu as pltpu


# 3x3 tap offsets in PyTorch Conv2d kernel order: t = (dh+1)*3 + (dw+1)
_TAP_OFFSETS = tuple((dh, dw) for dh in (-1, 0, 1) for dw in (-1, 0, 1))


# ----------------------------------------------------------------------------
# Fused kernel (per grid step = B_blk images stacked on the lane axis):
#   x = x + LeakyReLU_0.1(conv3x3(cat(x, up(y))))     (9 rolled taps, masked)
#   x = x + proj(W-MSA(LN1(x)))                       (per-image, heads batched)
#   x = x + fc2(GELU(fc1(LN2(x))))
# All tensors are feature-major: (features, B_blk*L), tokens on the lane axis.
# ----------------------------------------------------------------------------
def _block_kernel(cat_ref, mask_ref, wconv_ref, bconv_ref,
                  g1_ref, b1_ref, wqkvT_ref, bqkv_ref, bias_ref,
                  wprojT_ref, bproj_ref, g2_ref, b2_ref,
                  wfc1T_ref, bfc1_ref, wfc2T_ref, bfc2_ref,
                  o_ref, *, num_heads, Cx, W, L, B_blk):
    BL = o_ref.shape[1]                     # B_blk * L
    nHhp = wqkvT_ref.shape[0] // 3          # num_heads * padded head dim
    hp = nHhp // num_heads                  # padded (8-aligned) head dim
    eps = 1e-5

    cat = cat_ref[...].astype(jnp.float32)                       # (Cin, BL)
    xT = cat[0:Cx, :]                                            # original x slab

    # ---- aff1: 3x3 conv from 9 lane-rolled taps (XLU) + boundary masks ----
    # roll never contaminates across images: the wrapped lanes are exactly the
    # h/w boundary lanes that the per-tap mask zeroes anyway.
    acc = None
    for t, (dh, dw) in enumerate(_TAP_OFFSETS):
        s = dh * W + dw
        tap = cat if s == 0 else pltpu.roll(cat, shift=(-s) % BL, axis=1)
        contrib = jnp.dot(wconv_ref[t], tap,
                          preferred_element_type=jnp.float32)    # (Cx, BL)
        if not (dh == 0 and dw == 0):
            contrib = contrib * mask_ref[t:t + 1, :]             # zero OOB taps
        acc = contrib if acc is None else acc + contrib
    conv = acc + bconv_ref[...]
    conv = jnp.maximum(conv, 0.1 * conv)                         # LeakyReLU(0.1)
    x = xT + conv

    # ---- LayerNorm 1 (channels on the sublane axis) ----
    mu = jnp.mean(x, axis=0, keepdims=True)
    var = jnp.mean((x - mu) * (x - mu), axis=0, keepdims=True)
    xn = (x - mu) * lax.rsqrt(var + eps) * g1_ref[...] + b1_ref[...]

    # ---- W-MSA (shift=0).  wqkvT rows = [q | k | v], each (nH, hp) with the true
    # head dim zero-padded; q rows pre-scaled by 1/sqrt(hd); v row 0 of each head
    # is the constant 1 (bias) so the softmax denominator falls out of the PV dot.
    qkvT = jnp.dot(wqkvT_ref[...], xn,
                   preferred_element_type=jnp.float32) + bqkv_ref[...]  # (3*nH*hp, BL)
    q_all = qkvT[0:nHhp].astype(jnp.bfloat16)
    k_all = qkvT[nHhp:2 * nHhp].astype(jnp.bfloat16)
    v_all = qkvT[2 * nHhp:3 * nHhp].astype(jnp.bfloat16)
    bias = bias_ref[...].astype(jnp.float32)                     # (nH, L, L)

    outs = []
    for b in range(B_blk):                                       # lane-aligned slices
        lo = b * L
        q = q_all[:, lo:lo + L].reshape(num_heads, hp, L)
        k = k_all[:, lo:lo + L].reshape(num_heads, hp, L)
        v = v_all[:, lo:lo + L].reshape(num_heads, hp, L)
        # attn[h, i, j] = sum_d q[h, d, i] * k[h, d, j]   (padded dims are zero)
        attn = lax.dot_general(q, k, (((1,), (1,)), ((0,), (0,))),
                               preferred_element_type=jnp.float32)   # (nH, L, L)
        attn = attn + bias
        m = jnp.max(attn, axis=-1, keepdims=True)
        e = jnp.exp(attn - m).astype(jnp.bfloat16)               # unnormalised probs
        # outT[h, d, i] = sum_j v[h, d, j] * e[h, i, j];  row d=0 holds sum_j e.
        outT = lax.dot_general(v, e, (((2,), (2,)), ((0,), (0,))),
                               preferred_element_type=jnp.float32)   # (nH, hp, L)
        outT = outT * pl.reciprocal(outT[:, 0:1, :], approx=True)    # deferred softmax
        outs.append(outT.reshape(nHhp, L))
    attn_out = outs[0] if B_blk == 1 else jnp.concatenate(outs, axis=1)  # (nHhp, BL)

    x = x + (jnp.dot(wprojT_ref[...], attn_out,
                     preferred_element_type=jnp.float32) + bproj_ref[...])  # residual 1

    # ---- LayerNorm 2 + MLP (tanh GELU on the EUP) ----
    mu2 = jnp.mean(x, axis=0, keepdims=True)
    var2 = jnp.mean((x - mu2) * (x - mu2), axis=0, keepdims=True)
    xn2 = (x - mu2) * lax.rsqrt(var2 + eps) * g2_ref[...] + b2_ref[...]
    h = jnp.dot(wfc1T_ref[...], xn2,
                preferred_element_type=jnp.float32) + bfc1_ref[...]      # (4C, BL)
    # TODO(synk): nn.GELU default is the exact erf form; tanh approx used (EUP).
    h = 0.5 * h * (1.0 + jnp.tanh(0.7978845608028654 *
                                  (h + 0.044715 * h * h * h)))
    h = jnp.dot(wfc2T_ref[...], h,
                preferred_element_type=jnp.float32) + bfc2_ref[...]      # (C, BL)

    o_ref[...] = (x + h).astype(o_ref.dtype)                             # residual 2


# ----------------------------------------------------------------------------
# Wrapper helpers
# ----------------------------------------------------------------------------
def _pick_block_batch(B):
    """Largest B_blk <= 4 dividing B that keeps >= 2 grid steps (v7x: 2 TCs)."""
    for d in (4, 3, 2):
        if B % d == 0 and B // d >= 2:
            return d
    return 1


def _tap_masks(H, W, B_blk):
    """(9, B_blk*H*W) 0/1 masks for the 3x3 taps (also kill cross-image wrap)."""
    L = H * W
    hh = np.arange(L) // W
    ww = np.arange(L) % W
    rows = []
    for dh, dw in _TAP_OFFSETS:
        ok = ((hh + dh >= 0) & (hh + dh < H) & (ww + dw >= 0) & (ww + dw < W))
        rows.append(ok.astype(np.float32))
    return jnp.asarray(np.tile(np.stack(rows), (1, B_blk)))


@functools.partial(jax.jit, static_argnames=("num_heads", "window_size"))
def transformer_block1_forward(kp, x, y, *, num_heads=4, window_size=16):
    """x: (B, Cx, H, W) NCHW;  y: (B, Cy, Hy, Wy) NCHW. Returns NCHW."""
    B, Cx, H, W = x.shape
    Cy, Hin, Win = y.shape[1], y.shape[2], y.shape[3]
    L = H * W
    Cin = Cx + Cy

    ws = min(window_size, H, W)              # Swin's window-size clamp (=> shift=0)
    assert ws == H == W, "fused kernel assumes a single Swin window per image"
    # TODO(synk): multi-window partition (H or W > window_size) is not handled in the
    # fused kernel; the module fixes input_resolution=(16,16), window_size=16.

    # F.interpolate(y, size=(H,W), mode='nearest'): broadcast+reshape (no gather)
    # for integer factors; src = floor(dst * in / out) reduces to repeat then.
    if H % Hin == 0 and W % Win == 0:
        fh, fw = H // Hin, W // Win
        y_up = jnp.broadcast_to(y[:, :, :, None, :, None],
                                (B, Cy, Hin, fh, Win, fw)).reshape(B, Cy, H, W)
    else:
        # TODO(synk): non-integer nearest scale has no broadcast form; falls back
        # to an XLA gather (take) outside the kernel.
        hi = (jnp.arange(H) * Hin) // H
        wi = (jnp.arange(W) * Win) // W
        y_up = jnp.take(jnp.take(y, hi, axis=2), wi, axis=3)

    # Feature-major slab, images stacked on the 128-lane axis: (Cin, B*L).
    cat = jnp.concatenate([x, y_up], axis=1).astype(jnp.float32)        # (B, Cin, H, W)
    cat_slab = cat.reshape(B, Cin, L).transpose(1, 0, 2).reshape(Cin, B * L)

    B_blk = _pick_block_batch(B)
    steps = B // B_blk
    BL = B_blk * L
    mask9 = _tap_masks(H, W, B_blk)                                      # (9, BL)

    def const(arr):
        nd = arr.ndim
        return pl.BlockSpec(arr.shape, lambda i, nd=nd: (0,) * nd)

    kernel = functools.partial(_block_kernel, num_heads=num_heads, Cx=Cx,
                               W=W, L=L, B_blk=B_blk)
    out = pl.pallas_call(
        kernel,
        out_shape=jax.ShapeDtypeStruct((Cx, B * L), jnp.float32),
        grid_spec=pltpu.PrefetchScalarGridSpec(
            num_scalar_prefetch=0,
            grid=(steps,),
            in_specs=[
                pl.BlockSpec((Cin, BL), lambda i: (0, i)),               # cat slab
                const(mask9),
                const(kp["wconv"]), const(kp["bconv"]),
                const(kp["g1"]), const(kp["b1"]),
                const(kp["wqkvT"]), const(kp["bqkv"]),
                const(kp["rel_bias"]),
                const(kp["wprojT"]), const(kp["bproj"]),
                const(kp["g2"]), const(kp["b2"]),
                const(kp["wfc1T"]), const(kp["bfc1"]),
                const(kp["wfc2T"]), const(kp["bfc2"]),
            ],
            out_specs=pl.BlockSpec((Cx, BL), lambda i: (0, i)),          # lane-dense
        ),
        compiler_params=pltpu.CompilerParams(
            dimension_semantics=("parallel",),        # shard images over TensorCores
            vmem_limit_bytes=32 * 1024 * 1024,        # headroom; B_blk<=4 fits v7x
        ),
    )(cat_slab, mask9, kp["wconv"], kp["bconv"], kp["g1"], kp["b1"],
      kp["wqkvT"], kp["bqkv"], kp["rel_bias"], kp["wprojT"], kp["bproj"],
      kp["g2"], kp["b2"], kp["wfc1T"], kp["bfc1"], kp["wfc2T"], kp["bfc2"])

    return out.reshape(Cx, B, L).transpose(1, 0, 2).reshape(B, Cx, H, W)  # back to NCHW


# ----------------------------------------------------------------------------
# Parameters: natural (PyTorch-like) init + one-time conversion to kernel layout.
# ----------------------------------------------------------------------------
def init_params(key, x_dim, y_dim, window_size, num_heads, mlp_ratio=4):
    C, ws = x_dim, window_size
    L = ws * ws
    Cin = x_dim + y_dim
    ks = jax.random.split(key, 8)

    def w(k, shape, scale=0.02):
        return (scale * jax.random.normal(k, shape)).astype(jnp.float32)

    p = {}
    p["conv_w"] = w(ks[0], (3, 3, Cin, C), 0.05)          # HWIO
    p["conv_b"] = w(ks[1], (C,), 0.05)
    p["ln1_g"] = jnp.ones((C,), jnp.float32)
    p["ln1_b"] = jnp.zeros((C,), jnp.float32)
    p["w_qkv"] = w(ks[2], (C, 3 * C))
    p["b_qkv"] = jnp.zeros((3 * C,), jnp.float32)         # qkv_bias=True
    p["w_proj"] = w(ks[3], (C, C))
    p["b_proj"] = jnp.zeros((C,), jnp.float32)
    p["ln2_g"] = jnp.ones((C,), jnp.float32)
    p["ln2_b"] = jnp.zeros((C,), jnp.float32)
    hidden = int(C * mlp_ratio)
    p["w_fc1"] = w(ks[4], (C, hidden))
    p["b_fc1"] = jnp.zeros((hidden,), jnp.float32)
    p["w_fc2"] = w(ks[5], (hidden, C))
    p["b_fc2"] = jnp.zeros((C,), jnp.float32)

    # Relative position bias table gathered by the standard Swin index.
    # TODO(synk): the relative_position_index gather has no clean Pallas
    # equivalent; it is precomputed once here (pure host/JAX glue).
    table = w(ks[6], ((2 * ws - 1) * (2 * ws - 1), num_heads))
    coords = np.stack(np.meshgrid(np.arange(ws), np.arange(ws), indexing="ij"))
    cf = coords.reshape(2, -1)
    rel = (cf[:, :, None] - cf[:, None, :]).transpose(1, 2, 0).astype(np.int64)
    rel[:, :, 0] += ws - 1
    rel[:, :, 1] += ws - 1
    rel[:, :, 0] *= 2 * ws - 1
    idx = rel.sum(-1)                                     # (L, L)
    bias = table[jnp.asarray(idx.reshape(-1))].reshape(L, L, num_heads)
    p["rel_bias"] = jnp.transpose(bias, (2, 0, 1)).astype(jnp.float32)  # (nH, L, L)
    return p


def prepare_kernel_params(p, x_dim, y_dim, num_heads, mlp_ratio=4):
    """One-time layout conversion: feature-major weights, conv taps split out,
    1/sqrt(hd) folded into q, head dim zero-padded to a multiple of 8 (with one
    spare row), and a constant-1 v-bias row so the softmax denominator is emitted
    by the PV matmul itself (deferred normalisation).  rel_bias stored in bf16."""
    C = x_dim
    Cin = x_dim + y_dim
    nH = num_heads
    hd = C // nH
    hp = ((hd + 1 + 7) // 8) * 8              # 8-aligned, >= hd+1 (room for ones-row)
    scale = float(hd) ** -0.5
    hidden = int(C * mlp_ratio)

    kp = {}
    # conv: HWIO (3,3,Cin,C) -> (9, C, Cin), tap order t = (dh+1)*3 + (dw+1)
    kp["wconv"] = jnp.transpose(p["conv_w"], (0, 1, 3, 2)).reshape(9, C, Cin)
    kp["bconv"] = p["conv_b"].reshape(C, 1)
    kp["g1"] = p["ln1_g"].reshape(C, 1)
    kp["b1"] = p["ln1_b"].reshape(C, 1)

    wq, wk, wv = jnp.transpose(p["w_qkv"]).reshape(3, nH, hd, C)
    bq, bk, bv = p["b_qkv"].reshape(3, nH, hd, 1)
    z_w = jnp.zeros((nH, hp, C), jnp.float32)
    z_b = jnp.zeros((nH, hp, 1), jnp.float32)
    wq_p = z_w.at[:, :hd, :].set(wq * scale)              # q pre-scaled
    bq_p = z_b.at[:, :hd, :].set(bq * scale)
    wk_p = z_w.at[:, :hd, :].set(wk)
    bk_p = z_b.at[:, :hd, :].set(bk)
    wv_p = z_w.at[:, 1:hd + 1, :].set(wv)                 # v rows shifted by one...
    bv_p = z_b.at[:, 0, :].set(1.0).at[:, 1:hd + 1, :].set(bv)  # ...row 0 == 1 (denom)
    kp["wqkvT"] = jnp.concatenate([wq_p, wk_p, wv_p]).reshape(3 * nH * hp, C)
    kp["bqkv"] = jnp.concatenate([bq_p, bk_p, bv_p]).reshape(3 * nH * hp, 1)

    kp["rel_bias"] = p["rel_bias"].astype(jnp.bfloat16)   # (nH, L, L), halved DMA

    wp = jnp.transpose(p["w_proj"]).reshape(C, nH, hd)
    wp_p = jnp.zeros((C, nH, hp), jnp.float32).at[:, :, 1:hd + 1].set(wp)
    kp["wprojT"] = wp_p.reshape(C, nH * hp)               # padded/denom cols are zero
    kp["bproj"] = p["b_proj"].reshape(C, 1)

    kp["g2"] = p["ln2_g"].reshape(C, 1)
    kp["b2"] = p["ln2_b"].reshape(C, 1)
    kp["wfc1T"] = jnp.transpose(p["w_fc1"])               # (4C, C)
    kp["bfc1"] = p["b_fc1"].reshape(hidden, 1)
    kp["wfc2T"] = jnp.transpose(p["w_fc2"])               # (C, 4C)
    kp["bfc2"] = p["b_fc2"].reshape(C, 1)
    return kp


# ----------------------------------------------------------------------------
if __name__ == "__main__":
    B = 2
    x_dim, y_dim = 16, 8
    H = W = 16                 # input_resolution = (16, 16)
    num_heads = 4              # TransformerBlock1 hardcodes num_heads=4 for sw_att
    window_size = 16           # == min(input_resolution) -> single window, shift=0

    key = jax.random.PRNGKey(0)
    kx, ky, kprm = jax.random.split(key, 3)
    x = jax.random.normal(kx, (B, x_dim, H, W), jnp.float32)            # NCHW
    y = jax.random.normal(ky, (B, y_dim, H // 2, W // 2), jnp.float32)  # NCHW, smaller

    params = init_params(kprm, x_dim, y_dim, window_size, num_heads)
    kparams = prepare_kernel_params(params, x_dim, y_dim, num_heads)

    out = transformer_block1_forward(kparams, x, y,
                                     num_heads=num_heads, window_size=window_size)
    out = jax.block_until_ready(out)
    assert out.shape == (B, x_dim, H, W), out.shape
    assert bool(jnp.all(jnp.isfinite(out)))
    print("KERNEL_OK")
</pallas_src>

<mosaic_0001>
module attributes {stable_mosaic.version = 11 : i64} {
  func.func @_block_kernel(%arg0: i32, %arg1: memref<24x256xf32, #tpu.memory_space<vmem>>, %arg2: memref<9x256xf32, #tpu.memory_space<vmem>>, %arg3: memref<9x16x24xf32, #tpu.memory_space<vmem>>, %arg4: memref<16x1xf32, #tpu.memory_space<vmem>>, %arg5: memref<16x1xf32, #tpu.memory_space<vmem>>, %arg6: memref<16x1xf32, #tpu.memory_space<vmem>>, %arg7: memref<96x16xf32, #tpu.memory_space<vmem>>, %arg8: memref<96x1xf32, #tpu.memory_space<vmem>>, %arg9: memref<4x256x256xbf16, #tpu.memory_space<vmem>>, %arg10: memref<16x32xf32, #tpu.memory_space<vmem>>, %arg11: memref<16x1xf32, #tpu.memory_space<vmem>>, %arg12: memref<16x1xf32, #tpu.memory_space<vmem>>, %arg13: memref<16x1xf32, #tpu.memory_space<vmem>>, %arg14: memref<64x16xf32, #tpu.memory_space<vmem>>, %arg15: memref<64x1xf32, #tpu.memory_space<vmem>>, %arg16: memref<16x64xf32, #tpu.memory_space<vmem>>, %arg17: memref<16x1xf32, #tpu.memory_space<vmem>>, %arg18: memref<16x256xf32, #tpu.memory_space<vmem>>) attributes {dimension_semantics = [#tpu.dimension_semantics<parallel>], iteration_bounds = array<i64: 2>, scalar_prefetch = 0 : i64, scratch_operands = 0 : i64, tpu.core_type = #tpu.core_type<tc>, window_params = [{transform_indices = @transform_0, window_bounds = array<i64: 24, 256>}, {pipeline_mode = #tpu.pipeline_mode<synchronous>, transform_indices = @transform_1, window_bounds = array<i64: 9, 256>}, {pipeline_mode = #tpu.pipeline_mode<synchronous>, transform_indices = @transform_2, window_bounds = array<i64: 9, 16, 24>}, {pipeline_mode = #tpu.pipeline_mode<synchronous>, transform_indices = @transform_3, window_bounds = array<i64: 16, 1>}, {pipeline_mode = #tpu.pipeline_mode<synchronous>, transform_indices = @transform_4, window_bounds = array<i64: 16, 1>}, {pipeline_mode = #tpu.pipeline_mode<synchronous>, transform_indices = @transform_5, window_bounds = array<i64: 16, 1>}, {pipeline_mode = #tpu.pipeline_mode<synchronous>, transform_indices = @transform_6, window_bounds = array<i64: 96, 16>}, {pipeline_mode = #tpu.pipeline_mode<synchronous>, transform_indices = @transform_7, window_bounds = array<i64: 96, 1>}, {pipeline_mode = #tpu.pipeline_mode<synchronous>, transform_indices = @transform_8, window_bounds = array<i64: 4, 256, 256>}, {pipeline_mode = #tpu.pipeline_mode<synchronous>, transform_indices = @transform_9, window_bounds = array<i64: 16, 32>}, {pipeline_mode = #tpu.pipeline_mode<synchronous>, transform_indices = @transform_10, window_bounds = array<i64: 16, 1>}, {pipeline_mode = #tpu.pipeline_mode<synchronous>, transform_indices = @transform_11, window_bounds = array<i64: 16, 1>}, {pipeline_mode = #tpu.pipeline_mode<synchronous>, transform_indices = @transform_12, window_bounds = array<i64: 16, 1>}, {pipeline_mode = #tpu.pipeline_mode<synchronous>, transform_indices = @transform_13, window_bounds = array<i64: 64, 16>}, {pipeline_mode = #tpu.pipeline_mode<synchronous>, transform_indices = @transform_14, window_bounds = array<i64: 64, 1>}, {pipeline_mode = #tpu.pipeline_mode<synchronous>, transform_indices = @transform_15, window_bounds = array<i64: 16, 64>}, {pipeline_mode = #tpu.pipeline_mode<synchronous>, transform_indices = @transform_16, window_bounds = array<i64: 16, 1>}, {transform_indices = @transform_17, window_bounds = array<i64: 16, 256>}]} {
    %c0 = arith.constant 0 : index
    %c0_0 = arith.constant 0 : index
    %0 = vector.load %arg1[%c0, %c0_0] : memref<24x256xf32, #tpu.memory_space<vmem>>, vector<24x256xf32>
    %1 = vector.extract_strided_slice %0 {offsets = [0, 0], sizes = [16, 256], strides = [1, 1]} : vector<24x256xf32> to vector<16x256xf32>
    %c17_i32 = arith.constant 17 : i32
    %2 = tpu.dynamic_rotate %0 by %c17_i32 dim 1 : vector<24x256xf32>, i32 -> vector<24x256xf32>
    %c0_1 = arith.constant 0 : index
    %c0_2 = arith.constant 0 : index
    %c0_3 = arith.constant 0 : index
    %3 = vector.load %arg3[%c0_1, %c0_2, %c0_3] : memref<9x16x24xf32, #tpu.memory_space<vmem>>, vector<1x16x24xf32>
    %4 = vector.shape_cast %3 : vector<1x16x24xf32> to vector<16x24xf32>
    %cst = arith.constant dense<0.000000e+00> : vector<16x256xf32>
    %5 = tpu.matmul %4, %2, %cst {dimension_numbers = #tpu.dot_dimension_numbers<[1], [0], [0], [1], [0, 0, 1, 1], [], []>} : vector<16x24xf32>, vector<24x256xf32>, vector<16x256xf32> -> vector<16x256xf32>
    %c0_4 = arith.constant 0 : index
    %c0_5 = arith.constant 0 : index
    %6 = vector.load %arg2[%c0_4, %c0_5] : memref<9x256xf32, #tpu.memory_space<vmem>>, vector<1x256xf32>
    %7 = vector.broadcast %6 : vector<1x256xf32> to vector<16x256xf32>
    %8 = arith.mulf %5, %7 : vector<16x256xf32>
    %c16_i32 = arith.constant 16 : i32
    %9 = tpu.dynamic_rotate %0 by %c16_i32 dim 1 : vector<24x256xf32>, i32 -> vector<24x256xf32>
    %c1 = arith.constant 1 : index
    %c0_6 = arith.constant 0 : index
    %c0_7 = arith.constant 0 : index
    %10 = vector.load %arg3[%c1, %c0_6, %c0_7] : memref<9x16x24xf32, #tpu.memory_space<vmem>>, vector<1x16x24xf32>
    %11 = vector.shape_cast %10 : vector<1x16x24xf32> to vector<16x24xf32>
    %cst_8 = arith.constant dense<0.000000e+00> : vector<16x256xf32>
    %12 = tpu.matmul %11, %9, %cst_8 {dimension_numbers = #tpu.dot_dimension_numbers<[1], [0], [0], [1], [0, 0, 1, 1], [], []>} : vector<16x24xf32>, vector<24x256xf32>, vector<16x256xf32> -> vector<16x256xf32>
    %c1_9 = arith.constant 1 : index
    %c0_10 = arith.constant 0 : index
    %13 = vector.load %arg2[%c1_9, %c0_10] : memref<9x256xf32, #tpu.memory_space<vmem>>, vector<1x256xf32>
    %14 = vector.broadcast %13 : vector<1x256xf32> to vector<16x256xf32>
    %15 = arith.mulf %12, %14 : vector<16x256xf32>
    %16 = arith.addf %8, %15 : vector<16x256xf32>
    %c15_i32 = arith.constant 15 : i32
    %17 = tpu.dynamic_rotate %0 by %c15_i32 dim 1 : vector<24x256xf32>, i32 -> vector<24x256xf32>
    %c2 = arith.constant 2 : index
    %c0_11 = arith.constant 0 : index
    %c0_12 = arith.constant 0 : index
    %18 = vector.load %arg3[%c2, %c0_11, %c0_12] : memref<9x16x24xf32, #tpu.memory_space<vmem>>, vector<1x16x24xf32>
    %19 = vector.shape_cast %18 : vector<1x16x24xf32> to vector<16x24xf32>
    %cst_13 = arith.constant dense<0.000000e+00> : vector<16x256xf32>
    %20 = tpu.matmul %19, %17, %cst_13 {dimension_numbers = #tpu.dot_dimension_numbers<[1], [0], [0], [1], [0, 0, 1, 1], [], []>} : vector<16x24xf32>, vector<24x256xf32>, vector<16x256xf32> -> vector<16x256xf32>
    %c2_14 = arith.constant 2 : index
    %c0_15 = arith.constant 0 : index
    %21 = vector.load %arg2[%c2_14, %c0_15] : memref<9x256xf32, #tpu.memory_space<vmem>>, vector<1x256xf32>
    %22 = vector.broadcast %21 : vector<1x256xf32> to vector<16x256xf32>
    %23 = arith.mulf %20, %22 : vector<16x256xf32>
    %24 = arith.addf %16, %23 : vector<16x256xf32>
    %c1_i32 = arith.constant 1 : i32
    %25 = tpu.dynamic_rotate %0 by %c1_i32 dim 1 : vector<24x256xf32>, i32 -> vector<24x256xf32>
    %c3 = arith.constant 3 : index
    %c0_16 = arith.constant 0 : index
    %c0_17 = arith.constant 0 : index
    %26 = vector.load %arg3[%c3, %c0_16, %c0_17] : memref<9x16x24xf32, #tpu.memory_space<vmem>>, vector<1x16x24xf32>
    %27 = vector.shape_cast %26 : vector<1x16x24xf32> to vector<16x24xf32>
    %cst_18 = arith.constant dense<0.000000e+00> : vector<16x256xf32>
    %28 = tpu.matmul %27, %25, %cst_18 {dimension_numbers = #tpu.dot_dimension_numbers<[1], [0], [0], [1], [0, 0, 1, 1], [], []>} : vector<16x24xf32>, vector<24x256xf32>, vector<16x256xf32> -> vector<16x256xf32>
    %c3_19 = arith.constant 3 : index
    %c0_20 = arith.constant 0 : index
    %29 = vector.load %arg2[%c3_19, %c0_20] : memref<9x256xf32, #tpu.memory_space<vmem>>, vector<1x256xf32>
    %30 = vector.broadcast %29 : vector<1x256xf32> to vector<16x256xf32>
    %31 = arith.mulf %28, %30 : vector<16x256xf32>
    %32 = arith.addf %24, %31 : vector<16x256xf32>
    %c4 = arith.constant 4 : index
    %c0_21 = arith.constant 0 : index
    %c0_22 = arith.constant 0 : index
    %33 = vector.load %arg3[%c4, %c0_21, %c0_22] : memref<9x16x24xf32, #tpu.memory_space<vmem>>, vector<1x16x24xf32>
    %34 = vector.shape_cast %33 : vector<1x16x24xf32> to vector<16x24xf32>
    %cst_23 = arith.constant dense<0.000000e+00> : vector<16x256xf32>
    %35 = tpu.matmul %34, %0, %cst_23 {dimension_numbers = #tpu.dot_dimension_numbers<[1], [0], [0], [1], [0, 0, 1, 1], [], []>} : vector<16x24xf32>, vector<24x256xf32>, vector<16x256xf32> -> vector<16x256xf32>
    %36 = arith.addf %32, %35 : vector<16x256xf32>
    %c255_i32 = arith.constant 255 : i32
    %37 = tpu.dynamic_rotate %0 by %c255_i32 dim 1 : vector<24x256xf32>, i32 -> vector<24x256xf32>
    %c5 = arith.constant 5 : index
    %c0_24 = arith.constant 0 : index
    %c0_25 = arith.constant 0 : index
    %38 = vector.load %arg3[%c5, %c0_24, %c0_25] : memref<9x16x24xf32, #tpu.memory_space<vmem>>, vector<1x16x24xf32>
    %39 = vector.shape_cast %38 : vector<1x16x24xf32> to vector<16x24xf32>
    %cst_26 = arith.constant dense<0.000000e+00> : vector<16x256xf32>
    %40 = tpu.matmul %39, %37, %cst_26 {dimension_numbers = #tpu.dot_dimension_numbers<[1], [0], [0], [1], [0, 0, 1, 1], [], []>} : vector<16x24xf32>, vector<24x256xf32>, vector<16x256xf32> -> vector<16x256xf32>
    %c5_27 = arith.constant 5 : index
    %c0_28 = arith.constant 0 : index
    %41 = vector.load %arg2[%c5_27, %c0_28] : memref<9x256xf32, #tpu.memory_space<vmem>>, vector<1x256xf32>
    %42 = vector.broadcast %41 : vector<1x256xf32> to vector<16x256xf32>
    %43 = arith.mulf %40, %42 : vector<16x256xf32>
    %44 = arith.addf %36, %43 : vector<16x256xf32>
    %c241_i32 = arith.constant 241 : i32
    %45 = tpu.dynamic_rotate %0 by %c241_i32 dim 1 : vector<24x256xf32>, i32 -> vector<24x256xf32>
    %c6 = arith.constant 6 : index
    %c0_29 = arith.constant 0 : index
    %c0_30 = arith.constant 0 : index
    %46 = vector.load %arg3[%c6, %c0_29, %c0_30] : memref<9x16x24xf32, #tpu.memory_space<vmem>>, vector<1x16x24xf32>
    %47 = vector.shape_cast %46 : vector<1x16x24xf32> to vector<16x24xf32>
    %cst_31 = arith.constant dense<0.000000e+00> : vector<16x256xf32>
    %48 = tpu.matmul %47, %45, %cst_31 {dimension_numbers = #tpu.dot_dimension_numbers<[1], [0], [0], [1], [0, 0, 1, 1], [], []>} : vector<16x24xf32>, vector<24x256xf32>, vector<16x256xf32> -> vector<16x256xf32>
    %c6_32 = arith.constant 6 : index
    %c0_33 = arith.constant 0 : index
    %49 = vector.load %arg2[%c6_32, %c0_33] : memref<9x256xf32, #tpu.memory_space<vmem>>, vector<1x256xf32>
    %50 = vector.broadcast %49 : vector<1x256xf32> to vector<16x256xf32>
    %51 = arith.mulf %48, %50 : vector<16x256xf32>
    %52 = arith.addf %44, %51 : vector<16x256xf32>
    %c240_i32 = arith.constant 240 : i32
    %53 = tpu.dynamic_rotate %0 by %c240_i32 dim 1 : vector<24x256xf32>, i32 -> vector<24x256xf32>
    %c7 = arith.constant 7 : index
    %c0_34 = arith.constant 0 : index
    %c0_35 = arith.constant 0 : index
    %54 = vector.load %arg3[%c7, %c0_34, %c0_35] : memref<9x16x24xf32, #tpu.memory_space<vmem>>, vector<1x16x24xf32>
    %55 = vector.shape_cast %54 : vector<1x16x24xf32> to vector<16x24xf32>
    %cst_36 = arith.constant dense<0.000000e+00> : vector<16x256xf32>
    %56 = tpu.matmul %55, %53, %cst_36 {dimension_numbers = #tpu.dot_dimension_numbers<[1], [0], [0], [1], [0, 0, 1, 1], [], []>} : vector<16x24xf32>, vector<24x256xf32>, vector<16x256xf32> -> vector<16x256xf32>
    %c7_37 = arith.constant 7 : index
    %c0_38 = arith.constant 0 : index
    %57 = vector.load %arg2[%c7_37, %c0_38] : memref<9x256xf32, #tpu.memory_space<vmem>>, vector<1x256xf32>
    %58 = vector.broadcast %57 : vector<1x256xf32> to vector<16x256xf32>
    %59 = arith.mulf %56, %58 : vector<16x256xf32>
    %60 = arith.addf %52, %59 : vector<16x256xf32>
    %c239_i32 = arith.constant 239 : i32
    %61 = tpu.dynamic_rotate %0 by %c239_i32 dim 1 : vector<24x256xf32>, i32 -> vector<24x256xf32>
    %c8 = arith.constant 8 : index
    %c0_39 = arith.constant 0 : index
    %c0_40 = arith.constant 0 : index
    %62 = vector.load %arg3[%c8, %c0_39, %c0_40] : memref<9x16x24xf32, #tpu.memory_space<vmem>>, vector<1x16x24xf32>
    %63 = vector.shape_cast %62 : vector<1x16x24xf32> to vector<16x24xf32>
    %cst_41 = arith.constant dense<0.000000e+00> : vector<16x256xf32>
    %64 = tpu.matmul %63, %61, %cst_41 {dimension_numbers = #tpu.dot_dimension_numbers<[1], [0], [0], [1], [0, 0, 1, 1], [], []>} : vector<16x24xf32>, vector<24x256xf32>, vector<16x256xf32> -> vector<16x256xf32>
    %c8_42 = arith.constant 8 : index
    %c0_43 = arith.constant 0 : index
    %65 = vector.load %arg2[%c8_42, %c0_43] : memref<9x256xf32, #tpu.memory_space<vmem>>, vector<1x256xf32>
    %66 = vector.broadcast %65 : vector<1x256xf32> to vector<16x256xf32>
    %67 = arith.mulf %64, %66 : vector<16x256xf32>
    %68 = arith.addf %60, %67 : vector<16x256xf32>
    %c0_44 = arith.constant 0 : index
    %c0_45 = arith.constant 0 : index
    %69 = vector.load %arg4[%c0_44, %c0_45] : memref<16x1xf32, #tpu.memory_space<vmem>>, vector<16x1xf32>
    %70 = vector.broadcast %69 : vector<16x1xf32> to vector<16x256xf32>
    %71 = arith.addf %68, %70 : vector<16x256xf32>
    %cst_46 = arith.constant 1.000000e-01 : f32
    %72 = vector.broadcast %cst_46 : f32 to vector<16x256xf32>
    %73 = arith.mulf %72, %71 : vector<16x256xf32>
    %74 = arith.maximumf %71, %73 : vector<16x256xf32>
    %75 = arith.addf %1, %74 : vector<16x256xf32>
    %cst_47 = arith.constant dense<0.000000e+00> : vector<256xf32>
    %76 = vector.multi_reduction <add>, %75, %cst_47 [0] : vector<16x256xf32> to vector<256xf32>
    %77 = vector.shape_cast %76 : vector<256xf32> to vector<1x256xf32>
    %cst_48 = arith.constant 1.600000e+01 : f32
    %78 = vector.broadcast %cst_48 : f32 to vector<1x256xf32>
    %79 = arith.divf %77, %78 : vector<1x256xf32>
    %80 = vector.broadcast %79 : vector<1x256xf32> to vector<16x256xf32>
    %81 = arith.subf %75, %80 : vector<16x256xf32>
    %82 = vector.broadcast %79 : vector<1x256xf32> to vector<16x256xf32>
    %83 = arith.subf %75, %82 : vector<16x256xf32>
    %84 = arith.mulf %81, %83 : vector<16x256xf32>
    %cst_49 = arith.constant dense<0.000000e+00> : vector<256xf32>
    %85 = vector.multi_reduction <add>, %84, %cst_49 [0] : vector<16x256xf32> to vector<256xf32>
    %86 = vector.shape_cast %85 : vector<256xf32> to vector<1x256xf32>
    %cst_50 = arith.constant 1.600000e+01 : f32
    %87 = vector.broadcast %cst_50 : f32 to vector<1x256xf32>
    %88 = arith.divf %86, %87 : vector<1x256xf32>
    %89 = vector.broadcast %79 : vector<1x256xf32> to vector<16x256xf32>
    %90 = arith.subf %75, %89 : vector<16x256xf32>
    %cst_51 = arith.constant 9.99999974E-6 : f32
    %91 = vector.broadcast %cst_51 : f32 to vector<1x256xf32>
    %92 = arith.addf %88, %91 : vector<1x256xf32>
    %93 = math.rsqrt %92 : vector<1x256xf32>
    %94 = vector.broadcast %93 : vector<1x256xf32> to vector<16x256xf32>
    %95 = arith.mulf %90, %94 : vector<16x256xf32>
    %c0_52 = arith.constant 0 : index
    %c0_53 = arith.constant 0 : index
    %96 = vector.load %arg5[%c0_52, %c0_53] : memref<16x1xf32, #tpu.memory_space<vmem>>, vector<16x1xf32>
    %97 = vector.broadcast %96 : vector<16x1xf32> to vector<16x256xf32>
    %98 = arith.mulf %95, %97 : vector<16x256xf32>
    %c0_54 = arith.constant 0 : index
    %c0_55 = arith.constant 0 : index
    %99 = vector.load %arg6[%c0_54, %c0_55] : memref<16x1xf32, #tpu.memory_space<vmem>>, vector<16x1xf32>
    %100 = vector.broadcast %99 : vector<16x1xf32> to vector<16x256xf32>
    %101 = arith.addf %98, %100 : vector<16x256xf32>
    %c0_56 = arith.constant 0 : index
    %c0_57 = arith.constant 0 : index
    %102 = vector.load %arg7[%c0_56, %c0_57] : memref<96x16xf32, #tpu.memory_space<vmem>>, vector<96x16xf32>
    %cst_58 = arith.constant dense<0.000000e+00> : vector<96x256xf32>
    %103 = tpu.matmul %102, %101, %cst_58 {dimension_numbers = #tpu.dot_dimension_numbers<[1], [0], [0], [1], [0, 0, 1, 1], [], []>} : vector<96x16xf32>, vector<16x256xf32>, vector<96x256xf32> -> vector<96x256xf32>
    %c0_59 = arith.constant 0 : index
    %c0_60 = arith.constant 0 : index
    %104 = vector.load %arg8[%c0_59, %c0_60] : memref<96x1xf32, #tpu.memory_space<vmem>>, vector<96x1xf32>
    %105 = vector.broadcast %104 : vector<96x1xf32> to vector<96x256xf32>
    %106 = arith.addf %103, %105 : vector<96x256xf32>
    %107 = vector.extract_strided_slice %106 {offsets = [0, 0], sizes = [32, 256], strides = [1, 1]} : vector<96x256xf32> to vector<32x256xf32>
    %108 = arith.truncf %107 : vector<32x256xf32> to vector<32x256xbf16>
    %109 = vector.extract_strided_slice %106 {offsets = [32, 0], sizes = [32, 256], strides = [1, 1]} : vector<96x256xf32> to vector<32x256xf32>
    %110 = arith.truncf %109 : vector<32x256xf32> to vector<32x256xbf16>
    %111 = vector.extract_strided_slice %106 {offsets = [64, 0], sizes = [32, 256], strides = [1, 1]} : vector<96x256xf32> to vector<32x256xf32>
    %112 = arith.truncf %111 : vector<32x256xf32> to vector<32x256xbf16>
    %c0_61 = arith.constant 0 : index
    %c0_62 = arith.constant 0 : index
    %c0_63 = arith.constant 0 : index
    %113 = vector.load %arg9[%c0_61, %c0_62, %c0_63] : memref<4x256x256xbf16, #tpu.memory_space<vmem>>, vector<4x256x256xbf16>
    %114 = arith.extf %113 : vector<4x256x256xbf16> to vector<4x256x256xf32>
    %115 = vector.shape_cast %108 : vector<32x256xbf16> to vector<4x8x256xbf16>
    %116 = vector.shape_cast %110 : vector<32x256xbf16> to vector<4x8x256xbf16>
    %117 = vector.shape_cast %112 : vector<32x256xbf16> to vector<4x8x256xbf16>
    %cst_64 = arith.constant dense<0.000000e+00> : vector<4x256x256xf32>
    %118 = tpu.matmul %115, %116, %cst_64 {dimension_numbers = #tpu.dot_dimension_numbers<[1], [1], [2], [2], [0, 0, 0, 2, 1, 2], [0], [0]>} : vector<4x8x256xbf16>, vector<4x8x256xbf16>, vector<4x256x256xf32> -> vector<4x256x256xf32>
    %119 = arith.addf %118, %114 : vector<4x256x256xf32>
    %cst_65 = arith.constant dense<0xFF800000> : vector<4x256xf32>
    %120 = vector.multi_reduction <maximumf>, %119, %cst_65 [2] : vector<4x256x256xf32> to vector<4x256xf32>
    %121 = vector.shape_cast %120 : vector<4x256xf32> to vector<4x256x1xf32>
    %122 = vector.broadcast %121 : vector<4x256x1xf32> to vector<4x256x256xf32>
    %123 = arith.subf %119, %122 : vector<4x256x256xf32>
    %124 = math.exp %123 : vector<4x256x256xf32>
    %125 = arith.truncf %124 : vector<4x256x256xf32> to vector<4x256x256xbf16>
    %cst_66 = arith.constant dense<0.000000e+00> : vector<4x8x256xf32>
    %126 = tpu.matmul %117, %125, %cst_66 {dimension_numbers = #tpu.dot_dimension_numbers<[2], [2], [1], [1], [0, 0, 0, 1, 1, 1], [0], [0]>} : vector<4x8x256xbf16>, vector<4x256x256xbf16>, vector<4x8x256xf32> -> vector<4x8x256xf32>
    %127 = vector.extract_strided_slice %126 {offsets = [0, 0, 0], sizes = [4, 1, 256], strides = [1, 1, 1]} : vector<4x8x256xf32> to vector<4x1x256xf32>
    %128 = tpu.reciprocal %127 {approx = true} : vector<4x1x256xf32> -> vector<4x1x256xf32>
    %129 = vector.broadcast %128 : vector<4x1x256xf32> to vector<4x8x256xf32>
    %130 = arith.mulf %126, %129 : vector<4x8x256xf32>
    %131 = vector.shape_cast %130 : vector<4x8x256xf32> to vector<32x256xf32>
    %c0_67 = arith.constant 0 : index
    %c0_68 = arith.constant 0 : index
    %132 = vector.load %arg10[%c0_67, %c0_68] : memref<16x32xf32, #tpu.memory_space<vmem>>, vector<16x32xf32>
    %cst_69 = arith.constant dense<0.000000e+00> : vector<16x256xf32>
    %133 = tpu.matmul %132, %131, %cst_69 {dimension_numbers = #tpu.dot_dimension_numbers<[1], [0], [0], [1], [0, 0, 1, 1], [], []>} : vector<16x32xf32>, vector<32x256xf32>, vector<16x256xf32> -> vector<16x256xf32>
    %c0_70 = arith.constant 0 : index
    %c0_71 = arith.constant 0 : index
    %134 = vector.load %arg11[%c0_70, %c0_71] : memref<16x1xf32, #tpu.memory_space<vmem>>, vector<16x1xf32>
    %135 = vector.broadcast %134 : vector<16x1xf32> to vector<16x256xf32>
    %136 = arith.addf %133, %135 : vector<16x256xf32>
    %137 = arith.addf %75, %136 : vector<16x256xf32>
    %cst_72 = arith.constant dense<0.000000e+00> : vector<256xf32>
    %138 = vector.multi_reduction <add>, %137, %cst_72 [0] : vector<16x256xf32> to vector<256xf32>
    %139 = vector.shape_cast %138 : vector<256xf32> to vector<1x256xf32>
    %cst_73 = arith.constant 1.600000e+01 : f32
    %140 = vector.broadcast %cst_73 : f32 to vector<1x256xf32>
    %141 = arith.divf %139, %140 : vector<1x256xf32>
    %142 = vector.broadcast %141 : vector<1x256xf32> to vector<16x256xf32>
    %143 = arith.subf %137, %142 : vector<16x256xf32>
    %144 = vector.broadcast %141 : vector<1x256xf32> to vector<16x256xf32>
    %145 = arith.subf %137, %144 : vector<16x256xf32>
    %146 = arith.mulf %143, %145 : vector<16x256xf32>
    %cst_74 = arith.constant dense<0.000000e+00> : vector<256xf32>
    %147 = vector.multi_reduction <add>, %146, %cst_74 [0] : vector<16x256xf32> to vector<256xf32>
    %148 = vector.shape_cast %147 : vector<256xf32> to vector<1x256xf32>
    %cst_75 = arith.constant 1.600000e+01 : f32
    %149 = vector.broadcast %cst_75 : f32 to vector<1x256xf32>
    %150 = arith.divf %148, %149 : vector<1x256xf32>
    %151 = vector.broadcast %141 : vector<1x256xf32> to vector<16x256xf32>
    %152 = arith.subf %137, %151 : vector<16x256xf32>
    %cst_76 = arith.constant 9.99999974E-6 : f32
    %153 = vector.broadcast %cst_76 : f32 to vector<1x256xf32>
    %154 = arith.addf %150, %153 : vector<1x256xf32>
    %155 = math.rsqrt %154 : vector<1x256xf32>
    %156 = vector.broadcast %155 : vector<1x256xf32> to vector<16x256xf32>
    %157 = arith.mulf %152, %156 : vector<16x256xf32>
    %c0_77 = arith.constant 0 : index
    %c0_78 = arith.constant 0 : index
    %158 = vector.load %arg12[%c0_77, %c0_78] : memref<16x1xf32, #tpu.memory_space<vmem>>, vector<16x1xf32>
    %159 = vector.broadcast %158 : vector<16x1xf32> to vector<16x256xf32>
    %160 = arith.mulf %157, %159 : vector<16x256xf32>
    %c0_79 = arith.constant 0 : index
    %c0_80 = arith.constant 0 : index
    %161 = vector.load %arg13[%c0_79, %c0_80] : memref<16x1xf32, #tpu.memory_space<vmem>>, vector<16x1xf32>
    %162 = vector.broadcast %161 : vector<16x1xf32> to vector<16x256xf32>
    %163 = arith.addf %160, %162 : vector<16x256xf32>
    %c0_81 = arith.constant 0 : index
    %c0_82 = arith.constant 0 : index
    %164 = vector.load %arg14[%c0_81, %c0_82] : memref<64x16xf32, #tpu.memory_space<vmem>>, vector<64x16xf32>
    %cst_83 = arith.constant dense<0.000000e+00> : vector<64x256xf32>
    %165 = tpu.matmul %164, %163, %cst_83 {dimension_numbers = #tpu.dot_dimension_numbers<[1], [0], [0], [1], [0, 0, 1, 1], [], []>} : vector<64x16xf32>, vector<16x256xf32>, vector<64x256xf32> -> vector<64x256xf32>
    %c0_84 = arith.constant 0 : index
    %c0_85 = arith.constant 0 : index
    %166 = vector.load %arg15[%c0_84, %c0_85] : memref<64x1xf32, #tpu.memory_space<vmem>>, vector<64x1xf32>
    %167 = vector.broadcast %166 : vector<64x1xf32> to vector<64x256xf32>
    %168 = arith.addf %165, %167 : vector<64x256xf32>
    %cst_86 = arith.constant 5.000000e-01 : f32
    %169 = vector.broadcast %cst_86 : f32 to vector<64x256xf32>
    %170 = arith.mulf %169, %168 : vector<64x256xf32>
    %cst_87 = arith.constant 4.471500e-02 : f32
    %171 = vector.broadcast %cst_87 : f32 to vector<64x256xf32>
    %172 = arith.mulf %171, %168 : vector<64x256xf32>
    %173 = arith.mulf %172, %168 : vector<64x256xf32>
    %174 = arith.mulf %173, %168 : vector<64x256xf32>
    %175 = arith.addf %168, %174 : vector<64x256xf32>
    %cst_88 = arith.constant 0.797884583 : f32
    %176 = vector.broadcast %cst_88 : f32 to vector<64x256xf32>
    %177 = arith.mulf %176, %175 : vector<64x256xf32>
    %178 = math.tanh %177 : vector<64x256xf32>
    %cst_89 = arith.constant 1.000000e+00 : f32
    %179 = vector.broadcast %cst_89 : f32 to vector<64x256xf32>
    %180 = arith.addf %179, %178 : vector<64x256xf32>
    %181 = arith.mulf %170, %180 : vector<64x256xf32>
    %c0_90 = arith.constant 0 : index
    %c0_91 = arith.constant 0 : index
    %182 = vector.load %arg16[%c0_90, %c0_91] : memref<16x64xf32, #tpu.memory_space<vmem>>, vector<16x64xf32>
    %cst_92 = arith.constant dense<0.000000e+00> : vector<16x256xf32>
    %183 = tpu.matmul %182, %181, %cst_92 {dimension_numbers = #tpu.dot_dimension_numbers<[1], [0], [0], [1], [0, 0, 1, 1], [], []>} : vector<16x64xf32>, vector<64x256xf32>, vector<16x256xf32> -> vector<16x256xf32>
    %c0_93 = arith.constant 0 : index
    %c0_94 = arith.constant 0 : index
    %184 = vector.load %arg17[%c0_93, %c0_94] : memref<16x1xf32, #tpu.memory_space<vmem>>, vector<16x1xf32>
    %185 = vector.broadcast %184 : vector<16x1xf32> to vector<16x256xf32>
    %186 = arith.addf %183, %185 : vector<16x256xf32>
    %187 = arith.addf %137, %186 : vector<16x256xf32>
    %c0_95 = arith.constant 0 : index
    %c0_96 = arith.constant 0 : index
    %188 = vector.load %arg18[%c0_95, %c0_96] : memref<16x256xf32, #tpu.memory_space<vmem>>, vector<16x256xf32>
    tpu.vector_store %arg18[%c0_95, %c0_96], %187 {strides = array<i32>} : memref<16x256xf32, #tpu.memory_space<vmem>>, vector<16x256xf32>,
    return
  }
  func.func @transform_0(%arg0: i32) -> (i32, i32) {
    %c0_i32 = arith.constant 0 : i32
    %c0_i32_0 = arith.constant 0 : i32
    return %c0_i32, %arg0 : i32, i32
  }
  func.func @transform_1(%arg0: i32) -> (i32, i32) {
    %c0_i32 = arith.constant 0 : i32
    %c0_i32_0 = arith.constant 0 : i32
    %c0_i32_1 = arith.constant 0 : i32
    return %c0_i32, %c0_i32_0 : i32, i32
  }
  func.func @transform_2(%arg0: i32) -> (i32, i32, i32) {
    %c0_i32 = arith.constant 0 : i32
    %c0_i32_0 = arith.constant 0 : i32
    %c0_i32_1 = arith.constant 0 : i32
    %c0_i32_2 = arith.constant 0 : i32
    return %c0_i32, %c0_i32_0, %c0_i32_1 : i32, i32, i32
  }
  func.func @transform_3(%arg0: i32) -> (i32, i32) {
    %c0_i32 = arith.constant 0 : i32
    %c0_i32_0 = arith.constant 0 : i32
    %c0_i32_1 = arith.constant 0 : i32
    return %c0_i32, %c0_i32_0 : i32, i32
  }
  func.func @transform_4(%arg0: i32) -> (i32, i32) {
    %c0_i32 = arith.constant 0 : i32
    %c0_i32_0 = arith.constant 0 : i32
    %c0_i32_1 = arith.constant 0 : i32
    return %c0_i32, %c0_i32_0 : i32, i32
  }
  func.func @transform_5(%arg0: i32) -> (i32, i32) {
    %c0_i32 = arith.constant 0 : i32
    %c0_i32_0 = arith.constant 0 : i32
    %c0_i32_1 = arith.constant 0 : i32
    return %c0_i32, %c0_i32_0 : i32, i32
  }
  func.func @transform_6(%arg0: i32) -> (i32, i32) {
    %c0_i32 = arith.constant 0 : i32
    %c0_i32_0 = arith.constant 0 : i32
    %c0_i32_1 = arith.constant 0 : i32
    return %c0_i32, %c0_i32_0 : i32, i32
  }
  func.func @transform_7(%arg0: i32) -> (i32, i32) {
    %c0_i32 = arith.constant 0 : i32
    %c0_i32_0 = arith.constant 0 : i32
    %c0_i32_1 = arith.constant 0 : i32
    return %c0_i32, %c0_i32_0 : i32, i32
  }
  func.func @transform_8(%arg0: i32) -> (i32, i32, i32) {
    %c0_i32 = arith.constant 0 : i32
    %c0_i32_0 = arith.constant 0 : i32
    %c0_i32_1 = arith.constant 0 : i32
    %c0_i32_2 = arith.constant 0 : i32
    return %c0_i32, %c0_i32_0, %c0_i32_1 : i32, i32, i32
  }
  func.func @transform_9(%arg0: i32) -> (i32, i32) {
    %c0_i32 = arith.constant 0 : i32
    %c0_i32_0 = arith.constant 0 : i32
    %c0_i32_1 = arith.constant 0 : i32
    return %c0_i32, %c0_i32_0 : i32, i32
  }
  func.func @transform_10(%arg0: i32) -> (i32, i32) {
    %c0_i32 = arith.constant 0 : i32
    %c0_i32_0 = arith.constant 0 : i32
    %c0_i32_1 = arith.constant 0 : i32
    return %c0_i32, %c0_i32_0 : i32, i32
  }
  func.func @transform_11(%arg0: i32) -> (i32, i32) {
    %c0_i32 = arith.constant 0 : i32
    %c0_i32_0 = arith.constant 0 : i32
    %c0_i32_1 = arith.constant 0 : i32
    return %c0_i32, %c0_i32_0 : i32, i32
  }
  func.func @transform_12(%arg0: i32) -> (i32, i32) {
    %c0_i32 = arith.constant 0 : i32
    %c0_i32_0 = arith.constant 0 : i32
    %c0_i32_1 = arith.constant 0 : i32
    return %c0_i32, %c0_i32_0 : i32, i32
  }
  func.func @transform_13(%arg0: i32) -> (i32, i32) {
    %c0_i32 = arith.constant 0 : i32
    %c0_i32_0 = arith.constant 0 : i32
    %c0_i32_1 = arith.constant 0 : i32
    return %c0_i32, %c0_i32_0 : i32, i32
  }
  func.func @transform_14(%arg0: i32) -> (i32, i32) {
    %c0_i32 = arith.constant 0 : i32
    %c0_i32_0 = arith.constant 0 : i32
    %c0_i32_1 = arith.constant 0 : i32
    return %c0_i32, %c0_i32_0 : i32, i32
  }
  func.func @transform_15(%arg0: i32) -> (i32, i32) {
    %c0_i32 = arith.constant 0 : i32
    %c0_i32_0 = arith.constant 0 : i32
    %c0_i32_1 = arith.constant 0 : i32
    return %c0_i32, %c0_i32_0 : i32, i32
  }
  func.func @transform_16(%arg0: i32) -> (i32, i32) {
    %c0_i32 = arith.constant 0 : i32
    %c0_i32_0 = arith.constant 0 : i32
    %c0_i32_1 = arith.constant 0 : i32
    return %c0_i32, %c0_i32_0 : i32, i32
  }
  func.func @transform_17(%arg0: i32) -> (i32, i32) {
    %c0_i32 = arith.constant 0 : i32
    %c0_i32_0 = arith.constant 0 : i32
    return %c0_i32, %arg0 : i32, i32
  }
}

</mosaic_0001>

<llo_original>
// kernel: transformer_block1_forward.1
$region0: #{transformer_block1_forward.1}
  #allocation0 [shape = 'u32[]', space=smem, size = 0x4, offset = 0x4, fixed_abs, tag = 'smem constant byte address 0x4 - core index']
  #allocation1 [shape = 'u32[72,128]{1,0:T(1,128)}', space=vmem, size = 0x9000, scoped, tag = 'internal scratch']
  %s0 = inlined_call_operand.vmem [shape: f32[24,512], index: 0, kind: input, shape index: {}]
  %s1 = inlined_call_operand.vmem [shape: f32[9,256], index: 1, kind: input, shape index: {}]
  %s2 = inlined_call_operand.vmem [shape: f32[9,16,24], index: 2, kind: input, shape index: {}]
  %s3 = inlined_call_operand.vmem [shape: f32[16,1], index: 3, kind: input, shape index: {}]
  %s4 = inlined_call_operand.vmem [shape: f32[16,1], index: 4, kind: input, shape index: {}]
  %s5 = inlined_call_operand.vmem [shape: f32[16,1], index: 5, kind: input, shape index: {}]
  %s6 = inlined_call_operand.vmem [shape: f32[96,16], index: 6, kind: input, shape index: {}]
  %s7 = inlined_call_operand.vmem [shape: f32[96,1], index: 7, kind: input, shape index: {}]
  %s8 = inlined_call_operand.vmem [shape: bf16[4,256,256], index: 8, kind: input, shape index: {}]
  %s9 = inlined_call_operand.vmem [shape: f32[16,32], index: 9, kind: input, shape index: {}]
  %s10 = inlined_call_operand.vmem [shape: f32[16,1], index: 10, kind: input, shape index: {}]
  %s11 = inlined_call_operand.vmem [shape: f32[16,1], index: 11, kind: input, shape index: {}]
  %s12 = inlined_call_operand.vmem [shape: f32[16,1], index: 12, kind: input, shape index: {}]
  %s13 = inlined_call_operand.vmem [shape: f32[64,16], index: 13, kind: input, shape index: {}]
  %s14 = inlined_call_operand.vmem [shape: f32[64,1], index: 14, kind: input, shape index: {}]
  %s15 = inlined_call_operand.vmem [shape: f32[16,64], index: 15, kind: input, shape index: {}]
  %s16 = inlined_call_operand.vmem [shape: f32[16,1], index: 16, kind: input, shape index: {}]
  %s17 = inlined_call_operand.vmem [shape: f32[16,512], index: 17, kind: output, shape index: {}]
  %s18 = sld [smem:[#allocation0]]
  $region143: #{transformer_block1_forward.1} parent=0
    _
  %s20 = ssub.s32 1, %s18
  %s21 = scalar_select 0, %s20, %s18
  $region1: #{transformer_block1_forward.1} parent=0
    #allocation2 [shape = 'u8[49152]{0}', space=vmem, size = 0xc000, scoped, tag = 'input window, operand 0']
    #allocation3 [shape = 'u8[32768]{0}', space=vmem, size = 0x8000, scoped, tag = 'output window, operand 0']
    loop: start=0, step=1, limit=4
    $region2: #{transformer_block1_forward.1} parent=1 // loop_pre_header
      _
    $region3: #{transformer_block1_forward.1} parent=1 // loop_header
      %s23 = sphi 0, %s27
      %p24 = scmp.ge.s32.totalorder %s23, 4
      %s33 = sphi 0, %s35
      %s36 = sphi 0, %s33
      %s37 = sphi 0, %s36
      %s53 = sphi 0, %s37
      %s57 = sphi 0, %s57
      %s59 = sphi 0, %s57
      %s60 = sphi 0, %s59
      %s74 = sphi 0, %s60
      %s78 = sphi 0, %s78
      %s80 = sphi 0, %s78
      %s81 = sphi 0, %s80
      %s95 = sphi 0, %s81
      %s99 = sphi 0, %s99
      %s101 = sphi 0, %s99
      %s102 = sphi 0, %s101
      %s116 = sphi 0, %s102
      %s120 = sphi 0, %s120
      %s122 = sphi 0, %s120
      %s123 = sphi 0, %s122
      %s137 = sphi 0, %s123
      %s141 = sphi 0, %s141
      %s143 = sphi 0, %s141
      %s144 = sphi 0, %s143
      %s158 = sphi 0, %s144
      %s162 = sphi 0, %s162
      %s164 = sphi 0, %s162
      %s165 = sphi 0, %s164
      %s179 = sphi 0, %s165
      %s183 = sphi 0, %s183
      %s185 = sphi 0, %s183
      %s186 = sphi 0, %s185
      %s200 = sphi 0, %s186
      %s204 = sphi 0, %s204
      %s206 = sphi 0, %s204
      %s207 = sphi 0, %s206
      %s221 = sphi 0, %s207
      %s225 = sphi 0, %s225
      %s227 = sphi 0, %s225
      %s228 = sphi 0, %s227
      %s242 = sphi 0, %s228
      %s246 = sphi 0, %s246
      %s248 = sphi 0, %s246
      %s249 = sphi 0, %s248
      %s263 = sphi 0, %s249
      %s267 = sphi 0, %s267
      %s269 = sphi 0, %s267
      %s270 = sphi 0, %s269
      %s284 = sphi 0, %s270
      %s288 = sphi 0, %s288
      %s290 = sphi 0, %s288
      %s291 = sphi 0, %s290
      %s305 = sphi 0, %s291
      %s309 = sphi 0, %s309
      %s311 = sphi 0, %s309
      %s312 = sphi 0, %s311
      %s326 = sphi 0, %s312
      %s330 = sphi 0, %s330
      %s332 = sphi 0, %s330
      %s333 = sphi 0, %s332
      %s347 = sphi 0, %s333
      %s351 = sphi 0, %s351
      %s353 = sphi 0, %s351
      %s354 = sphi 0, %s353
      %s368 = sphi 0, %s354
      %s372 = sphi 0, %s372
      %s374 = sphi 0, %s372
      %s375 = sphi 0, %s374
      %s389 = sphi 0, %s375
      %s395 = sphi 0, %s397
      %s398 = sphi 0, %s395
      %s399 = sphi 0, %s398
      %s415 = sphi 0, %s399
    $region4: #{transformer_block1_forward.1} parent=1 // loop_header_branch
      %26 = sbr.rel (%p24) target = $region8
    $region5: #{transformer_block1_forward.1} parent=1 // loop_body
      %s28 = ssub.s32 %s23, 1
      %s29 = ssub.s32 %s23, 2
      %s30 = sadd.s32 %s23, 1
      %s31 = ssub.s32 %s23, %s30
      %p32 = scmp.eq.s32.totalorder %s31, 0
      %s34 = sadd.s32 %s33, 1
      %s35 = scalar_select %p32, %s33, %s34
      %p38 = pneg %p32
      %p39 = scmp.eq.s32.totalorder %s23, 1
      %p40 = por %p38, %p39
      %p41 = scmp.ne.s32.totalorder %s33, %s36
      %p42 = scmp.eq.s32.totalorder %s23, 0
      %p43 = por %p41, %p42
      %p44 = scmp.ne.s32.totalorder %s33, %s36
      %p45 = scmp.eq.s32.totalorder %s28, 1
      %p46 = por %p44, %p45
      %p47 = scmp.ne.s32.totalorder %s36, %s37
      %p48 = scmp.eq.s32.totalorder %s28, 0
      %p49 = por %p47, %p48
      %p50 = scmp.ne.s32.totalorder %s36, %s37
      %p51 = scmp.eq.s32.totalorder %s29, 1
      %p52 = por %p50, %p51
      %p54 = scmp.ne.s32.totalorder %s37, %s53
      %p55 = scmp.eq.s32.totalorder %s29, 0
      %p56 = por %p54, %p55
      %s58 = sadd.s32 %s57, 1
      %p61 = scmp.eq.s32.totalorder %s23, 1
      %p62 = scmp.ne.s32.totalorder %s57, %s59
      %p63 = scmp.eq.s32.totalorder %s23, 0
      %p64 = por %p62, %p63
      %p65 = scmp.ne.s32.totalorder %s57, %s59
      %p66 = scmp.eq.s32.totalorder %s28, 1
      %p67 = por %p65, %p66
      %p68 = scmp.ne.s32.totalorder %s59, %s60
      %p69 = scmp.eq.s32.totalorder %s28, 0
      %p70 = por %p68, %p69
      %p71 = scmp.ne.s32.totalorder %s59, %s60
      %p72 = scmp.eq.s32.totalorder %s29, 1
      %p73 = por %p71, %p72
      %p75 = scmp.ne.s32.totalorder %s60, %s74
      %p76 = scmp.eq.s32.totalorder %s29, 0
      %p77 = por %p75, %p76
      %s79 = sadd.s32 %s78, 1
      %p82 = scmp.eq.s32.totalorder %s23, 1
      %p83 = scmp.ne.s32.totalorder %s78, %s80
      %p84 = scmp.eq.s32.totalorder %s23, 0
      %p85 = por %p83, %p84
      %p86 = scmp.ne.s32.totalorder %s78, %s80
      %p87 = scmp.eq.s32.totalorder %s28, 1
      %p88 = por %p86, %p87
      %p89 = scmp.ne.s32.totalorder %s80, %s81
      %p90 = scmp.eq.s32.totalorder %s28, 0
      %p91 = por %p89, %p90
      %p92 = scmp.ne.s32.totalorder %s80, %s81
      %p93 = scmp.eq.s32.totalorder %s29, 1
      %p94 = por %p92, %p93
      %p96 = scmp.ne.s32.totalorder %s81, %s95
      %p97 = scmp.eq.s32.totalorder %s29, 0
      %p98 = por %p96, %p97
      %s100 = sadd.s32 %s99, 1
      %p103 = scmp.eq.s32.totalorder %s23, 1
      %p104 = scmp.ne.s32.totalorder %s99, %s101
      %p105 = scmp.eq.s32.totalorder %s23, 0
      %p106 = por %p104, %p105
      %p107 = scmp.ne.s32.totalorder %s99, %s101
      %p108 = scmp.eq.s32.totalorder %s28, 1
      %p109 = por %p107, %p108
      %p110 = scmp.ne.s32.totalorder %s101, %s102
      %p111 = scmp.eq.s32.totalorder %s28, 0
      %p112 = por %p110, %p111
      %p113 = scmp.ne.s32.totalorder %s101, %s102
      %p114 = scmp.eq.s32.totalorder %s29, 1
      %p115 = por %p113, %p114
      %p117 = scmp.ne.s32.totalorder %s102, %s116
      %p118 = scmp.eq.s32.totalorder %s29, 0
      %p119 = por %p117, %p118
      %s121 = sadd.s32 %s120, 1
      %p124 = scmp.eq.s32.totalorder %s23, 1
      %p125 = scmp.ne.s32.totalorder %s120, %s122
      %p126 = scmp.eq.s32.totalorder %s23, 0
      %p127 = por %p125, %p126
      %p128 = scmp.ne.s32.totalorder %s120, %s122
      %p129 = scmp.eq.s32.totalorder %s28, 1
      %p130 = por %p128, %p129
      %p131 = scmp.ne.s32.totalorder %s122, %s123
      %p132 = scmp.eq.s32.totalorder %s28, 0
      %p133 = por %p131, %p132
      %p134 = scmp.ne.s32.totalorder %s122, %s123
      %p135 = scmp.eq.s32.totalorder %s29, 1
      %p136 = por %p134, %p135
      %p138 = scmp.ne.s32.totalorder %s123, %s137
      %p139 = scmp.eq.s32.totalorder %s29, 0
      %p140 = por %p138, %p139
      %s142 = sadd.s32 %s141, 1
      %p145 = scmp.eq.s32.totalorder %s23, 1
      %p146 = scmp.ne.s32.totalorder %s141, %s143
      %p147 = scmp.eq.s32.totalorder %s23, 0
      %p148 = por %p146, %p147
      %p149 = scmp.ne.s32.totalorder %s141, %s143
      %p150 = scmp.eq.s32.totalorder %s28, 1
      %p151 = por %p149, %p150
      %p152 = scmp.ne.s32.totalorder %s143, %s144
      %p153 = scmp.eq.s32.totalorder %s28, 0
      %p154 = por %p152, %p153
      %p155 = scmp.ne.s32.totalorder %s143, %s144
      %p156 = scmp.eq.s32.totalorder %s29, 1
      %p157 = por %p155, %p156
      %p159 = scmp.ne.s32.totalorder %s144, %s158
      %p160 = scmp.eq.s32.totalorder %s29, 0
      %p161 = por %p159, %p160
      %s163 = sadd.s32 %s162, 1
      %p166 = scmp.eq.s32.totalorder %s23, 1
      %p167 = scmp.ne.s32.totalorder %s162, %s164
      %p168 = scmp.eq.s32.totalorder %s23, 0
      %p169 = por %p167, %p168
      %p170 = scmp.ne.s32.totalorder %s162, %s164
      %p171 = scmp.eq.s32.totalorder %s28, 1
      %p172 = por %p170, %p171
      %p173 = scmp.ne.s32.totalorder %s164, %s165
      %p174 = scmp.eq.s32.totalorder %s28, 0
      %p175 = por %p173, %p174
      %p176 = scmp.ne.s32.totalorder %s164, %s165
      %p177 = scmp.eq.s32.totalorder %s29, 1
      %p178 = por %p176, %p177
      %p180 = scmp.ne.s32.totalorder %s165, %s179
      %p181 = scmp.eq.s32.totalorder %s29, 0
      %p182 = por %p180, %p181
      %s184 = sadd.s32 %s183, 1
      %p187 = scmp.eq.s32.totalorder %s23, 1
      %p188 = scmp.ne.s32.totalorder %s183, %s185
      %p189 = scmp.eq.s32.totalorder %s23, 0
      %p190 = por %p188, %p189
      %p191 = scmp.ne.s32.totalorder %s183, %s185
      %p192 = scmp.eq.s32.totalorder %s28, 1
      %p193 = por %p191, %p192
      %p194 = scmp.ne.s32.totalorder %s185, %s186
      %p195 = scmp.eq.s32.totalorder %s28, 0
      %p196 = por %p194, %p195
      %p197 = scmp.ne.s32.totalorder %s185, %s186
      %p198 = scmp.eq.s32.totalorder %s29, 1
      %p199 = por %p197, %p198
      %p201 = scmp.ne.s32.totalorder %s186, %s200
      %p202 = scmp.eq.s32.totalorder %s29, 0
      %p203 = por %p201, %p202
      %s205 = sadd.s32 %s204, 1
      %p208 = scmp.eq.s32.totalorder %s23, 1
      %p209 = scmp.ne.s32.totalorder %s204, %s206
      %p210 = scmp.eq.s32.totalorder %s23, 0
      %p211 = por %p209, %p210
      %p212 = scmp.ne.s32.totalorder %s204, %s206
      %p213 = scmp.eq.s32.totalorder %s28, 1
      %p214 = por %p212, %p213
      %p215 = scmp.ne.s32.totalorder %s206, %s207
      %p216 = scmp.eq.s32.totalorder %s28, 0
      %p217 = por %p215, %p216
      %p218 = scmp.ne.s32.totalorder %s206, %s207
      %p219 = scmp.eq.s32.totalorder %s29, 1
      %p220 = por %p218, %p219
      %p222 = scmp.ne.s32.totalorder %s207, %s221
      %p223 = scmp.eq.s32.totalorder %s29, 0
      %p224 = por %p222, %p223
      %s226 = sadd.s32 %s225, 1
      %p229 = scmp.eq.s32.totalorder %s23, 1
      %p230 = scmp.ne.s32.totalorder %s225, %s227
      %p231 = scmp.eq.s32.totalorder %s23, 0
      %p232 = por %p230, %p231
      %p233 = scmp.ne.s32.totalorder %s225, %s227
      %p234 = scmp.eq.s32.totalorder %s28, 1
      %p235 = por %p233, %p234
      %p236 = scmp.ne.s32.totalorder %s227, %s228
      %p237 = scmp.eq.s32.totalorder %s28, 0
      %p238 = por %p236, %p237
      %p239 = scmp.ne.s32.totalorder %s227, %s228
      %p240 = scmp.eq.s32.totalorder %s29, 1
      %p241 = por %p239, %p240
      %p243 = scmp.ne.s32.totalorder %s228, %s242
      %p244 = scmp.eq.s32.totalorder %s29, 0
      %p245 = por %p243, %p244
      %s247 = sadd.s32 %s246, 1
      %p250 = scmp.eq.s32.totalorder %s23, 1
      %p251 = scmp.ne.s32.totalorder %s246, %s248
      %p252 = scmp.eq.s32.totalorder %s23, 0
      %p253 = por %p251, %p252
      %p254 = scmp.ne.s32.totalorder %s246, %s248
      %p255 = scmp.eq.s32.totalorder %s28, 1
      %p256 = por %p254, %p255
      %p257 = scmp.ne.s32.totalorder %s248, %s249
      %p258 = scmp.eq.s32.totalorder %s28, 0
      %p259 = por %p257, %p258
      %p260 = scmp.ne.s32.totalorder %s248, %s249
      %p261 = scmp.eq.s32.totalorder %s29, 1
      %p262 = por %p260, %p261
      %p264 = scmp.ne.s32.totalorder %s249, %s263
      %p265 = scmp.eq.s32.totalorder %s29, 0
      %p266 = por %p264, %p265
      %s268 = sadd.s32 %s267, 1
      %p271 = scmp.eq.s32.totalorder %s23, 1
      %p272 = scmp.ne.s32.totalorder %s267, %s269
      %p273 = scmp.eq.s32.totalorder %s23, 0
      %p274 = por %p272, %p273
      %p275 = scmp.ne.s32.totalorder %s267, %s269
      %p276 = scmp.eq.s32.totalorder %s28, 1
      %p277 = por %p275, %p276
      %p278 = scmp.ne.s32.totalorder %s269, %s270
      %p279 = scmp.eq.s32.totalorder %s28, 0
      %p280 = por %p278, %p279
      %p281 = scmp.ne.s32.totalorder %s269, %s270
      %p282 = scmp.eq.s32.totalorder %s29, 1
      %p283 = por %p281, %p282
      %p285 = scmp.ne.s32.totalorder %s270, %s284
      %p286 = scmp.eq.s32.totalorder %s29, 0
      %p287 = por %p285, %p286
      %s289 = sadd.s32 %s288, 1
      %p292 = scmp.eq.s32.totalorder %s23, 1
      %p293 = scmp.ne.s32.totalorder %s288, %s290
      %p294 = scmp.eq.s32.totalorder %s23, 0
      %p295 = por %p293, %p294
      %p296 = scmp.ne.s32.totalorder %s288, %s290
      %p297 = scmp.eq.s32.totalorder %s28, 1
      %p298 = por %p296, %p297
      %p299 = scmp.ne.s32.totalorder %s290, %s291
      %p300 = scmp.eq.s32.totalorder %s28, 0
      %p301 = por %p299, %p300
      %p302 = scmp.ne.s32.totalorder %s290, %s291
      %p303 = scmp.eq.s32.totalorder %s29, 1
      %p304 = por %p302, %p303
      %p306 = scmp.ne.s32.totalorder %s291, %s305
      %p307 = scmp.eq.s32.totalorder %s29, 0
      %p308 = por %p306, %p307
      %s310 = sadd.s32 %s309, 1
      %p313 = scmp.eq.s32.totalorder %s23, 1
      %p314 = scmp.ne.s32.totalorder %s309, %s311
      %p315 = scmp.eq.s32.totalorder %s23, 0
      %p316 = por %p314, %p315
      %p317 = scmp.ne.s32.totalorder %s309, %s311
      %p318 = scmp.eq.s32.totalorder %s28, 1
      %p319 = por %p317, %p318
      %p320 = scmp.ne.s32.totalorder %s311, %s312
      %p321 = scmp.eq.s32.totalorder %s28, 0
      %p322 = por %p320, %p321
      %p323 = scmp.ne.s32.totalorder %s311, %s312
      %p324 = scmp.eq.s32.totalorder %s29, 1
      %p325 = por %p323, %p324
      %p327 = scmp.ne.s32.totalorder %s312, %s326
      %p328 = scmp.eq.s32.totalorder %s29, 0
      %p329 = por %p327, %p328
      %s331 = sadd.s32 %s330, 1
      %p334 = scmp.eq.s32.totalorder %s23, 1
      %p335 = scmp.ne.s32.totalorder %s330, %s332
      %p336 = scmp.eq.s32.totalorder %s23, 0
      %p337 = por %p335, %p336
      %p338 = scmp.ne.s32.totalorder %s330, %s332
      %p339 = scmp.eq.s32.totalorder %s28, 1
      %p340 = por %p338, %p339
      %p341 = scmp.ne.s32.totalorder %s332, %s333
      %p342 = scmp.eq.s32.totalorder %s28, 0
      %p343 = por %p341, %p342
      %p344 = scmp.ne.s32.totalorder %s332, %s333
      %p345 = scmp.eq.s32.totalorder %s29, 1
      %p346 = por %p344, %p345
      %p348 = scmp.ne.s32.totalorder %s333, %s347
      %p349 = scmp.eq.s32.totalorder %s29, 0
      %p350 = por %p348, %p349
      %s352 = sadd.s32 %s351, 1
      %p355 = scmp.eq.s32.totalorder %s23, 1
      %p356 = scmp.ne.s32.totalorder %s351, %s353
      %p357 = scmp.eq.s32.totalorder %s23, 0
      %p358 = por %p356, %p357
      %p359 = scmp.ne.s32.totalorder %s351, %s353
      %p360 = scmp.eq.s32.totalorder %s28, 1
      %p361 = por %p359, %p360
      %p362 = scmp.ne.s32.totalorder %s353, %s354
      %p363 = scmp.eq.s32.totalorder %s28, 0
      %p364 = por %p362, %p363
      %p365 = scmp.ne.s32.totalorder %s353, %s354
      %p366 = scmp.eq.s32.totalorder %s29, 1
      %p367 = por %p365, %p366
      %p369 = scmp.ne.s32.totalorder %s354, %s368
      %p370 = scmp.eq.s32.totalorder %s29, 0
      %p371 = por %p369, %p370
      %s373 = sadd.s32 %s372, 1
      %p376 = scmp.eq.s32.totalorder %s23, 1
      %p377 = scmp.ne.s32.totalorder %s372, %s374
      %p378 = scmp.eq.s32.totalorder %s23, 0
      %p379 = por %p377, %p378
      %p380 = scmp.ne.s32.totalorder %s372, %s374
      %p381 = scmp.eq.s32.totalorder %s28, 1
      %p382 = por %p380, %p381
      %p383 = scmp.ne.s32.totalorder %s374, %s375
      %p384 = scmp.eq.s32.totalorder %s28, 0
      %p385 = por %p383, %p384
      %p386 = scmp.ne.s32.totalorder %s374, %s375
      %p387 = scmp.eq.s32.totalorder %s29, 1
      %p388 = por %p386, %p387
      %p390 = scmp.ne.s32.totalorder %s375, %s389
      %p391 = scmp.eq.s32.totalorder %s29, 0
      %p392 = por %p390, %p391
      %s393 = ssub.s32 %s23, %s30
      %p394 = scmp.eq.s32.totalorder %s393, 0
      %s396 = sadd.s32 %s395, 1
      %s397 = scalar_select %p394, %s395, %s396
      %p400 = pneg %p394
      %p401 = scmp.eq.s32.totalorder %s23, 1
      %p402 = por %p400, %p401
      %p403 = scmp.ne.s32.totalorder %s395, %s398
      %p404 = scmp.eq.s32.totalorder %s23, 0
      %p405 = por %p403, %p404
      %p406 = scmp.ne.s32.totalorder %s395, %s398
      %p407 = scmp.eq.s32.totalorder %s28, 1
      %p408 = por %p406, %p407
      %p409 = scmp.ne.s32.totalorder %s398, %s399
      %p410 = scmp.eq.s32.totalorder %s28, 0
      %p411 = por %p409, %p410
      %p412 = scmp.ne.s32.totalorder %s398, %s399
      %p413 = scmp.eq.s32.totalorder %s29, 1
      %p414 = por %p412, %p413
      %p416 = scmp.ne.s32.totalorder %s399, %s415
      %p417 = scmp.eq.s32.totalorder %s29, 0
      %p418 = por %p416, %p417
      %p419 = scmp.le.s32.totalorder 1, %s23
      %p420 = scmp.lt.s32.totalorder %s23, 3
      %p421 = pnand %p419, %p420
      %p422 = pneg %p421
      // Predicated region
      $region9: #{transformer_block1_forward.1} parent=5 // pred_check
        _
      $region10: #{transformer_block1_forward.1} parent=5 // pred_check_branch
        %424 = sbr.rel (%p421) target = $region12
      $region11: #{transformer_block1_forward.1} parent=5 // pred_region
        %s425 = ssub.s32 %s23, 1
        // Predicated region
        $region13: #{transformer_block1_forward.1} parent=11 // pred_check
          %p426 = pneg %p70
        $region14: #{transformer_block1_forward.1} parent=11 // pred_check_branch
          %428 = sbr.rel (%p426) target = $region16
        $region15: #{transformer_block1_forward.1} parent=11 // pred_region
          _
        $region16: #{transformer_block1_forward.1} parent=11 // pred_fallthru
          _
        // Predicated region
        $region17: #{transformer_block1_forward.1} parent=11 // pred_check
          %p429 = pneg %p91
        $region18: #{transformer_block1_forward.1} parent=11 // pred_check_branch
          %431 = sbr.rel (%p429) target = $region20
        $region19: #{transformer_block1_forward.1} parent=11 // pred_region
          _
        $region20: #{transformer_block1_forward.1} parent=11 // pred_fallthru
          _
        // Predicated region
        $region21: #{transformer_block1_forward.1} parent=11 // pred_check
          %p432 = pneg %p112
        $region22: #{transformer_block1_forward.1} parent=11 // pred_check_branch
          %434 = sbr.rel (%p432) target = $region24
        $region23: #{transformer_block1_forward.1} parent=11 // pred_region
          _
        $region24: #{transformer_block1_forward.1} parent=11 // pred_fallthru
          _
        // Predicated region
        $region25: #{transformer_block1_forward.1} parent=11 // pred_check
          %p435 = pneg %p133
        $region26: #{transformer_block1_forward.1} parent=11 // pred_check_branch
          %437 = sbr.rel (%p435) target = $region28
        $region27: #{transformer_block1_forward.1} parent=11 // pred_region
          _
        $region28: #{transformer_block1_forward.1} parent=11 // pred_fallthru
          _
        // Predicated region
        $region29: #{transformer_block1_forward.1} parent=11 // pred_check
          %p438 = pneg %p154
        $region30: #{transformer_block1_forward.1} parent=11 // pred_check_branch
          %440 = sbr.rel (%p438) target = $region32
        $region31: #{transformer_block1_forward.1} parent=11 // pred_region
          _
        $region32: #{transformer_block1_forward.1} parent=11 // pred_fallthru
          _
        // Predicated region
        $region33: #{transformer_block1_forward.1} parent=11 // pred_check
          %p441 = pneg %p175
        $region34: #{transformer_block1_forward.1} parent=11 // pred_check_branch
          %443 = sbr.rel (%p441) target = $region36
        $region35: #{transformer_block1_forward.1} parent=11 // pred_region
          _
        $region36: #{transformer_block1_forward.1} parent=11 // pred_fallthru
          _
        // Predicated region
        $region37: #{transformer_block1_forward.1} parent=11 // pred_check
          %p444 = pneg %p196
        $region38: #{transformer_block1_forward.1} parent=11 // pred_check_branch
          %446 = sbr.rel (%p444) target = $region40
        $region39: #{transformer_block1_forward.1} parent=11 // pred_region
          _
        $region40: #{transformer_block1_forward.1} parent=11 // pred_fallthru
          _
        // Predicated region
        $region41: #{transformer_block1_forward.1} parent=11 // pred_check
          %p447 = pneg %p217
        $region42: #{transformer_block1_forward.1} parent=11 // pred_check_branch
          %449 = sbr.rel (%p447) target = $region44
        $region43: #{transformer_block1_forward.1} parent=11 // pred_region
          _
        $region44: #{transformer_block1_forward.1} parent=11 // pred_fallthru
          _
        // Predicated region
        $region45: #{transformer_block1_forward.1} parent=11 // pred_check
          %p450 = pneg %p238
        $region46: #{transformer_block1_forward.1} parent=11 // pred_check_branch
          %452 = sbr.rel (%p450) target = $region48
        $region47: #{transformer_block1_forward.1} parent=11 // pred_region
          _
        $region48: #{transformer_block1_forward.1} parent=11 // pred_fallthru
          _
        // Predicated region
        $region49: #{transformer_block1_forward.1} parent=11 // pred_check
          %p453 = pneg %p259
        $region50: #{transformer_block1_forward.1} parent=11 // pred_check_branch
          %455 = sbr.rel (%p453) target = $region52
        $region51: #{transformer_block1_forward.1} parent=11 // pred_region
          _
        $region52: #{transformer_block1_forward.1} parent=11 // pred_fallthru
          _
        // Predicated region
        $region53: #{transformer_block1_forward.1} parent=11 // pred_check
          %p456 = pneg %p280
        $region54: #{transformer_block1_forward.1} parent=11 // pred_check_branch
          %458 = sbr.rel (%p456) target = $region56
        $region55: #{transformer_block1_forward.1} parent=11 // pred_region
          _
        $region56: #{transformer_block1_forward.1} parent=11 // pred_fallthru
          _
        // Predicated region
        $region57: #{transformer_block1_forward.1} parent=11 // pred_check
          %p459 = pneg %p301
        $region58: #{transformer_block1_forward.1} parent=11 // pred_check_branch
          %461 = sbr.rel (%p459) target = $region60
        $region59: #{transformer_block1_forward.1} parent=11 // pred_region
          _
        $region60: #{transformer_block1_forward.1} parent=11 // pred_fallthru
          _
        // Predicated region
        $region61: #{transformer_block1_forward.1} parent=11 // pred_check
          %p462 = pneg %p322
        $region62: #{transformer_block1_forward.1} parent=11 // pred_check_branch
          %464 = sbr.rel (%p462) target = $region64
        $region63: #{transformer_block1_forward.1} parent=11 // pred_region
          _
        $region64: #{transformer_block1_forward.1} parent=11 // pred_fallthru
          _
        // Predicated region
        $region65: #{transformer_block1_forward.1} parent=11 // pred_check
          %p465 = pneg %p343
        $region66: #{transformer_block1_forward.1} parent=11 // pred_check_branch
          %467 = sbr.rel (%p465) target = $region68
        $region67: #{transformer_block1_forward.1} parent=11 // pred_region
          _
        $region68: #{transformer_block1_forward.1} parent=11 // pred_fallthru
          _
        // Predicated region
        $region69: #{transformer_block1_forward.1} parent=11 // pred_check
          %p468 = pneg %p364
        $region70: #{transformer_block1_forward.1} parent=11 // pred_check_branch
          %470 = sbr.rel (%p468) target = $region72
        $region71: #{transformer_block1_forward.1} parent=11 // pred_region
          _
        $region72: #{transformer_block1_forward.1} parent=11 // pred_fallthru
          _
        // Predicated region
        $region73: #{transformer_block1_forward.1} parent=11 // pred_check
          %p471 = pneg %p385
        $region74: #{transformer_block1_forward.1} parent=11 // pred_check_branch
          %473 = sbr.rel (%p471) target = $region76
        $region75: #{transformer_block1_forward.1} parent=11 // pred_region
          _
        $region76: #{transformer_block1_forward.1} parent=11 // pred_fallthru
          _
      $region12: #{transformer_block1_forward.1} parent=5 // pred_fallthru
        _
      %p474 = scmp.lt.s32.totalorder %s23, 2
      // Predicated region
      $region77: #{transformer_block1_forward.1} parent=5 // pred_check
        %p475 = pneg %p474
      $region78: #{transformer_block1_forward.1} parent=5 // pred_check_branch
        %477 = sbr.rel (%p475) target = $region80
      $region79: #{transformer_block1_forward.1} parent=5 // pred_region
        // Predicated region
        $region81: #{transformer_block1_forward.1} parent=79 // pred_check
          %p478 = pneg %p43
        $region82: #{transformer_block1_forward.1} parent=79 // pred_check_branch
          %480 = sbr.rel (%p478) target = $region84
        $region83: #{transformer_block1_forward.1} parent=79 // pred_region
          %s481 = sand.u32 %s33, 1
          %s482 = sand.u32 %s33, 1
          %s483 = smul.addr %s482, 48
          %s484 = scalar_lea.vmem [#allocation2], %s483
          %s485 = smul.u32 2, %s23
          %s486 = smul.addr %s485, 8
          %s487 = scalar_lea.vmem %s0, %s486
          // Predicated region
          $region85: #{transformer_block1_forward.1} parent=83 // pred_check
            _
          $region86: #{transformer_block1_forward.1} parent=83 // pred_check_branch
            %489 = sbr.rel (0) target = $region88
          $region87: #{transformer_block1_forward.1} parent=83 // pred_region
            // Predicated region
            $region89: #{transformer_block1_forward.1} parent=87 // pred_check
              _
            $region90: #{transformer_block1_forward.1} parent=87 // pred_check_branch
              %491 = sbr.rel (0) target = $region92
            $region91: #{transformer_block1_forward.1} parent=87 // pred_region
              loop: start=0, step=1, limit=1
              $region93: #{transformer_block1_forward.1} parent=91 // loop_pre_header
                _
              $region94: #{transformer_block1_forward.1} parent=91 // loop_header
                %s493 = sphi 0, %s497
                %p494 = scmp.ge.s32.totalorder %s493, 1
                %s498 = sphi %s487, %s487
                %s499 = sphi %s484, %s484
              $region95: #{transformer_block1_forward.1} parent=91 // loop_header_branch
                %496 = sbr.rel (%p494) target = $region99
              $region96: #{transformer_block1_forward.1} parent=91 // loop_body
                %v500 = vld [vmem:[%s498] sm:$0xff]
                %501 = vst [vmem:[%s499] sm:$0xff] %v500
                %v502 = vld [vmem:[%s498 + $0x8] sm:$0xff]
                %503 = vst [vmem:[%s499 + $0x8] sm:$0xff] %v502
                %v504 = vld [vmem:[%s498 + $0x20] sm:$0xff]
                %505 = vst [vmem:[%s499 + $0x10] sm:$0xff] %v504
                %v506 = vld [vmem:[%s498 + $0x28] sm:$0xff]
                %507 = vst [vmem:[%s499 + $0x18] sm:$0xff] %v506
                %v508 = vld [vmem:[%s498 + $0x40] sm:$0xff]
                %509 = vst [vmem:[%s499 + $0x20] sm:$0xff] %v508
                %v510 = vld [vmem:[%s498 + $0x48] sm:$0xff]
                %511 = vst [vmem:[%s499 + $0x28] sm:$0xff] %v510
              $region97: #{transformer_block1_forward.1} parent=91 // loop_footer
                %s497 = sadd.s32 1, %s493
              $region98: #{transformer_block1_forward.1} parent=91 // loop_footer_branch
                %492 = sbr.rel target = $region94
              $region99: #{transformer_block1_forward.1} parent=91 // loop_exit
                _
            $region92: #{transformer_block1_forward.1} parent=87 // pred_fallthru
              _
            // Predicated region
            $region100: #{transformer_block1_forward.1} parent=87 // pred_check
              _
            $region101: #{transformer_block1_forward.1} parent=87 // pred_check_branch
              %513 = sbr.rel target = $region103
            $region102: #{transformer_block1_forward.1} parent=87 // pred_region
              _
            $region103: #{transformer_block1_forward.1} parent=87 // pred_fallthru
              _
          $region88: #{transformer_block1_forward.1} parent=83 // pred_fallthru
            _
          %514 = vnop
        $region84: #{transformer_block1_forward.1} parent=79 // pred_fallthru
          _
      $region80: #{transformer_block1_forward.1} parent=5 // pred_fallthru
        _
      %p515 = scmp.le.s32.totalorder 1, %s23
      %p516 = scmp.lt.s32.totalorder %s23, 3
      %p517 = pnand %p515, %p516
      %p518 = pneg %p517
      // Predicated region
      $region104: #{transformer_block1_forward.1} parent=5 // pred_check
        _
      $region105: #{transformer_block1_forward.1} parent=5 // pred_check_branch
        %520 = sbr.rel (%p517) target = $region107
      $region106: #{transformer_block1_forward.1} parent=5 // pred_region
        %s521 = ssub.s32 %s23, 1
        %s522 = sand.u32 %s36, 1
        %s523 = sand.u32 %s36, 1
        %s524 = smul.addr %s523, 48
        %s525 = scalar_lea.vmem [#allocation2], %s524
        // Predicated region
        $region108: #{transformer_block1_forward.1} parent=106 // pred_check
          %p526 = pneg %p49
        $region109: #{transformer_block1_forward.1} parent=106 // pred_check_branch
          %528 = sbr.rel (%p526) target = $region111
        $region110: #{transformer_block1_forward.1} parent=106 // pred_region
          _
        $region111: #{transformer_block1_forward.1} parent=106 // pred_fallthru
          _
        %s529 = sand.u32 %s36, 1
        %s530 = sand.u32 %s36, 1
        %s531 = smul.addr %s530, 48
        %s532 = scalar_lea.vmem [#allocation2], %s531
        %p533 = pneg %p49
        %p534 = pneg %p46
        %p535 = pneg %p70
        %p536 = pneg %p67
        %p537 = pneg %p91
        %p538 = pneg %p88
        %p539 = pneg %p112
        %p540 = pneg %p109
        %p541 = pneg %p133
        %p542 = pneg %p130
        %p543 = pneg %p154
        %p544 = pneg %p151
        %p545 = pneg %p175
        %p546 = pneg %p172
        %p547 = pneg %p196
        %p548 = pneg %p193
        %p549 = pneg %p217
        %p550 = pneg %p214
        %p551 = pneg %p238
        %p552 = pneg %p235
        %p553 = pneg %p259
        %p554 = pneg %p256
        %p555 = pneg %p280
        %p556 = pneg %p277
        %p557 = pneg %p301
        %p558 = pneg %p298
        %p559 = pneg %p322
        %p560 = pneg %p319
        %p561 = pneg %p343
        %p562 = pneg %p340
        %p563 = pneg %p364
        %p564 = pneg %p361
        %p565 = pneg %p385
        %p566 = pneg %p382
        %p567 = pneg %p411
        %p568 = pneg %p408
        %s569 = sand.u32 %s398, 1
        %s570 = sand.u32 %s398, 1
        %s571 = smul.addr %s570, 32
        %s572 = scalar_lea.vmem [#allocation3], %s571
        %s573 = smul.u32 2, %s28
        %s574 = smul.u32 2, %s28
        %v576 = vld [vmem:[%s525] sm:$0xff]
        %v577 = vld [vmem:[%s525 + $0x8] sm:$0xff]
        %v578 = vld [vmem:[%s525 + $0x10] sm:$0xff]
        %v579 = vld [vmem:[%s525 + $0x18] sm:$0xff]
        %v580 = vld [vmem:[%s525 + $0x20] sm:$0xff]
        %v581 = vld [vmem:[%s525 + $0x28] sm:$0xff]
        %582 = vrot.lane.b32.xlu0 %v576, 17
        %v583 = vpop.permute.xlu0 %582
        %584 = vrot.lane.b32.xlu0 %v578, 17
        %v585 = vpop.permute.xlu0 %584
        %586 = vrot.lane.b32.xlu0 %v580, 17
        %v587 = vpop.permute.xlu0 %586
        %588 = vrot.lane.b32.xlu0 %v577, 17
        %v589 = vpop.permute.xlu0 %588
        %590 = vrot.lane.b32.xlu0 %v579, 17
        %v591 = vpop.permute.xlu0 %590
        %592 = vrot.lane.b32.xlu0 %v581, 17
        %v593 = vpop.permute.xlu0 %592
        %v594 = vlaneseq
        %v595 = vand.u32 %v594, 127
        %vm596 = vcmp.lt.s32.totalorder %v595, 17
        %v597 = vsel %vm596, %v583, %v589
        %v598 = vsel %vm596, %v585, %v591
        %v599 = vsel %vm596, %v587, %v593
        %v600 = vsel %vm596, %v589, %v583
        %v601 = vsel %vm596, %v591, %v585
        %v602 = vsel %vm596, %v593, %v587
        %v603 = vld [vmem:[%s2] sm:$0xff]
        %v604 = vld [vmem:[%s2 + $0x8] sm:$0xff]
        %vm605 = vcmask 195584
        %v607 = vsel %vm605, %v603, 0
        %v610 = vsel %vm605, %v604, 0
        %612 = vmatpush.msra.mxu0 0.0
        %613 = vmatpush.msra.mxu0 0.0
        %614 = vmatpush.msra.mxu0 0.0
        %615 = vmatpush.msra.mxu0 0.0
        %616 = vmatpush.msra.mxu0 0.0
        %617 = vmatpush.msra.mxu0 0.0
        %618 = vmatpush.msra.mxu0 0.0
        %619 = vmatpush.msra.mxu0 0.0
        %620 = vmatpush.msra.mxu0 0.0
        %621 = vmatpush.msra.mxu0 0.0
        %622 = vmatpush.msra.mxu0 0.0
        %623 = vmatpush.msra.mxu0 0.0
        %624 = vmatpush.msra.mxu0 0.0
        %625 = vmatpush.msra.mxu0 %v602
        %626 = vmatpush.msra.mxu0 %v601
        %627 = vmatpush.msra.mxu0 %v600
        %628 = vmatmul.f32.gmra.mxu0 %v607
        %v629 = vpop.f32.mrf.mxu0
        %v630 = vadd.f32 0.0, %v629
        %631 = vmatmul.f32.gmra.mxu0 %v610
        %v632 = vpop.f32.mrf.mxu0
        %v633 = vadd.f32 0.0, %v632
        %634 = vdwg.mxu0
        %635 = vmatpush.msra.mxu0 0.0
        %636 = vmatpush.msra.mxu0 0.0
        %637 = vmatpush.msra.mxu0 0.0
        %638 = vmatpush.msra.mxu0 0.0
        %639 = vmatpush.msra.mxu0 0.0
        %640 = vmatpush.msra.mxu0 0.0
        %641 = vmatpush.msra.mxu0 0.0
        %642 = vmatpush.msra.mxu0 0.0
        %643 = vmatpush.msra.mxu0 0.0
        %644 = vmatpush.msra.mxu0 0.0
        %645 = vmatpush.msra.mxu0 0.0
        %646 = vmatpush.msra.mxu0 0.0
        %647 = vmatpush.msra.mxu0 0.0
        %648 = vmatpush.msra.mxu0 %v599
        %649 = vmatpush.msra.mxu0 %v598
        %650 = vmatpush.msra.mxu0 %v597
        %651 = vmatmul.f32.gmra.mxu0 %v607
        %v652 = vpop.f32.mrf.mxu0
        %v653 = vadd.f32 0.0, %v652
        %654 = vmatmul.f32.gmra.mxu0 %v610
        %v655 = vpop.f32.mrf.mxu0
        %v656 = vadd.f32 0.0, %v655
        %657 = vdwg.mxu0
        %v658 = vld [vmem:[%s1] ss:$8 sm:$0x3]
        %v660 = vperm.slane %v658, 0
        %v661 = vperm.slane %v658, 1
        %v664 = vmul.f32 %v630, %v660
        %v665 = vmul.f32 %v653, %v661
        %v666 = vmul.f32 %v633, %v660
        %v667 = vmul.f32 %v656, %v661
        %668 = vrot.lane.b32.xlu0 %v576, 16
        %v669 = vpop.permute.xlu0 %668
        %670 = vrot.lane.b32.xlu0 %v578, 16
        %v671 = vpop.permute.xlu0 %670
        %672 = vrot.lane.b32.xlu0 %v580, 16
        %v673 = vpop.permute.xlu0 %672
        %674 = vrot.lane.b32.xlu0 %v577, 16
        %v675 = vpop.permute.xlu0 %674
        %676 = vrot.lane.b32.xlu0 %v579, 16
        %v677 = vpop.permute.xlu0 %676
        %678 = vrot.lane.b32.xlu0 %v581, 16
        %v679 = vpop.permute.xlu0 %678
        %vm680 = vcmp.lt.s32.totalorder %v595, 16
        %v681 = vsel %vm680, %v669, %v675
        %v682 = vsel %vm680, %v671, %v677
        %v683 = vsel %vm680, %v673, %v679
        %v684 = vsel %vm680, %v675, %v669
        %v685 = vsel %vm680, %v677, %v671
        %v686 = vsel %vm680, %v679, %v673
        %s687 = scalar_lea.vmem %s2, 16
        %v688 = vld [vmem:[%s687] sm:$0xff]
        %v689 = vld [vmem:[%s687 + $0x8] sm:$0xff]
        %v691 = vsel %vm605, %v688, 0
        %v694 = vsel %vm605, %v689, 0
        %696 = vmatpush.msra.mxu0 0.0
        %697 = vmatpush.msra.mxu0 0.0
        %698 = vmatpush.msra.mxu0 0.0
        %699 = vmatpush.msra.mxu0 0.0
        %700 = vmatpush.msra.mxu0 0.0
        %701 = vmatpush.msra.mxu0 0.0
        %702 = vmatpush.msra.mxu0 0.0
        %703 = vmatpush.msra.mxu0 0.0
        %704 = vmatpush.msra.mxu0 0.0
        %705 = vmatpush.msra.mxu0 0.0
        %706 = vmatpush.msra.mxu0 0.0
        %707 = vmatpush.msra.mxu0 0.0
        %708 = vmatpush.msra.mxu0 0.0
        %709 = vmatpush.msra.mxu0 %v686
        %710 = vmatpush.msra.mxu0 %v685
        %711 = vmatpush.msra.mxu0 %v684
        %712 = vmatmul.f32.gmra.mxu0 %v691
        %v713 = vpop.f32.mrf.mxu0
        %v714 = vadd.f32 0.0, %v713
        %715 = vmatmul.f32.gmra.mxu0 %v694
        %v716 = vpop.f32.mrf.mxu0
        %v717 = vadd.f32 0.0, %v716
        %718 = vdwg.mxu0
        %719 = vmatpush.msra.mxu0 0.0
        %720 = vmatpush.msra.mxu0 0.0
        %721 = vmatpush.msra.mxu0 0.0
        %722 = vmatpush.msra.mxu0 0.0
        %723 = vmatpush.msra.mxu0 0.0
        %724 = vmatpush.msra.mxu0 0.0
        %725 = vmatpush.msra.mxu0 0.0
        %726 = vmatpush.msra.mxu0 0.0
        %727 = vmatpush.msra.mxu0 0.0
        %728 = vmatpush.msra.mxu0 0.0
        %729 = vmatpush.msra.mxu0 0.0
        %730 = vmatpush.msra.mxu0 0.0
        %731 = vmatpush.msra.mxu0 0.0
        %732 = vmatpush.msra.mxu0 %v683
        %733 = vmatpush.msra.mxu0 %v682
        %734 = vmatpush.msra.mxu0 %v681
        %735 = vmatmul.f32.gmra.mxu0 %v691
        %v736 = vpop.f32.mrf.mxu0
        %v737 = vadd.f32 0.0, %v736
        %738 = vmatmul.f32.gmra.mxu0 %v694
        %v739 = vpop.f32.mrf.mxu0
        %v740 = vadd.f32 0.0, %v739
        %741 = vdwg.mxu0
        %s742 = scalar_lea.vmem %s1, 1
        %v743 = vld [vmem:[%s742] ss:$8 sm:$0x3]
        %v745 = vperm.slane %v743, 0
        %v746 = vperm.slane %v743, 1
        %v749 = vmul.f32 %v714, %v745
        %v750 = vmul.f32 %v737, %v746
        %v751 = vmul.f32 %v717, %v745
        %v752 = vmul.f32 %v740, %v746
        %v753 = vadd.f32 %v664, %v749
        %v754 = vadd.f32 %v665, %v750
        %v755 = vadd.f32 %v666, %v751
        %v756 = vadd.f32 %v667, %v752
        %757 = vrot.lane.b32.xlu0 %v576, 15
        %v758 = vpop.permute.xlu0 %757
        %759 = vrot.lane.b32.xlu0 %v578, 15
        %v760 = vpop.permute.xlu0 %759
        %761 = vrot.lane.b32.xlu0 %v580, 15
        %v762 = vpop.permute.xlu0 %761
        %763 = vrot.lane.b32.xlu0 %v577, 15
        %v764 = vpop.permute.xlu0 %763
        %765 = vrot.lane.b32.xlu0 %v579, 15
        %v766 = vpop.permute.xlu0 %765
        %767 = vrot.lane.b32.xlu0 %v581, 15
        %v768 = vpop.permute.xlu0 %767
        %vm769 = vcmp.lt.s32.totalorder %v595, 15
        %v770 = vsel %vm769, %v758, %v764
        %v771 = vsel %vm769, %v760, %v766
        %v772 = vsel %vm769, %v762, %v768
        %v773 = vsel %vm769, %v764, %v758
        %v774 = vsel %vm769, %v766, %v760
        %v775 = vsel %vm769, %v768, %v762
        %s776 = scalar_lea.vmem %s2, 32
        %v777 = vld [vmem:[%s776] sm:$0xff]
        %v778 = vld [vmem:[%s776 + $0x8] sm:$0xff]
        %v780 = vsel %vm605, %v777, 0
        %v783 = vsel %vm605, %v778, 0
        %785 = vmatpush.msra.mxu0 0.0
        %786 = vmatpush.msra.mxu0 0.0
        %787 = vmatpush.msra.mxu0 0.0
        %788 = vmatpush.msra.mxu0 0.0
        %789 = vmatpush.msra.mxu0 0.0
        %790 = vmatpush.msra.mxu0 0.0
        %791 = vmatpush.msra.mxu0 0.0
        %792 = vmatpush.msra.mxu0 0.0
        %793 = vmatpush.msra.mxu0 0.0
        %794 = vmatpush.msra.mxu0 0.0
        %795 = vmatpush.msra.mxu0 0.0
        %796 = vmatpush.msra.mxu0 0.0
        %797 = vmatpush.msra.mxu0 0.0
        %798 = vmatpush.msra.mxu0 %v775
        %799 = vmatpush.msra.mxu0 %v774
        %800 = vmatpush.msra.mxu0 %v773
        %801 = vmatmul.f32.gmra.mxu0 %v780
        %v802 = vpop.f32.mrf.mxu0
        %v803 = vadd.f32 0.0, %v802
        %804 = vmatmul.f32.gmra.mxu0 %v783
        %v805 = vpop.f32.mrf.mxu0
        %v806 = vadd.f32 0.0, %v805
        %807 = vdwg.mxu0
        %808 = vmatpush.msra.mxu0 0.0
        %809 = vmatpush.msra.mxu0 0.0
        %810 = vmatpush.msra.mxu0 0.0
        %811 = vmatpush.msra.mxu0 0.0
        %812 = vmatpush.msra.mxu0 0.0
        %813 = vmatpush.msra.mxu0 0.0
        %814 = vmatpush.msra.mxu0 0.0
        %815 = vmatpush.msra.mxu0 0.0
        %816 = vmatpush.msra.mxu0 0.0
        %817 = vmatpush.msra.mxu0 0.0
        %818 = vmatpush.msra.mxu0 0.0
        %819 = vmatpush.msra.mxu0 0.0
        %820 = vmatpush.msra.mxu0 0.0
        %821 = vmatpush.msra.mxu0 %v772
        %822 = vmatpush.msra.mxu0 %v771
        %823 = vmatpush.msra.mxu0 %v770
        %824 = vmatmul.f32.gmra.mxu0 %v780
        %v825 = vpop.f32.mrf.mxu0
        %v826 = vadd.f32 0.0, %v825
        %827 = vmatmul.f32.gmra.mxu0 %v783
        %v828 = vpop.f32.mrf.mxu0
        %v829 = vadd.f32 0.0, %v828
        %830 = vdwg.mxu0
        %s831 = scalar_lea.vmem %s1, 2
        %v832 = vld [vmem:[%s831] ss:$8 sm:$0x3]
        %v834 = vperm.slane %v832, 0
        %v835 = vperm.slane %v832, 1
        %v838 = vmul.f32 %v803, %v834
        %v839 = vmul.f32 %v826, %v835
        %v840 = vmul.f32 %v806, %v834
        %v841 = vmul.f32 %v829, %v835
        %v842 = vadd.f32 %v753, %v838
        %v843 = vadd.f32 %v754, %v839
        %v844 = vadd.f32 %v755, %v840
        %v845 = vadd.f32 %v756, %v841
        %846 = vrot.lane.b32.xlu0 %v576, 1
        %v847 = vpop.permute.xlu0 %846
        %848 = vrot.lane.b32.xlu0 %v578, 1
        %v849 = vpop.permute.xlu0 %848
        %850 = vrot.lane.b32.xlu0 %v580, 1
        %v851 = vpop.permute.xlu0 %850
        %852 = vrot.lane.b32.xlu0 %v577, 1
        %v853 = vpop.permute.xlu0 %852
        %854 = vrot.lane.b32.xlu0 %v579, 1
        %v855 = vpop.permute.xlu0 %854
        %856 = vrot.lane.b32.xlu0 %v581, 1
        %v857 = vpop.permute.xlu0 %856
        %vm858 = vcmp.lt.s32.totalorder %v595, 1
        %v859 = vsel %vm858, %v847, %v853
        %v860 = vsel %vm858, %v849, %v855
        %v861 = vsel %vm858, %v851, %v857
        %v862 = vsel %vm858, %v853, %v847
        %v863 = vsel %vm858, %v855, %v849
        %v864 = vsel %vm858, %v857, %v851
        %s865 = scalar_lea.vmem %s2, 48
        %v866 = vld [vmem:[%s865] sm:$0xff]
        %v867 = vld [vmem:[%s865 + $0x8] sm:$0xff]
        %v869 = vsel %vm605, %v866, 0
        %v872 = vsel %vm605, %v867, 0
        %874 = vmatpush.msra.mxu0 0.0
        %875 = vmatpush.msra.mxu0 0.0
        %876 = vmatpush.msra.mxu0 0.0
        %877 = vmatpush.msra.mxu0 0.0
        %878 = vmatpush.msra.mxu0 0.0
        %879 = vmatpush.msra.mxu0 0.0
        %880 = vmatpush.msra.mxu0 0.0
        %881 = vmatpush.msra.mxu0 0.0
        %882 = vmatpush.msra.mxu0 0.0
        %883 = vmatpush.msra.mxu0 0.0
        %884 = vmatpush.msra.mxu0 0.0
        %885 = vmatpush.msra.mxu0 0.0
        %886 = vmatpush.msra.mxu0 0.0
        %887 = vmatpush.msra.mxu0 %v864
        %888 = vmatpush.msra.mxu0 %v863
        %889 = vmatpush.msra.mxu0 %v862
        %890 = vmatmul.f32.gmra.mxu0 %v869
        %v891 = vpop.f32.mrf.mxu0
        %v892 = vadd.f32 0.0, %v891
        %893 = vmatmul.f32.gmra.mxu0 %v872
        %v894 = vpop.f32.mrf.mxu0
        %v895 = vadd.f32 0.0, %v894
        %896 = vdwg.mxu0
        %897 = vmatpush.msra.mxu0 0.0
        %898 = vmatpush.msra.mxu0 0.0
        %899 = vmatpush.msra.mxu0 0.0
        %900 = vmatpush.msra.mxu0 0.0
        %901 = vmatpush.msra.mxu0 0.0
        %902 = vmatpush.msra.mxu0 0.0
        %903 = vmatpush.msra.mxu0 0.0
        %904 = vmatpush.msra.mxu0 0.0
        %905 = vmatpush.msra.mxu0 0.0
        %906 = vmatpush.msra.mxu0 0.0
        %907 = vmatpush.msra.mxu0 0.0
        %908 = vmatpush.msra.mxu0 0.0
        %909 = vmatpush.msra.mxu0 0.0
        %910 = vmatpush.msra.mxu0 %v861
        %911 = vmatpush.msra.mxu0 %v860
        %912 = vmatpush.msra.mxu0 %v859
        %913 = vmatmul.f32.gmra.mxu0 %v869
        %v914 = vpop.f32.mrf.mxu0
        %v915 = vadd.f32 0.0, %v914
        %916 = vmatmul.f32.gmra.mxu0 %v872
        %v917 = vpop.f32.mrf.mxu0
        %v918 = vadd.f32 0.0, %v917
        %919 = vdwg.mxu0
        %s920 = scalar_lea.vmem %s1, 3
        %v921 = vld [vmem:[%s920] ss:$8 sm:$0x3]
        %v923 = vperm.slane %v921, 0
        %v924 = vperm.slane %v921, 1
        %v927 = vmul.f32 %v892, %v923
        %v928 = vmul.f32 %v915, %v924
        %v929 = vmul.f32 %v895, %v923
        %v930 = vmul.f32 %v918, %v924
        %v931 = vadd.f32 %v842, %v927
        %v932 = vadd.f32 %v843, %v928
        %v933 = vadd.f32 %v844, %v929
        %v934 = vadd.f32 %v845, %v930
        %s935 = scalar_lea.vmem %s2, 64
        %v936 = vld [vmem:[%s935] sm:$0xff]
        %v937 = vld [vmem:[%s935 + $0x8] sm:$0xff]
        %v939 = vsel %vm605, %v936, 0
        %v942 = vsel %vm605, %v937, 0
        %944 = vmatpush.msra.mxu0 0.0
        %945 = vmatpush.msra.mxu0 0.0
        %946 = vmatpush.msra.mxu0 0.0
        %947 = vmatpush.msra.mxu0 0.0
        %948 = vmatpush.msra.mxu0 0.0
        %949 = vmatpush.msra.mxu0 0.0
        %950 = vmatpush.msra.mxu0 0.0
        %951 = vmatpush.msra.mxu0 0.0
        %952 = vmatpush.msra.mxu0 0.0
        %953 = vmatpush.msra.mxu0 0.0
        %954 = vmatpush.msra.mxu0 0.0
        %955 = vmatpush.msra.mxu0 0.0
        %956 = vmatpush.msra.mxu0 0.0
        %957 = vmatpush.msra.mxu0 %v580
        %958 = vmatpush.msra.mxu0 %v578
        %959 = vmatpush.msra.mxu0 %v576
        %960 = vmatmul.f32.gmra.mxu0 %v939
        %v961 = vpop.f32.mrf.mxu0
        %v962 = vadd.f32 0.0, %v961
        %963 = vmatmul.f32.gmra.mxu0 %v942
        %v964 = vpop.f32.mrf.mxu0
        %v965 = vadd.f32 0.0, %v964
        %966 = vdwg.mxu0
        %967 = vmatpush.msra.mxu0 0.0
        %968 = vmatpush.msra.mxu0 0.0
        %969 = vmatpush.msra.mxu0 0.0
        %970 = vmatpush.msra.mxu0 0.0
        %971 = vmatpush.msra.mxu0 0.0
        %972 = vmatpush.msra.mxu0 0.0
        %973 = vmatpush.msra.mxu0 0.0
        %974 = vmatpush.msra.mxu0 0.0
        %975 = vmatpush.msra.mxu0 0.0
        %976 = vmatpush.msra.mxu0 0.0
        %977 = vmatpush.msra.mxu0 0.0
        %978 = vmatpush.msra.mxu0 0.0
        %979 = vmatpush.msra.mxu0 0.0
        %980 = vmatpush.msra.mxu0 %v581
        %981 = vmatpush.msra.mxu0 %v579
        %982 = vmatpush.msra.mxu0 %v577
        %983 = vmatmul.f32.gmra.mxu0 %v939
        %v984 = vpop.f32.mrf.mxu0
        %v985 = vadd.f32 0.0, %v984
        %986 = vmatmul.f32.gmra.mxu0 %v942
        %v987 = vpop.f32.mrf.mxu0
        %v988 = vadd.f32 0.0, %v987
        %989 = vdwg.mxu0
        %v990 = vadd.f32 %v931, %v962
        %v991 = vadd.f32 %v932, %v985
        %v992 = vadd.f32 %v933, %v965
        %v993 = vadd.f32 %v934, %v988
        %994 = vrot.lane.b32.xlu0 %v576, 127
        %v995 = vpop.permute.xlu0 %994
        %996 = vrot.lane.b32.xlu0 %v578, 127
        %v997 = vpop.permute.xlu0 %996
        %998 = vrot.lane.b32.xlu0 %v580, 127
        %v999 = vpop.permute.xlu0 %998
        %1000 = vrot.lane.b32.xlu0 %v577, 127
        %v1001 = vpop.permute.xlu0 %1000
        %1002 = vrot.lane.b32.xlu0 %v579, 127
        %v1003 = vpop.permute.xlu0 %1002
        %1004 = vrot.lane.b32.xlu0 %v581, 127
        %v1005 = vpop.permute.xlu0 %1004
        %vm1006 = vcmp.lt.s32.totalorder %v595, 127
        %v1007 = vsel %vm1006, %v995, %v1001
        %v1008 = vsel %vm1006, %v997, %v1003
        %v1009 = vsel %vm1006, %v999, %v1005
        %v1010 = vsel %vm1006, %v1001, %v995
        %v1011 = vsel %vm1006, %v1003, %v997
        %v1012 = vsel %vm1006, %v1005, %v999
        %s1013 = scalar_lea.vmem %s2, 80
        %v1014 = vld [vmem:[%s1013] sm:$0xff]
        %v1015 = vld [vmem:[%s1013 + $0x8] sm:$0xff]
        %v1017 = vsel %vm605, %v1014, 0
        %v1020 = vsel %vm605, %v1015, 0
        %1022 = vmatpush.msra.mxu0 0.0
        %1023 = vmatpush.msra.mxu0 0.0
        %1024 = vmatpush.msra.mxu0 0.0
        %1025 = vmatpush.msra.mxu0 0.0
        %1026 = vmatpush.msra.mxu0 0.0
        %1027 = vmatpush.msra.mxu0 0.0
        %1028 = vmatpush.msra.mxu0 0.0
        %1029 = vmatpush.msra.mxu0 0.0
        %1030 = vmatpush.msra.mxu0 0.0
        %1031 = vmatpush.msra.mxu0 0.0
        %1032 = vmatpush.msra.mxu0 0.0
        %1033 = vmatpush.msra.mxu0 0.0
        %1034 = vmatpush.msra.mxu0 0.0
        %1035 = vmatpush.msra.mxu0 %v1009
        %1036 = vmatpush.msra.mxu0 %v1008
        %1037 = vmatpush.msra.mxu0 %v1007
        %1038 = vmatmul.f32.gmra.mxu0 %v1017
        %v1039 = vpop.f32.mrf.mxu0
        %v1040 = vadd.f32 0.0, %v1039
        %1041 = vmatmul.f32.gmra.mxu0 %v1020
        %v1042 = vpop.f32.mrf.mxu0
        %v1043 = vadd.f32 0.0, %v1042
        %1044 = vdwg.mxu0
        %1045 = vmatpush.msra.mxu0 0.0
        %1046 = vmatpush.msra.mxu0 0.0
        %1047 = vmatpush.msra.mxu0 0.0
        %1048 = vmatpush.msra.mxu0 0.0
        %1049 = vmatpush.msra.mxu0 0.0
        %1050 = vmatpush.msra.mxu0 0.0
        %1051 = vmatpush.msra.mxu0 0.0
        %1052 = vmatpush.msra.mxu0 0.0
        %1053 = vmatpush.msra.mxu0 0.0
        %1054 = vmatpush.msra.mxu0 0.0
        %1055 = vmatpush.msra.mxu0 0.0
        %1056 = vmatpush.msra.mxu0 0.0
        %1057 = vmatpush.msra.mxu0 0.0
        %1058 = vmatpush.msra.mxu0 %v1012
        %1059 = vmatpush.msra.mxu0 %v1011
        %1060 = vmatpush.msra.mxu0 %v1010
        %1061 = vmatmul.f32.gmra.mxu0 %v1017
        %v1062 = vpop.f32.mrf.mxu0
        %v1063 = vadd.f32 0.0, %v1062
        %1064 = vmatmul.f32.gmra.mxu0 %v1020
        %v1065 = vpop.f32.mrf.mxu0
        %v1066 = vadd.f32 0.0, %v1065
        %1067 = vdwg.mxu0
        %s1068 = scalar_lea.vmem %s1, 5
        %v1069 = vld [vmem:[%s1068] ss:$8 sm:$0x3]
        %v1071 = vperm.slane %v1069, 0
        %v1072 = vperm.slane %v1069, 1
        %v1075 = vmul.f32 %v1040, %v1071
        %v1076 = vmul.f32 %v1063, %v1072
        %v1077 = vmul.f32 %v1043, %v1071
        %v1078 = vmul.f32 %v1066, %v1072
        %v1079 = vadd.f32 %v990, %v1075
        %v1080 = vadd.f32 %v991, %v1076
        %v1081 = vadd.f32 %v992, %v1077
        %v1082 = vadd.f32 %v993, %v1078
        %1083 = vrot.lane.b32.xlu0 %v576, 113
        %v1084 = vpop.permute.xlu0 %1083
        %1085 = vrot.lane.b32.xlu0 %v578, 113
        %v1086 = vpop.permute.xlu0 %1085
        %1087 = vrot.lane.b32.xlu0 %v580, 113
        %v1088 = vpop.permute.xlu0 %1087
        %1089 = vrot.lane.b32.xlu0 %v577, 113
        %v1090 = vpop.permute.xlu0 %1089
        %1091 = vrot.lane.b32.xlu0 %v579, 113
        %v1092 = vpop.permute.xlu0 %1091
        %1093 = vrot.lane.b32.xlu0 %v581, 113
        %v1094 = vpop.permute.xlu0 %1093
        %vm1095 = vcmp.lt.s32.totalorder %v595, 113
        %v1096 = vsel %vm1095, %v1084, %v1090
        %v1097 = vsel %vm1095, %v1086, %v1092
        %v1098 = vsel %vm1095, %v1088, %v1094
        %v1099 = vsel %vm1095, %v1090, %v1084
        %v1100 = vsel %vm1095, %v1092, %v1086
        %v1101 = vsel %vm1095, %v1094, %v1088
        %s1102 = scalar_lea.vmem %s2, 96
        %v1103 = vld [vmem:[%s1102] sm:$0xff]
        %v1104 = vld [vmem:[%s1102 + $0x8] sm:$0xff]
        %v1106 = vsel %vm605, %v1103, 0
        %v1109 = vsel %vm605, %v1104, 0
        %1111 = vmatpush.msra.mxu0 0.0
        %1112 = vmatpush.msra.mxu0 0.0
        %1113 = vmatpush.msra.mxu0 0.0
        %1114 = vmatpush.msra.mxu0 0.0
        %1115 = vmatpush.msra.mxu0 0.0
        %1116 = vmatpush.msra.mxu0 0.0
        %1117 = vmatpush.msra.mxu0 0.0
        %1118 = vmatpush.msra.mxu0 0.0
        %1119 = vmatpush.msra.mxu0 0.0
        %1120 = vmatpush.msra.mxu0 0.0
        %1121 = vmatpush.msra.mxu0 0.0
        %1122 = vmatpush.msra.mxu0 0.0
        %1123 = vmatpush.msra.mxu0 0.0
        %1124 = vmatpush.msra.mxu0 %v1098
        %1125 = vmatpush.msra.mxu0 %v1097
        %1126 = vmatpush.msra.mxu0 %v1096
        %1127 = vmatmul.f32.gmra.mxu0 %v1106
        %v1128 = vpop.f32.mrf.mxu0
        %v1129 = vadd.f32 0.0, %v1128
        %1130 = vmatmul.f32.gmra.mxu0 %v1109
        %v1131 = vpop.f32.mrf.mxu0
        %v1132 = vadd.f32 0.0, %v1131
        %1133 = vdwg.mxu0
        %1134 = vmatpush.msra.mxu0 0.0
        %1135 = vmatpush.msra.mxu0 0.0
        %1136 = vmatpush.msra.mxu0 0.0
        %1137 = vmatpush.msra.mxu0 0.0
        %1138 = vmatpush.msra.mxu0 0.0
        %1139 = vmatpush.msra.mxu0 0.0
        %1140 = vmatpush.msra.mxu0 0.0
        %1141 = vmatpush.msra.mxu0 0.0
        %1142 = vmatpush.msra.mxu0 0.0
        %1143 = vmatpush.msra.mxu0 0.0
        %1144 = vmatpush.msra.mxu0 0.0
        %1145 = vmatpush.msra.mxu0 0.0
        %1146 = vmatpush.msra.mxu0 0.0
        %1147 = vmatpush.msra.mxu0 %v1101
        %1148 = vmatpush.msra.mxu0 %v1100
        %1149 = vmatpush.msra.mxu0 %v1099
        %1150 = vmatmul.f32.gmra.mxu0 %v1106
        %v1151 = vpop.f32.mrf.mxu0
        %v1152 = vadd.f32 0.0, %v1151
        %1153 = vmatmul.f32.gmra.mxu0 %v1109
        %v1154 = vpop.f32.mrf.mxu0
        %v1155 = vadd.f32 0.0, %v1154
        %1156 = vdwg.mxu0
        %s1157 = scalar_lea.vmem %s1, 6
        %v1158 = vld [vmem:[%s1157] ss:$8 sm:$0x3]
        %v1160 = vperm.slane %v1158, 0
        %v1161 = vperm.slane %v1158, 1
        %v1164 = vmul.f32 %v1129, %v1160
        %v1165 = vmul.f32 %v1152, %v1161
        %v1166 = vmul.f32 %v1132, %v1160
        %v1167 = vmul.f32 %v1155, %v1161
        %v1168 = vadd.f32 %v1079, %v1164
        %v1169 = vadd.f32 %v1080, %v1165
        %v1170 = vadd.f32 %v1081, %v1166
        %v1171 = vadd.f32 %v1082, %v1167
        %1172 = vrot.lane.b32.xlu0 %v576, 112
        %v1173 = vpop.permute.xlu0 %1172
        %1174 = vrot.lane.b32.xlu0 %v578, 112
        %v1175 = vpop.permute.xlu0 %1174
        %1176 = vrot.lane.b32.xlu0 %v580, 112
        %v1177 = vpop.permute.xlu0 %1176
        %1178 = vrot.lane.b32.xlu0 %v577, 112
        %v1179 = vpop.permute.xlu0 %1178
        %1180 = vrot.lane.b32.xlu0 %v579, 112
        %v1181 = vpop.permute.xlu0 %1180
        %1182 = vrot.lane.b32.xlu0 %v581, 112
        %v1183 = vpop.permute.xlu0 %1182
        %vm1184 = vcmp.lt.s32.totalorder %v595, 112
        %v1185 = vsel %vm1184, %v1173, %v1179
        %v1186 = vsel %vm1184, %v1175, %v1181
        %v1187 = vsel %vm1184, %v1177, %v1183
        %v1188 = vsel %vm1184, %v1179, %v1173
        %v1189 = vsel %vm1184, %v1181, %v1175
        %v1190 = vsel %vm1184, %v1183, %v1177
        %s1191 = scalar_lea.vmem %s2, 112
        %v1192 = vld [vmem:[%s1191] sm:$0xff]
        %v1193 = vld [vmem:[%s1191 + $0x8] sm:$0xff]
        %v1195 = vsel %vm605, %v1192, 0
        %v1198 = vsel %vm605, %v1193, 0
        %1200 = vmatpush.msra.mxu0 0.0
        %1201 = vmatpush.msra.mxu0 0.0
        %1202 = vmatpush.msra.mxu0 0.0
        %1203 = vmatpush.msra.mxu0 0.0
        %1204 = vmatpush.msra.mxu0 0.0
        %1205 = vmatpush.msra.mxu0 0.0
        %1206 = vmatpush.msra.mxu0 0.0
        %1207 = vmatpush.msra.mxu0 0.0
        %1208 = vmatpush.msra.mxu0 0.0
        %1209 = vmatpush.msra.mxu0 0.0
        %1210 = vmatpush.msra.mxu0 0.0
        %1211 = vmatpush.msra.mxu0 0.0
        %1212 = vmatpush.msra.mxu0 0.0
        %1213 = vmatpush.msra.mxu0 %v1187
        %1214 = vmatpush.msra.mxu0 %v1186
        %1215 = vmatpush.msra.mxu0 %v1185
        %1216 = vmatmul.f32.gmra.mxu0 %v1195
        %v1217 = vpop.f32.mrf.mxu0
        %v1218 = vadd.f32 0.0, %v1217
        %1219 = vmatmul.f32.gmra.mxu0 %v1198
        %v1220 = vpop.f32.mrf.mxu0
        %v1221 = vadd.f32 0.0, %v1220
        %1222 = vdwg.mxu0
        %1223 = vmatpush.msra.mxu0 0.0
        %1224 = vmatpush.msra.mxu0 0.0
        %1225 = vmatpush.msra.mxu0 0.0
        %1226 = vmatpush.msra.mxu0 0.0
        %1227 = vmatpush.msra.mxu0 0.0
        %1228 = vmatpush.msra.mxu0 0.0
        %1229 = vmatpush.msra.mxu0 0.0
        %1230 = vmatpush.msra.mxu0 0.0
        %1231 = vmatpush.msra.mxu0 0.0
        %1232 = vmatpush.msra.mxu0 0.0
        %1233 = vmatpush.msra.mxu0 0.0
        %1234 = vmatpush.msra.mxu0 0.0
        %1235 = vmatpush.msra.mxu0 0.0
        %1236 = vmatpush.msra.mxu0 %v1190
        %1237 = vmatpush.msra.mxu0 %v1189
        %1238 = vmatpush.msra.mxu0 %v1188
        %1239 = vmatmul.f32.gmra.mxu0 %v1195
        %v1240 = vpop.f32.mrf.mxu0
        %v1241 = vadd.f32 0.0, %v1240
        %1242 = vmatmul.f32.gmra.mxu0 %v1198
        %v1243 = vpop.f32.mrf.mxu0
        %v1244 = vadd.f32 0.0, %v1243
        %1245 = vdwg.mxu0
        %s1246 = scalar_lea.vmem %s1, 7
        %v1247 = vld [vmem:[%s1246] ss:$8 sm:$0x3]
        %v1249 = vperm.slane %v1247, 0
        %v1250 = vperm.slane %v1247, 1
        %v1253 = vmul.f32 %v1218, %v1249
        %v1254 = vmul.f32 %v1241, %v1250
        %v1255 = vmul.f32 %v1221, %v1249
        %v1256 = vmul.f32 %v1244, %v1250
        %v1257 = vadd.f32 %v1168, %v1253
        %v1258 = vadd.f32 %v1169, %v1254
        %v1259 = vadd.f32 %v1170, %v1255
        %v1260 = vadd.f32 %v1171, %v1256
        %1261 = vrot.lane.b32.xlu0 %v576, 111
        %v1262 = vpop.permute.xlu0 %1261
        %1263 = vrot.lane.b32.xlu0 %v578, 111
        %v1264 = vpop.permute.xlu0 %1263
        %1265 = vrot.lane.b32.xlu0 %v580, 111
        %v1266 = vpop.permute.xlu0 %1265
        %1267 = vrot.lane.b32.xlu0 %v577, 111
        %v1268 = vpop.permute.xlu0 %1267
        %1269 = vrot.lane.b32.xlu0 %v579, 111
        %v1270 = vpop.permute.xlu0 %1269
        %1271 = vrot.lane.b32.xlu0 %v581, 111
        %v1272 = vpop.permute.xlu0 %1271
        %vm1273 = vcmp.lt.s32.totalorder %v595, 111
        %v1274 = vsel %vm1273, %v1262, %v1268
        %v1275 = vsel %vm1273, %v1264, %v1270
        %v1276 = vsel %vm1273, %v1266, %v1272
        %v1277 = vsel %vm1273, %v1268, %v1262
        %v1278 = vsel %vm1273, %v1270, %v1264
        %v1279 = vsel %vm1273, %v1272, %v1266
        %s1280 = scalar_lea.vmem %s2, 128
        %v1281 = vld [vmem:[%s1280] sm:$0xff]
        %v1282 = vld [vmem:[%s1280 + $0x8] sm:$0xff]
        %v1284 = vsel %vm605, %v1281, 0
        %v1287 = vsel %vm605, %v1282, 0
        %1289 = vmatpush.msra.mxu0 0.0
        %1290 = vmatpush.msra.mxu0 0.0
        %1291 = vmatpush.msra.mxu0 0.0
        %1292 = vmatpush.msra.mxu0 0.0
        %1293 = vmatpush.msra.mxu0 0.0
        %1294 = vmatpush.msra.mxu0 0.0
        %1295 = vmatpush.msra.mxu0 0.0
        %1296 = vmatpush.msra.mxu0 0.0
        %1297 = vmatpush.msra.mxu0 0.0
        %1298 = vmatpush.msra.mxu0 0.0
        %1299 = vmatpush.msra.mxu0 0.0
        %1300 = vmatpush.msra.mxu0 0.0
        %1301 = vmatpush.msra.mxu0 0.0
        %1302 = vmatpush.msra.mxu0 %v1276
        %1303 = vmatpush.msra.mxu0 %v1275
        %1304 = vmatpush.msra.mxu0 %v1274
        %1305 = vmatmul.f32.gmra.mxu0 %v1284
        %v1306 = vpop.f32.mrf.mxu0
        %v1307 = vadd.f32 0.0, %v1306
        %1308 = vmatmul.f32.gmra.mxu0 %v1287
        %v1309 = vpop.f32.mrf.mxu0
        %v1310 = vadd.f32 0.0, %v1309
        %1311 = vdwg.mxu0
        %1312 = vmatpush.msra.mxu0 0.0
        %1313 = vmatpush.msra.mxu0 0.0
        %1314 = vmatpush.msra.mxu0 0.0
        %1315 = vmatpush.msra.mxu0 0.0
        %1316 = vmatpush.msra.mxu0 0.0
        %1317 = vmatpush.msra.mxu0 0.0
        %1318 = vmatpush.msra.mxu0 0.0
        %1319 = vmatpush.msra.mxu0 0.0
        %1320 = vmatpush.msra.mxu0 0.0
        %1321 = vmatpush.msra.mxu0 0.0
        %1322 = vmatpush.msra.mxu0 0.0
        %1323 = vmatpush.msra.mxu0 0.0
        %1324 = vmatpush.msra.mxu0 0.0
        %1325 = vmatpush.msra.mxu0 %v1279
        %1326 = vmatpush.msra.mxu0 %v1278
        %1327 = vmatpush.msra.mxu0 %v1277
        %1328 = vmatmul.f32.gmra.mxu0 %v1284
        %v1329 = vpop.f32.mrf.mxu0
        %v1330 = vadd.f32 0.0, %v1329
        %1331 = vmatmul.f32.gmra.mxu0 %v1287
        %v1332 = vpop.f32.mrf.mxu0
        %v1333 = vadd.f32 0.0, %v1332
        %1334 = vdwg.mxu0
        %s1335 = scalar_lea.vmem %s1, 16
        %v1336 = vld [vmem:[%s1335] ss:$8 sm:$0x3]
        %v1338 = vperm.slane %v1336, 0
        %v1339 = vperm.slane %v1336, 1
        %v1342 = vmul.f32 %v1307, %v1338
        %v1343 = vmul.f32 %v1330, %v1339
        %v1344 = vmul.f32 %v1310, %v1338
        %v1345 = vmul.f32 %v1333, %v1339
        %v1346 = vadd.f32 %v1257, %v1342
        %v1347 = vadd.f32 %v1258, %v1343
        %v1348 = vadd.f32 %v1259, %v1344
        %v1349 = vadd.f32 %v1260, %v1345
        %v1350 = vld [vmem:[%s3] sm:$0xff]
        %v1351 = vld [vmem:[%s3 + $0x8] sm:$0xff]
        %1353 = vset.pattern.permute.xlu0 0
        %1354 = vperm.xlu0 %1353, %v1350
        %v1355 = vpop.permute.xlu0 %1354
        %1358 = vset.pattern.permute.xlu0 0
        %1359 = vperm.xlu0 %1358, %v1351
        %v1360 = vpop.permute.xlu0 %1359
        %v1362 = vadd.f32 %v1346, %v1355
        %v1363 = vadd.f32 %v1347, %v1355
        %v1364 = vadd.f32 %v1348, %v1360
        %v1365 = vadd.f32 %v1349, %v1360
        %v1366 = vmul.f32 %v1362, 0.1
        %v1367 = vmul.f32 %v1363, 0.1
        %v1368 = vmul.f32 %v1364, 0.1
        %v1369 = vmul.f32 %v1365, 0.1
        %v1370 = vmax.f32 %v1362, %v1366
        %v1371 = vmax.f32 %v1363, %v1367
        %v1372 = vmax.f32 %v1364, %v1368
        %v1373 = vmax.f32 %v1365, %v1369
        %v1374 = vadd.f32 %v576, %v1370
        %v1375 = vadd.f32 %v577, %v1371
        %v1376 = vadd.f32 %v578, %v1372
        %v1377 = vadd.f32 %v579, %v1373
        %v1378 = vadd.f32 %v1374, %v1376
        %v1379 = vrot.slane %v1378, 4
        %v1380 = vadd.f32 %v1378, %v1379
        %v1381 = vrot.slane %v1380, 2
        %v1382 = vadd.f32 %v1380, %v1381
        %v1383 = vrot.slane %v1382, 1
        %v1384 = vadd.f32 %v1382, %v1383
        %v1385 = vadd.f32 %v1375, %v1377
        %v1386 = vrot.slane %v1385, 4
        %v1387 = vadd.f32 %v1385, %v1386
        %v1388 = vrot.slane %v1387, 2
        %v1389 = vadd.f32 %v1387, %v1388
        %v1390 = vrot.slane %v1389, 1
        %v1391 = vadd.f32 %v1389, %v1390
        %v1392 = vrcp.pop 16.0
        %v1393 = vmul.f32 16.0, %v1392
        %v1394 = vsub.f32 1.0, %v1393
        %v1395 = vmul.f32 %v1392, %v1394
        %v1396 = vadd.f32 %v1392, %v1395
        %vm1397 = vweird.f32 %v1392
        %v1398 = vsel %vm1397, %v1392, %v1396
        %v1399 = vmul.f32 %v1384, %v1398
        %v1400 = vmul.f32 %v1391, %v1398
        %v1401 = vsub.f32 %v1374, %v1399
        %v1402 = vsub.f32 %v1375, %v1400
        %v1403 = vsub.f32 %v1376, %v1399
        %v1404 = vsub.f32 %v1377, %v1400
        %v1405 = vmul.f32 %v1401, %v1401
        %v1406 = vmul.f32 %v1402, %v1402
        %v1407 = vmul.f32 %v1403, %v1403
        %v1408 = vmul.f32 %v1404, %v1404
        %v1409 = vadd.f32 %v1405, %v1407
        %v1410 = vrot.slane %v1409, 4
        %v1411 = vadd.f32 %v1409, %v1410
        %v1412 = vrot.slane %v1411, 2
        %v1413 = vadd.f32 %v1411, %v1412
        %v1414 = vrot.slane %v1413, 1
        %v1415 = vadd.f32 %v1413, %v1414
        %v1416 = vadd.f32 %v1406, %v1408
        %v1417 = vrot.slane %v1416, 4
        %v1418 = vadd.f32 %v1416, %v1417
        %v1419 = vrot.slane %v1418, 2
        %v1420 = vadd.f32 %v1418, %v1419
        %v1421 = vrot.slane %v1420, 1
        %v1422 = vadd.f32 %v1420, %v1421
        %v1423 = vmul.f32 %v1415, %v1398
        %v1424 = vmul.f32 %v1422, %v1398
        %v1425 = vadd.f32 %v1423, 1e-05
        %v1426 = vadd.f32 %v1424, 1e-05
        %v1427 = vrsqrt.pop %v1425
        %v1428 = vmul.f32 %v1427, %v1425
        %v1429 = vmul.f32 %v1428, %v1427
        %v1430 = vmul.f32 0.5, %v1429
        %v1431 = vsub.f32 1.5, %v1430
        %v1432 = vmul.f32 %v1427, %v1431
        %vm1433 = vweird.f32 %v1425
        %vm1434 = vweird.f32 %v1427
        %vm1435 = vmor %vm1433, %vm1434
        %v1436 = vsel %vm1435, %v1427, %v1432
        %v1437 = vrsqrt.pop %v1426
        %v1438 = vmul.f32 %v1437, %v1426
        %v1439 = vmul.f32 %v1438, %v1437
        %v1440 = vmul.f32 0.5, %v1439
        %v1441 = vsub.f32 1.5, %v1440
        %v1442 = vmul.f32 %v1437, %v1441
        %vm1443 = vweird.f32 %v1426
        %vm1444 = vweird.f32 %v1437
        %vm1445 = vmor %vm1443, %vm1444
        %v1446 = vsel %vm1445, %v1437, %v1442
        %v1447 = vmul.f32 %v1401, %v1436
        %v1448 = vmul.f32 %v1402, %v1446
        %v1449 = vmul.f32 %v1403, %v1436
        %v1450 = vmul.f32 %v1404, %v1446
        %v1451 = vld [vmem:[%s4] sm:$0xff]
        %v1452 = vld [vmem:[%s4 + $0x8] sm:$0xff]
        %1454 = vset.pattern.permute.xlu0 0
        %1455 = vperm.xlu0 %1454, %v1451
        %v1456 = vpop.permute.xlu0 %1455
        %1459 = vset.pattern.permute.xlu0 0
        %1460 = vperm.xlu0 %1459, %v1452
        %v1461 = vpop.permute.xlu0 %1460
        %v1463 = vmul.f32 %v1447, %v1456
        %v1464 = vmul.f32 %v1448, %v1456
        %v1465 = vmul.f32 %v1449, %v1461
        %v1466 = vmul.f32 %v1450, %v1461
        %v1467 = vld [vmem:[%s5] sm:$0xff]
        %v1468 = vld [vmem:[%s5 + $0x8] sm:$0xff]
        %1470 = vset.pattern.permute.xlu0 0
        %1471 = vperm.xlu0 %1470, %v1467
        %v1472 = vpop.permute.xlu0 %1471
        %1475 = vset.pattern.permute.xlu0 0
        %1476 = vperm.xlu0 %1475, %v1468
        %v1477 = vpop.permute.xlu0 %1476
        %v1479 = vadd.f32 %v1463, %v1472
        %v1480 = vadd.f32 %v1464, %v1472
        %v1481 = vadd.f32 %v1465, %v1477
        %v1482 = vadd.f32 %v1466, %v1477
        %v1483 = vld [vmem:[%s6] sm:$0xff]
        %v1484 = vld [vmem:[%s6 + $0x8] sm:$0xff]
        %v1485 = vld [vmem:[%s6 + $0x10] sm:$0xff]
        %v1486 = vld [vmem:[%s6 + $0x18] sm:$0xff]
        %v1487 = vld [vmem:[%s6 + $0x20] sm:$0xff]
        %v1488 = vld [vmem:[%s6 + $0x28] sm:$0xff]
        %v1489 = vld [vmem:[%s6 + $0x30] sm:$0xff]
        %v1490 = vld [vmem:[%s6 + $0x38] sm:$0xff]
        %v1491 = vld [vmem:[%s6 + $0x40] sm:$0xff]
        %v1492 = vld [vmem:[%s6 + $0x48] sm:$0xff]
        %v1493 = vld [vmem:[%s6 + $0x50] sm:$0xff]
        %v1494 = vld [vmem:[%s6 + $0x58] sm:$0xff]
        %v1495 = vld [vmem:[%s7] sm:$0xff]
        %v1496 = vld [vmem:[%s7 + $0x8] sm:$0xff]
        %v1497 = vld [vmem:[%s7 + $0x10] sm:$0xff]
        %v1498 = vld [vmem:[%s7 + $0x18] sm:$0xff]
        %v1499 = vld [vmem:[%s7 + $0x20] sm:$0xff]
        %v1500 = vld [vmem:[%s7 + $0x28] sm:$0xff]
        %v1501 = vld [vmem:[%s7 + $0x30] sm:$0xff]
        %v1502 = vld [vmem:[%s7 + $0x38] sm:$0xff]
        %v1503 = vld [vmem:[%s7 + $0x40] sm:$0xff]
        %v1504 = vld [vmem:[%s7 + $0x48] sm:$0xff]
        %v1505 = vld [vmem:[%s7 + $0x50] sm:$0xff]
        %v1506 = vld [vmem:[%s7 + $0x58] sm:$0xff]
        %1508 = vset.pattern.permute.xlu0 0
        %1509 = vperm.xlu0 %1508, %v1495
        %v1510 = vpop.permute.xlu0 %1509
        %1513 = vset.pattern.permute.xlu0 0
        %1514 = vperm.xlu0 %1513, %v1496
        %v1515 = vpop.permute.xlu0 %1514
        %1518 = vset.pattern.permute.xlu0 0
        %1519 = vperm.xlu0 %1518, %v1497
        %v1520 = vpop.permute.xlu0 %1519
        %1523 = vset.pattern.permute.xlu0 0
        %1524 = vperm.xlu0 %1523, %v1498
        %v1525 = vpop.permute.xlu0 %1524
        %1528 = vset.pattern.permute.xlu0 0
        %1529 = vperm.xlu0 %1528, %v1499
        %v1530 = vpop.permute.xlu0 %1529
        %1533 = vset.pattern.permute.xlu0 0
        %1534 = vperm.xlu0 %1533, %v1500
        %v1535 = vpop.permute.xlu0 %1534
        %1538 = vset.pattern.permute.xlu0 0
        %1539 = vperm.xlu0 %1538, %v1501
        %v1540 = vpop.permute.xlu0 %1539
        %1543 = vset.pattern.permute.xlu0 0
        %1544 = vperm.xlu0 %1543, %v1502
        %v1545 = vpop.permute.xlu0 %1544
        %1548 = vset.pattern.permute.xlu0 0
        %1549 = vperm.xlu0 %1548, %v1503
        %v1550 = vpop.permute.xlu0 %1549
        %1553 = vset.pattern.permute.xlu0 0
        %1554 = vperm.xlu0 %1553, %v1504
        %v1555 = vpop.permute.xlu0 %1554
        %1558 = vset.pattern.permute.xlu0 0
        %1559 = vperm.xlu0 %1558, %v1505
        %v1560 = vpop.permute.xlu0 %1559
        %1563 = vset.pattern.permute.xlu0 0
        %1564 = vperm.xlu0 %1563, %v1506
        %v1565 = vpop.permute.xlu0 %1564
        %vm1567 = vcmask 130048
        %v1569 = vsel %vm1567, %v1483, 0
        %v1572 = vsel %vm1567, %v1484, 0
        %v1575 = vsel %vm1567, %v1485, 0
        %v1578 = vsel %vm1567, %v1486, 0
        %v1581 = vsel %vm1567, %v1487, 0
        %v1584 = vsel %vm1567, %v1488, 0
        %v1587 = vsel %vm1567, %v1489, 0
        %v1590 = vsel %vm1567, %v1490, 0
        %v1593 = vsel %vm1567, %v1491, 0
        %v1596 = vsel %vm1567, %v1492, 0
        %v1599 = vsel %vm1567, %v1493, 0
        %v1602 = vsel %vm1567, %v1494, 0
        %1604 = vmatpush.msra.mxu0 0.0
        %1605 = vmatpush.msra.mxu0 0.0
        %1606 = vmatpush.msra.mxu0 0.0
        %1607 = vmatpush.msra.mxu0 0.0
        %1608 = vmatpush.msra.mxu0 0.0
        %1609 = vmatpush.msra.mxu0 0.0
        %1610 = vmatpush.msra.mxu0 0.0
        %1611 = vmatpush.msra.mxu0 0.0
        %1612 = vmatpush.msra.mxu0 0.0
        %1613 = vmatpush.msra.mxu0 0.0
        %1614 = vmatpush.msra.mxu0 0.0
        %1615 = vmatpush.msra.mxu0 0.0
        %1616 = vmatpush.msra.mxu0 0.0
        %1617 = vmatpush.msra.mxu0 0.0
        %1618 = vmatpush.msra.mxu0 %v1481
        %1619 = vmatpush.msra.mxu0 %v1479
        %1620 = vmatmul.f32.gmra.mxu0 %v1569
        %v1621 = vpop.f32.mrf.mxu0
        %v1622 = vadd.f32 %v1510, %v1621
        %1623 = vmatmul.f32.gmra.mxu0 %v1572
        %v1624 = vpop.f32.mrf.mxu0
        %v1625 = vadd.f32 %v1515, %v1624
        %1626 = vmatmul.f32.gmra.mxu0 %v1575
        %v1627 = vpop.f32.mrf.mxu0
        %v1628 = vadd.f32 %v1520, %v1627
        %1629 = vmatmul.f32.gmra.mxu0 %v1578
        %v1630 = vpop.f32.mrf.mxu0
        %v1631 = vadd.f32 %v1525, %v1630
        %1632 = vmatmul.f32.gmra.mxu0 %v1581
        %v1633 = vpop.f32.mrf.mxu0
        %v1634 = vadd.f32 %v1530, %v1633
        %1635 = vmatmul.f32.gmra.mxu0 %v1584
        %v1636 = vpop.f32.mrf.mxu0
        %v1637 = vadd.f32 %v1535, %v1636
        %1638 = vmatmul.f32.gmra.mxu0 %v1587
        %v1639 = vpop.f32.mrf.mxu0
        %v1640 = vadd.f32 %v1540, %v1639
        %1641 = vmatmul.f32.gmra.mxu0 %v1590
        %v1642 = vpop.f32.mrf.mxu0
        %v1643 = vadd.f32 %v1545, %v1642
        %1644 = vmatmul.f32.gmra.mxu0 %v1593
        %v1645 = vpop.f32.mrf.mxu0
        %v1646 = vadd.f32 %v1550, %v1645
        %1647 = vmatmul.f32.gmra.mxu0 %v1596
        %v1648 = vpop.f32.mrf.mxu0
        %v1649 = vadd.f32 %v1555, %v1648
        %1650 = vmatmul.f32.gmra.mxu0 %v1599
        %v1651 = vpop.f32.mrf.mxu0
        %v1652 = vadd.f32 %v1560, %v1651
        %1653 = vmatmul.f32.gmra.mxu0 %v1602
        %v1654 = vpop.f32.mrf.mxu0
        %v1655 = vadd.f32 %v1565, %v1654
        %1656 = vdwg.mxu0
        %1657 = vmatpush.msra.mxu0 0.0
        %1658 = vmatpush.msra.mxu0 0.0
        %1659 = vmatpush.msra.mxu0 0.0
        %1660 = vmatpush.msra.mxu0 0.0
        %1661 = vmatpush.msra.mxu0 0.0
        %1662 = vmatpush.msra.mxu0 0.0
        %1663 = vmatpush.msra.mxu0 0.0
        %1664 = vmatpush.msra.mxu0 0.0
        %1665 = vmatpush.msra.mxu0 0.0
        %1666 = vmatpush.msra.mxu0 0.0
        %1667 = vmatpush.msra.mxu0 0.0
        %1668 = vmatpush.msra.mxu0 0.0
        %1669 = vmatpush.msra.mxu0 0.0
        %1670 = vmatpush.msra.mxu0 0.0
        %1671 = vmatpush.msra.mxu0 %v1482
        %1672 = vmatpush.msra.mxu0 %v1480
        %1673 = vmatmul.f32.gmra.mxu0 %v1569
        %v1674 = vpop.f32.mrf.mxu0
        %v1675 = vadd.f32 %v1510, %v1674
        %1676 = vmatmul.f32.gmra.mxu0 %v1572
        %v1677 = vpop.f32.mrf.mxu0
        %v1678 = vadd.f32 %v1515, %v1677
        %1679 = vmatmul.f32.gmra.mxu0 %v1575
        %v1680 = vpop.f32.mrf.mxu0
        %v1681 = vadd.f32 %v1520, %v1680
        %1682 = vmatmul.f32.gmra.mxu0 %v1578
        %v1683 = vpop.f32.mrf.mxu0
        %v1684 = vadd.f32 %v1525, %v1683
        %1685 = vmatmul.f32.gmra.mxu0 %v1581
        %v1686 = vpop.f32.mrf.mxu0
        %v1687 = vadd.f32 %v1530, %v1686
        %1688 = vmatmul.f32.gmra.mxu0 %v1584
        %v1689 = vpop.f32.mrf.mxu0
        %v1690 = vadd.f32 %v1535, %v1689
        %1691 = vmatmul.f32.gmra.mxu0 %v1587
        %v1692 = vpop.f32.mrf.mxu0
        %v1693 = vadd.f32 %v1540, %v1692
        %1694 = vmatmul.f32.gmra.mxu0 %v1590
        %v1695 = vpop.f32.mrf.mxu0
        %v1696 = vadd.f32 %v1545, %v1695
        %1697 = vmatmul.f32.gmra.mxu0 %v1593
        %v1698 = vpop.f32.mrf.mxu0
        %v1699 = vadd.f32 %v1550, %v1698
        %1700 = vmatmul.f32.gmra.mxu0 %v1596
        %v1701 = vpop.f32.mrf.mxu0
        %v1702 = vadd.f32 %v1555, %v1701
        %1703 = vmatmul.f32.gmra.mxu0 %v1599
        %v1704 = vpop.f32.mrf.mxu0
        %v1705 = vadd.f32 %v1560, %v1704
        %1706 = vmatmul.f32.gmra.mxu0 %v1602
        %v1707 = vpop.f32.mrf.mxu0
        %v1708 = vadd.f32 %v1565, %v1707
        %1709 = vdwg.mxu0
        %v1710 = vpack.c.bf16 %v1675, %v1622
        %v1711 = vpack.c.bf16 %v1678, %v1625
        %v1712 = vpack.c.bf16 %v1681, %v1628
        %v1713 = vpack.c.bf16 %v1684, %v1631
        %v1714 = vpack.c.bf16 %v1687, %v1634
        %v1715 = vpack.c.bf16 %v1690, %v1637
        %v1716 = vpack.c.bf16 %v1693, %v1640
        %v1717 = vpack.c.bf16 %v1696, %v1643
        %v1718 = vpack.c.bf16 %v1699, %v1646
        %v1719 = vpack.c.bf16 %v1702, %v1649
        %v1720 = vpack.c.bf16 %v1705, %v1652
        %v1721 = vpack.c.bf16 %v1708, %v1655
        %v1722 = vld [vmem:[%s8] sm:$0xff]
        %v1723 = vld [vmem:[%s8 + $0x8] sm:$0xff]
        %v1724 = vld [vmem:[%s8 + $0x10] sm:$0xff]
        %v1725 = vld [vmem:[%s8 + $0x18] sm:$0xff]
        %v1726 = vld [vmem:[%s8 + $0x20] sm:$0xff]
        %v1727 = vld [vmem:[%s8 + $0x28] sm:$0xff]
        %v1728 = vld [vmem:[%s8 + $0x30] sm:$0xff]
        %v1729 = vld [vmem:[%s8 + $0x38] sm:$0xff]
        %v1730 = vld [vmem:[%s8 + $0x40] sm:$0xff]
        %v1731 = vld [vmem:[%s8 + $0x48] sm:$0xff]
        %v1732 = vld [vmem:[%s8 + $0x50] sm:$0xff]
        %v1733 = vld [vmem:[%s8 + $0x58] sm:$0xff]
        %v1734 = vld [vmem:[%s8 + $0x60] sm:$0xff]
        %v1735 = vld [vmem:[%s8 + $0x68] sm:$0xff]
        %v1736 = vld [vmem:[%s8 + $0x70] sm:$0xff]
        %v1737 = vld [vmem:[%s8 + $0x78] sm:$0xff]
        %v1738 = vld [vmem:[%s8 + $0x80] sm:$0xff]
        %v1739 = vld [vmem:[%s8 + $0x88] sm:$0xff]
        %v1740 = vld [vmem:[%s8 + $0x90] sm:$0xff]
        %v1741 = vld [vmem:[%s8 + $0x98] sm:$0xff]
        %v1742 = vld [vmem:[%s8 + $0xa0] sm:$0xff]
        %v1743 = vld [vmem:[%s8 + $0xa8] sm:$0xff]
        %v1744 = vld [vmem:[%s8 + $0xb0] sm:$0xff]
        %v1745 = vld [vmem:[%s8 + $0xb8] sm:$0xff]
        %v1746 = vld [vmem:[%s8 + $0xc0] sm:$0xff]
        %v1747 = vld [vmem:[%s8 + $0xc8] sm:$0xff]
        %v1748 = vld [vmem:[%s8 + $0xd0] sm:$0xff]
        %v1749 = vld [vmem:[%s8 + $0xd8] sm:$0xff]
        %v1750 = vld [vmem:[%s8 + $0xe0] sm:$0xff]
        %v1751 = vld [vmem:[%s8 + $0xe8] sm:$0xff]
        %v1752 = vld [vmem:[%s8 + $0xf0] sm:$0xff]
        %v1753 = vld [vmem:[%s8 + $0xf8] sm:$0xff]
        %v1754 = vld [vmem:[%s8 + $0x100] sm:$0xff]
        %v1755 = vld [vmem:[%s8 + $0x108] sm:$0xff]
        %v1756 = vld [vmem:[%s8 + $0x110] sm:$0xff]
        %v1757 = vld [vmem:[%s8 + $0x118] sm:$0xff]
        %v1758 = vld [vmem:[%s8 + $0x120] sm:$0xff]
        %v1759 = vld [vmem:[%s8 + $0x128] sm:$0xff]
        %v1760 = vld [vmem:[%s8 + $0x130] sm:$0xff]
        %v1761 = vld [vmem:[%s8 + $0x138] sm:$0xff]
        %v1762 = vld [vmem:[%s8 + $0x140] sm:$0xff]
        %v1763 = vld [vmem:[%s8 + $0x148] sm:$0xff]
        %v1764 = vld [vmem:[%s8 + $0x150] sm:$0xff]
        %v1765 = vld [vmem:[%s8 + $0x158] sm:$0xff]
        %v1766 = vld [vmem:[%s8 + $0x160] sm:$0xff]
        %v1767 = vld [vmem:[%s8 + $0x168] sm:$0xff]
        %v1768 = vld [vmem:[%s8 + $0x170] sm:$0xff]
        %v1769 = vld [vmem:[%s8 + $0x178] sm:$0xff]
        %v1770 = vld [vmem:[%s8 + $0x180] sm:$0xff]
        %v1771 = vld [vmem:[%s8 + $0x188] sm:$0xff]
        %v1772 = vld [vmem:[%s8 + $0x190] sm:$0xff]
        %v1773 = vld [vmem:[%s8 + $0x198] sm:$0xff]
        %v1774 = vld [vmem:[%s8 + $0x1a0] sm:$0xff]
        %v1775 = vld [vmem:[%s8 + $0x1a8] sm:$0xff]
        %v1776 = vld [vmem:[%s8 + $0x1b0] sm:$0xff]
        %v1777 = vld [vmem:[%s8 + $0x1b8] sm:$0xff]
        %v1778 = vld [vmem:[%s8 + $0x1c0] sm:$0xff]
        %v1779 = vld [vmem:[%s8 + $0x1c8] sm:$0xff]
        %v1780 = vld [vmem:[%s8 + $0x1d0] sm:$0xff]
        %v1781 = vld [vmem:[%s8 + $0x1d8] sm:$0xff]
        %v1782 = vld [vmem:[%s8 + $0x1e0] sm:$0xff]
        %v1783 = vld [vmem:[%s8 + $0x1e8] sm:$0xff]
        %v1784 = vld [vmem:[%s8 + $0x1f0] sm:$0xff]
        %v1785 = vld [vmem:[%s8 + $0x1f8] sm:$0xff]
        %v1786 = vld [vmem:[%s8 + $0x200] sm:$0xff]
        %v1787 = vld [vmem:[%s8 + $0x208] sm:$0xff]
        %v1788 = vld [vmem:[%s8 + $0x210] sm:$0xff]
        %v1789 = vld [vmem:[%s8 + $0x218] sm:$0xff]
        %v1790 = vld [vmem:[%s8 + $0x220] sm:$0xff]
        %v1791 = vld [vmem:[%s8 + $0x228] sm:$0xff]
        %v1792 = vld [vmem:[%s8 + $0x230] sm:$0xff]
        %v1793 = vld [vmem:[%s8 + $0x238] sm:$0xff]
        %v1794 = vld [vmem:[%s8 + $0x240] sm:$0xff]
        %v1795 = vld [vmem:[%s8 + $0x248] sm:$0xff]
        %v1796 = vld [vmem:[%s8 + $0x250] sm:$0xff]
        %v1797 = vld [vmem:[%s8 + $0x258] sm:$0xff]
        %v1798 = vld [vmem:[%s8 + $0x260] sm:$0xff]
        %v1799 = vld [vmem:[%s8 + $0x268] sm:$0xff]
        %v1800 = vld [vmem:[%s8 + $0x270] sm:$0xff]
        %v1801 = vld [vmem:[%s8 + $0x278] sm:$0xff]
        %v1802 = vld [vmem:[%s8 + $0x280] sm:$0xff]
        %v1803 = vld [vmem:[%s8 + $0x288] sm:$0xff]
        %v1804 = vld [vmem:[%s8 + $0x290] sm:$0xff]
        %v1805 = vld [vmem:[%s8 + $0x298] sm:$0xff]
        %v1806 = vld [vmem:[%s8 + $0x2a0] sm:$0xff]
        %v1807 = vld [vmem:[%s8 + $0x2a8] sm:$0xff]
        %v1808 = vld [vmem:[%s8 + $0x2b0] sm:$0xff]
        %v1809 = vld [vmem:[%s8 + $0x2b8] sm:$0xff]
        %v1810 = vld [vmem:[%s8 + $0x2c0] sm:$0xff]
        %v1811 = vld [vmem:[%s8 + $0x2c8] sm:$0xff]
        %v1812 = vld [vmem:[%s8 + $0x2d0] sm:$0xff]
        %v1813 = vld [vmem:[%s8 + $0x2d8] sm:$0xff]
        %v1814 = vld [vmem:[%s8 + $0x2e0] sm:$0xff]
        %v1815 = vld [vmem:[%s8 + $0x2e8] sm:$0xff]
        %v1816 = vld [vmem:[%s8 + $0x2f0] sm:$0xff]
        %v1817 = vld [vmem:[%s8 + $0x2f8] sm:$0xff]
        %v1818 = vld [vmem:[%s8 + $0x300] sm:$0xff]
        %v1819 = vld [vmem:[%s8 + $0x308] sm:$0xff]
        %v1820 = vld [vmem:[%s8 + $0x310] sm:$0xff]
        %v1821 = vld [vmem:[%s8 + $0x318] sm:$0xff]
        %v1822 = vld [vmem:[%s8 + $0x320] sm:$0xff]
        %v1823 = vld [vmem:[%s8 + $0x328] sm:$0xff]
        %v1824 = vld [vmem:[%s8 + $0x330] sm:$0xff]
        %v1825 = vld [vmem:[%s8 + $0x338] sm:$0xff]
        %v1826 = vld [vmem:[%s8 + $0x340] sm:$0xff]
        %v1827 = vld [vmem:[%s8 + $0x348] sm:$0xff]
        %v1828 = vld [vmem:[%s8 + $0x350] sm:$0xff]
        %v1829 = vld [vmem:[%s8 + $0x358] sm:$0xff]
        %v1830 = vld [vmem:[%s8 + $0x360] sm:$0xff]
        %v1831 = vld [vmem:[%s8 + $0x368] sm:$0xff]
        %v1832 = vld [vmem:[%s8 + $0x370] sm:$0xff]
        %v1833 = vld [vmem:[%s8 + $0x378] sm:$0xff]
        %v1834 = vld [vmem:[%s8 + $0x380] sm:$0xff]
        %v1835 = vld [vmem:[%s8 + $0x388] sm:$0xff]
        %v1836 = vld [vmem:[%s8 + $0x390] sm:$0xff]
        %v1837 = vld [vmem:[%s8 + $0x398] sm:$0xff]
        %v1838 = vld [vmem:[%s8 + $0x3a0] sm:$0xff]
        %v1839 = vld [vmem:[%s8 + $0x3a8] sm:$0xff]
        %v1840 = vld [vmem:[%s8 + $0x3b0] sm:$0xff]
        %v1841 = vld [vmem:[%s8 + $0x3b8] sm:$0xff]
        %v1842 = vld [vmem:[%s8 + $0x3c0] sm:$0xff]
        %v1843 = vld [vmem:[%s8 + $0x3c8] sm:$0xff]
        %v1844 = vld [vmem:[%s8 + $0x3d0] sm:$0xff]
        %v1845 = vld [vmem:[%s8 + $0x3d8] sm:$0xff]
        %v1846 = vld [vmem:[%s8 + $0x3e0] sm:$0xff]
        %v1847 = vld [vmem:[%s8 + $0x3e8] sm:$0xff]
        %v1848 = vld [vmem:[%s8 + $0x3f0] sm:$0xff]
        %v1849 = vld [vmem:[%s8 + $0x3f8] sm:$0xff]
        %v1850 = vunpack.c.l.bf16 %v1722
        %v1851 = vunpack.c.h.bf16 %v1722
        %v1852 = vunpack.c.l.bf16 %v1723
        %v1853 = vunpack.c.h.bf16 %v1723
        %v1854 = vunpack.c.l.bf16 %v1724
        %v1855 = vunpack.c.h.bf16 %v1724
        %v1856 = vunpack.c.l.bf16 %v1725
        %v1857 = vunpack.c.h.bf16 %v1725
        %v1858 = vunpack.c.l.bf16 %v1726
        %v1859 = vunpack.c.h.bf16 %v1726
        %v1860 = vunpack.c.l.bf16 %v1727
        %v1861 = vunpack.c.h.bf16 %v1727
        %v1862 = vunpack.c.l.bf16 %v1728
        %v1863 = vunpack.c.h.bf16 %v1728
        %v1864 = vunpack.c.l.bf16 %v1729
        %v1865 = vunpack.c.h.bf16 %v1729
        %v1866 = vunpack.c.l.bf16 %v1730
        %v1867 = vunpack.c.h.bf16 %v1730
        %v1868 = vunpack.c.l.bf16 %v1731
        %v1869 = vunpack.c.h.bf16 %v1731
        %v1870 = vunpack.c.l.bf16 %v1732
        %v1871 = vunpack.c.h.bf16 %v1732
        %v1872 = vunpack.c.l.bf16 %v1733
        %v1873 = vunpack.c.h.bf16 %v1733
        %v1874 = vunpack.c.l.bf16 %v1734
        %v1875 = vunpack.c.h.bf16 %v1734
        %v1876 = vunpack.c.l.bf16 %v1735
        %v1877 = vunpack.c.h.bf16 %v1735
        %v1878 = vunpack.c.l.bf16 %v1736
        %v1879 = vunpack.c.h.bf16 %v1736
        %v1880 = vunpack.c.l.bf16 %v1737
        %v1881 = vunpack.c.h.bf16 %v1737
        %v1882 = vunpack.c.l.bf16 %v1738
        %v1883 = vunpack.c.h.bf16 %v1738
        %v1884 = vunpack.c.l.bf16 %v1739
        %v1885 = vunpack.c.h.bf16 %v1739
        %v1886 = vunpack.c.l.bf16 %v1740
        %v1887 = vunpack.c.h.bf16 %v1740
        %v1888 = vunpack.c.l.bf16 %v1741
        %v1889 = vunpack.c.h.bf16 %v1741
        %v1890 = vunpack.c.l.bf16 %v1742
        %v1891 = vunpack.c.h.bf16 %v1742
        %v1892 = vunpack.c.l.bf16 %v1743
        %v1893 = vunpack.c.h.bf16 %v1743
        %v1894 = vunpack.c.l.bf16 %v1744
        %v1895 = vunpack.c.h.bf16 %v1744
        %v1896 = vunpack.c.l.bf16 %v1745
        %v1897 = vunpack.c.h.bf16 %v1745
        %v1898 = vunpack.c.l.bf16 %v1746
        %v1899 = vunpack.c.h.bf16 %v1746
        %v1900 = vunpack.c.l.bf16 %v1747
        %v1901 = vunpack.c.h.bf16 %v1747
        %v1902 = vunpack.c.l.bf16 %v1748
        %v1903 = vunpack.c.h.bf16 %v1748
        %v1904 = vunpack.c.l.bf16 %v1749
        %v1905 = vunpack.c.h.bf16 %v1749
        %v1906 = vunpack.c.l.bf16 %v1750
        %v1907 = vunpack.c.h.bf16 %v1750
        %v1908 = vunpack.c.l.bf16 %v1751
        %v1909 = vunpack.c.h.bf16 %v1751
        %v1910 = vunpack.c.l.bf16 %v1752
        %v1911 = vunpack.c.h.bf16 %v1752
        %v1912 = vunpack.c.l.bf16 %v1753
        %v1913 = vunpack.c.h.bf16 %v1753
        %v1914 = vunpack.c.l.bf16 %v1754
        %v1915 = vunpack.c.h.bf16 %v1754
        %v1916 = vunpack.c.l.bf16 %v1755
        %v1917 = vunpack.c.h.bf16 %v1755
        %v1918 = vunpack.c.l.bf16 %v1756
        %v1919 = vunpack.c.h.bf16 %v1756
        %v1920 = vunpack.c.l.bf16 %v1757
        %v1921 = vunpack.c.h.bf16 %v1757
        %v1922 = vunpack.c.l.bf16 %v1758
        %v1923 = vunpack.c.h.bf16 %v1758
        %v1924 = vunpack.c.l.bf16 %v1759
        %v1925 = vunpack.c.h.bf16 %v1759
        %v1926 = vunpack.c.l.bf16 %v1760
        %v1927 = vunpack.c.h.bf16 %v1760
        %v1928 = vunpack.c.l.bf16 %v1761
        %v1929 = vunpack.c.h.bf16 %v1761
        %v1930 = vunpack.c.l.bf16 %v1762
        %v1931 = vunpack.c.h.bf16 %v1762
        %v1932 = vunpack.c.l.bf16 %v1763
        %v1933 = vunpack.c.h.bf16 %v1763
        %v1934 = vunpack.c.l.bf16 %v1764
        %v1935 = vunpack.c.h.bf16 %v1764
        %v1936 = vunpack.c.l.bf16 %v1765
        %v1937 = vunpack.c.h.bf16 %v1765
        %v1938 = vunpack.c.l.bf16 %v1766
        %v1939 = vunpack.c.h.bf16 %v1766
        %v1940 = vunpack.c.l.bf16 %v1767
        %v1941 = vunpack.c.h.bf16 %v1767
        %v1942 = vunpack.c.l.bf16 %v1768
        %v1943 = vunpack.c.h.bf16 %v1768
        %v1944 = vunpack.c.l.bf16 %v1769
        %v1945 = vunpack.c.h.bf16 %v1769
        %v1946 = vunpack.c.l.bf16 %v1770
        %v1947 = vunpack.c.h.bf16 %v1770
        %v1948 = vunpack.c.l.bf16 %v1771
        %v1949 = vunpack.c.h.bf16 %v1771
        %v1950 = vunpack.c.l.bf16 %v1772
        %v1951 = vunpack.c.h.bf16 %v1772
        %v1952 = vunpack.c.l.bf16 %v1773
        %v1953 = vunpack.c.h.bf16 %v1773
        %v1954 = vunpack.c.l.bf16 %v1774
        %v1955 = vunpack.c.h.bf16 %v1774
        %v1956 = vunpack.c.l.bf16 %v1775
        %v1957 = vunpack.c.h.bf16 %v1775
        %v1958 = vunpack.c.l.bf16 %v1776
        %v1959 = vunpack.c.h.bf16 %v1776
        %v1960 = vunpack.c.l.bf16 %v1777
        %v1961 = vunpack.c.h.bf16 %v1777
        %v1962 = vunpack.c.l.bf16 %v1778
        %v1963 = vunpack.c.h.bf16 %v1778
        %v1964 = vunpack.c.l.bf16 %v1779
        %v1965 = vunpack.c.h.bf16 %v1779
        %v1966 = vunpack.c.l.bf16 %v1780
        %v1967 = vunpack.c.h.bf16 %v1780
        %v1968 = vunpack.c.l.bf16 %v1781
        %v1969 = vunpack.c.h.bf16 %v1781
        %v1970 = vunpack.c.l.bf16 %v1782
        %v1971 = vunpack.c.h.bf16 %v1782
        %v1972 = vunpack.c.l.bf16 %v1783
        %v1973 = vunpack.c.h.bf16 %v1783
        %v1974 = vunpack.c.l.bf16 %v1784
        %v1975 = vunpack.c.h.bf16 %v1784
        %v1976 = vunpack.c.l.bf16 %v1785
        %v1977 = vunpack.c.h.bf16 %v1785
        %v1978 = vunpack.c.l.bf16 %v1786
        %v1979 = vunpack.c.h.bf16 %v1786
        %v1980 = vunpack.c.l.bf16 %v1787
        %v1981 = vunpack.c.h.bf16 %v1787
        %v1982 = vunpack.c.l.bf16 %v1788
        %v1983 = vunpack.c.h.bf16 %v1788
        %v1984 = vunpack.c.l.bf16 %v1789
        %v1985 = vunpack.c.h.bf16 %v1789
        %v1986 = vunpack.c.l.bf16 %v1790
        %v1987 = vunpack.c.h.bf16 %v1790
        %v1988 = vunpack.c.l.bf16 %v1791
        %v1989 = vunpack.c.h.bf16 %v1791
        %v1990 = vunpack.c.l.bf16 %v1792
        %v1991 = vunpack.c.h.bf16 %v1792
        %v1992 = vunpack.c.l.bf16 %v1793
        %v1993 = vunpack.c.h.bf16 %v1793
        %v1994 = vunpack.c.l.bf16 %v1794
        %v1995 = vunpack.c.h.bf16 %v1794
        %v1996 = vunpack.c.l.bf16 %v1795
        %v1997 = vunpack.c.h.bf16 %v1795
        %v1998 = vunpack.c.l.bf16 %v1796
        %v1999 = vunpack.c.h.bf16 %v1796
        %v2000 = vunpack.c.l.bf16 %v1797
        %v2001 = vunpack.c.h.bf16 %v1797
        %v2002 = vunpack.c.l.bf16 %v1798
        %v2003 = vunpack.c.h.bf16 %v1798
        %v2004 = vunpack.c.l.bf16 %v1799
        %v2005 = vunpack.c.h.bf16 %v1799
        %v2006 = vunpack.c.l.bf16 %v1800
        %v2007 = vunpack.c.h.bf16 %v1800
        %v2008 = vunpack.c.l.bf16 %v1801
        %v2009 = vunpack.c.h.bf16 %v1801
        %v2010 = vunpack.c.l.bf16 %v1802
        %v2011 = vunpack.c.h.bf16 %v1802
        %v2012 = vunpack.c.l.bf16 %v1803
        %v2013 = vunpack.c.h.bf16 %v1803
        %v2014 = vunpack.c.l.bf16 %v1804
        %v2015 = vunpack.c.h.bf16 %v1804
        %v2016 = vunpack.c.l.bf16 %v1805
        %v2017 = vunpack.c.h.bf16 %v1805
        %v2018 = vunpack.c.l.bf16 %v1806
        %v2019 = vunpack.c.h.bf16 %v1806
        %v2020 = vunpack.c.l.bf16 %v1807
        %v2021 = vunpack.c.h.bf16 %v1807
        %v2022 = vunpack.c.l.bf16 %v1808
        %v2023 = vunpack.c.h.bf16 %v1808
        %v2024 = vunpack.c.l.bf16 %v1809
        %v2025 = vunpack.c.h.bf16 %v1809
        %v2026 = vunpack.c.l.bf16 %v1810
        %v2027 = vunpack.c.h.bf16 %v1810
        %v2028 = vunpack.c.l.bf16 %v1811
        %v2029 = vunpack.c.h.bf16 %v1811
        %v2030 = vunpack.c.l.bf16 %v1812
        %v2031 = vunpack.c.h.bf16 %v1812
        %v2032 = vunpack.c.l.bf16 %v1813
        %v2033 = vunpack.c.h.bf16 %v1813
        %v2034 = vunpack.c.l.bf16 %v1814
        %v2035 = vunpack.c.h.bf16 %v1814
        %v2036 = vunpack.c.l.bf16 %v1815
        %v2037 = vunpack.c.h.bf16 %v1815
        %v2038 = vunpack.c.l.bf16 %v1816
        %v2039 = vunpack.c.h.bf16 %v1816
        %v2040 = vunpack.c.l.bf16 %v1817
        %v2041 = vunpack.c.h.bf16 %v1817
        %v2042 = vunpack.c.l.bf16 %v1818
        %v2043 = vunpack.c.h.bf16 %v1818
        %v2044 = vunpack.c.l.bf16 %v1819
        %v2045 = vunpack.c.h.bf16 %v1819
        %v2046 = vunpack.c.l.bf16 %v1820
        %v2047 = vunpack.c.h.bf16 %v1820
        %v2048 = vunpack.c.l.bf16 %v1821
        %v2049 = vunpack.c.h.bf16 %v1821
        %v2050 = vunpack.c.l.bf16 %v1822
        %v2051 = vunpack.c.h.bf16 %v1822
        %v2052 = vunpack.c.l.bf16 %v1823
        %v2053 = vunpack.c.h.bf16 %v1823
        %v2054 = vunpack.c.l.bf16 %v1824
        %v2055 = vunpack.c.h.bf16 %v1824
        %v2056 = vunpack.c.l.bf16 %v1825
        %v2057 = vunpack.c.h.bf16 %v1825
        %v2058 = vunpack.c.l.bf16 %v1826
        %v2059 = vunpack.c.h.bf16 %v1826
        %v2060 = vunpack.c.l.bf16 %v1827
        %v2061 = vunpack.c.h.bf16 %v1827
        %v2062 = vunpack.c.l.bf16 %v1828
        %v2063 = vunpack.c.h.bf16 %v1828
        %v2064 = vunpack.c.l.bf16 %v1829
        %v2065 = vunpack.c.h.bf16 %v1829
        %v2066 = vunpack.c.l.bf16 %v1830
        %v2067 = vunpack.c.h.bf16 %v1830
        %v2068 = vunpack.c.l.bf16 %v1831
        %v2069 = vunpack.c.h.bf16 %v1831
        %v2070 = vunpack.c.l.bf16 %v1832
        %v2071 = vunpack.c.h.bf16 %v1832
        %v2072 = vunpack.c.l.bf16 %v1833
        %v2073 = vunpack.c.h.bf16 %v1833
        %v2074 = vunpack.c.l.bf16 %v1834
        %v2075 = vunpack.c.h.bf16 %v1834
        %v2076 = vunpack.c.l.bf16 %v1835
        %v2077 = vunpack.c.h.bf16 %v1835
        %v2078 = vunpack.c.l.bf16 %v1836
        %v2079 = vunpack.c.h.bf16 %v1836
        %v2080 = vunpack.c.l.bf16 %v1837
        %v2081 = vunpack.c.h.bf16 %v1837
        %v2082 = vunpack.c.l.bf16 %v1838
        %v2083 = vunpack.c.h.bf16 %v1838
        %v2084 = vunpack.c.l.bf16 %v1839
        %v2085 = vunpack.c.h.bf16 %v1839
        %v2086 = vunpack.c.l.bf16 %v1840
        %v2087 = vunpack.c.h.bf16 %v1840
        %v2088 = vunpack.c.l.bf16 %v1841
        %v2089 = vunpack.c.h.bf16 %v1841
        %v2090 = vunpack.c.l.bf16 %v1842
        %v2091 = vunpack.c.h.bf16 %v1842
        %v2092 = vunpack.c.l.bf16 %v1843
        %v2093 = vunpack.c.h.bf16 %v1843
        %v2094 = vunpack.c.l.bf16 %v1844
        %v2095 = vunpack.c.h.bf16 %v1844
        %v2096 = vunpack.c.l.bf16 %v1845
        %v2097 = vunpack.c.h.bf16 %v1845
        %v2098 = vunpack.c.l.bf16 %v1846
        %v2099 = vunpack.c.h.bf16 %v1846
        %v2100 = vunpack.c.l.bf16 %v1847
        %v2101 = vunpack.c.h.bf16 %v1847
        %v2102 = vunpack.c.l.bf16 %v1848
        %v2103 = vunpack.c.h.bf16 %v1848
        %v2104 = vunpack.c.l.bf16 %v1849
        %v2105 = vunpack.c.h.bf16 %v1849
        %v2107 = vunpack.c.l.b16 %v1710
        %v2108 = vunpack.c.h.b16 %v1710
        %v2109 = vpack.c.b16 %v2107, %v2107
        %v2110 = vpack.c.b16 %v2108, %v2108
        %2113 = vxpose.binary.xlu0.c.b16.start [1/16] %v2110, %v2109, 128
        %2114 = vxpose.binary.xlu0.c.b16.cont [2/16] 0, 0, 128
        %2115 = vxpose.binary.xlu0.c.b16.cont [3/16] 0, 0, 128
        %2116 = vxpose.binary.xlu0.c.b16.cont [4/16] 0, 0, 128
        %2117 = vxpose.binary.xlu0.c.b16.cont [5/16] 0, 0, 128
        %2118 = vxpose.binary.xlu0.c.b16.cont [6/16] 0, 0, 128
        %2119 = vxpose.binary.xlu0.c.b16.cont [7/16] 0, 0, 128
        %2120 = vxpose.binary.xlu0.c.b16.end [8/16] 0, 0, 128
        %v2121 = vpop.trf.xlu0
        %v2122 = vpop.trf.xlu0
        %v2123 = vpop.trf.xlu0
        %v2124 = vpop.trf.xlu0
        %v2125 = vpop.trf.xlu0
        %v2126 = vpop.trf.xlu0
        %v2127 = vpop.trf.xlu0
        %v2128 = vpop.trf.xlu0
        %v2129 = vpop.trf.xlu0
        %v2130 = vpop.trf.xlu0
        %v2131 = vpop.trf.xlu0
        %v2132 = vpop.trf.xlu0
        %v2133 = vpop.trf.xlu0
        %v2134 = vpop.trf.xlu0
        %v2135 = vpop.trf.xlu0
        %v2136 = vpop.trf.xlu0
        %v2138 = vunpack.c.l.b16 %v1714
        %v2139 = vunpack.c.h.b16 %v1714
        %v2140 = vpack.c.b16 %v2138, %v2138
        %v2141 = vpack.c.b16 %v2139, %v2139
        %vm2142 = vcmask 64512
        %v2144 = vsel %vm2142, %v2121, 0
        %v2147 = vsel %vm2142, %v2123, 0
        %v2150 = vsel %vm2142, %v2125, 0
        %v2153 = vsel %vm2142, %v2127, 0
        %v2156 = vsel %vm2142, %v2129, 0
        %v2159 = vsel %vm2142, %v2131, 0
        %v2162 = vsel %vm2142, %v2133, 0
        %v2165 = vsel %vm2142, %v2135, 0
        %v2168 = vsel %vm2142, %v2122, 0
        %v2171 = vsel %vm2142, %v2124, 0
        %v2174 = vsel %vm2142, %v2126, 0
        %v2177 = vsel %vm2142, %v2128, 0
        %v2180 = vsel %vm2142, %v2130, 0
        %v2183 = vsel %vm2142, %v2132, 0
        %v2186 = vsel %vm2142, %v2134, 0
        %v2189 = vsel %vm2142, %v2136, 0
        %vm2191 = vcmask 1043456
        %v2193 = vsel %vm2191, %v2140, 0
        %v2196 = vsel %vm2191, %v2141, 0
        %2198 = vmatpush.bf16.msra.mxu0 0
        %2199 = vmatpush.bf16.msra.mxu0 0
        %2200 = vmatpush.bf16.msra.mxu0 0
        %2201 = vmatpush.bf16.msra.mxu0 0
        %2202 = vmatpush.bf16.msra.mxu0 0
        %2203 = vmatpush.bf16.msra.mxu0 0
        %2204 = vmatpush.bf16.msra.mxu0 0
        %2205 = vmatpush.bf16.msra.mxu0 %v2193
        %2206 = vmatmul.bf16.gmra.mxu0 %v2144
        %v2207 = vpop.f32.mrf.mxu0
        %v2208 = vadd.f32 %v1850, %v2207
        %v2209 = vpop.f32.mrf.mxu0
        %v2210 = vadd.f32 %v1852, %v2209
        %2211 = vmatmul.bf16.gmra.mxu0 %v2147
        %v2212 = vpop.f32.mrf.mxu0
        %v2213 = vadd.f32 %v1854, %v2212
        %v2214 = vpop.f32.mrf.mxu0
        %v2215 = vadd.f32 %v1856, %v2214
        %2216 = vmatmul.bf16.gmra.mxu0 %v2150
        %v2217 = vpop.f32.mrf.mxu0
        %v2218 = vadd.f32 %v1858, %v2217
        %v2219 = vpop.f32.mrf.mxu0
        %v2220 = vadd.f32 %v1860, %v2219
        %2221 = vmatmul.bf16.gmra.mxu0 %v2153
        %v2222 = vpop.f32.mrf.mxu0
        %v2223 = vadd.f32 %v1862, %v2222
        %v2224 = vpop.f32.mrf.mxu0
        %v2225 = vadd.f32 %v1864, %v2224
        %2226 = vmatmul.bf16.gmra.mxu0 %v2156
        %v2227 = vpop.f32.mrf.mxu0
        %v2228 = vadd.f32 %v1866, %v2227
        %v2229 = vpop.f32.mrf.mxu0
        %v2230 = vadd.f32 %v1868, %v2229
        %2231 = vmatmul.bf16.gmra.mxu0 %v2159
        %v2232 = vpop.f32.mrf.mxu0
        %v2233 = vadd.f32 %v1870, %v2232
        %v2234 = vpop.f32.mrf.mxu0
        %v2235 = vadd.f32 %v1872, %v2234
        %2236 = vmatmul.bf16.gmra.mxu0 %v2162
        %v2237 = vpop.f32.mrf.mxu0
        %v2238 = vadd.f32 %v1874, %v2237
        %v2239 = vpop.f32.mrf.mxu0
        %v2240 = vadd.f32 %v1876, %v2239
        %2241 = vmatmul.bf16.gmra.mxu0 %v2165
        %v2242 = vpop.f32.mrf.mxu0
        %v2243 = vadd.f32 %v1878, %v2242
        %v2244 = vpop.f32.mrf.mxu0
        %v2245 = vadd.f32 %v1880, %v2244
        %2246 = vmatmul.bf16.gmra.mxu0 %v2168
        %v2247 = vpop.f32.mrf.mxu0
        %v2248 = vadd.f32 %v1882, %v2247
        %v2249 = vpop.f32.mrf.mxu0
        %v2250 = vadd.f32 %v1884, %v2249
        %2251 = vmatmul.bf16.gmra.mxu0 %v2171
        %v2252 = vpop.f32.mrf.mxu0
        %v2253 = vadd.f32 %v1886, %v2252
        %v2254 = vpop.f32.mrf.mxu0
        %v2255 = vadd.f32 %v1888, %v2254
        %2256 = vmatmul.bf16.gmra.mxu0 %v2174
        %v2257 = vpop.f32.mrf.mxu0
        %v2258 = vadd.f32 %v1890, %v2257
        %v2259 = vpop.f32.mrf.mxu0
        %v2260 = vadd.f32 %v1892, %v2259
        %2261 = vmatmul.bf16.gmra.mxu0 %v2177
        %v2262 = vpop.f32.mrf.mxu0
        %v2263 = vadd.f32 %v1894, %v2262
        %v2264 = vpop.f32.mrf.mxu0
        %v2265 = vadd.f32 %v1896, %v2264
        %2266 = vmatmul.bf16.gmra.mxu0 %v2180
        %v2267 = vpop.f32.mrf.mxu0
        %v2268 = vadd.f32 %v1898, %v2267
        %v2269 = vpop.f32.mrf.mxu0
        %v2270 = vadd.f32 %v1900, %v2269
        %2271 = vmatmul.bf16.gmra.mxu0 %v2183
        %v2272 = vpop.f32.mrf.mxu0
        %v2273 = vadd.f32 %v1902, %v2272
        %v2274 = vpop.f32.mrf.mxu0
        %v2275 = vadd.f32 %v1904, %v2274
        %2276 = vmatmul.bf16.gmra.mxu0 %v2186
        %v2277 = vpop.f32.mrf.mxu0
        %v2278 = vadd.f32 %v1906, %v2277
        %v2279 = vpop.f32.mrf.mxu0
        %v2280 = vadd.f32 %v1908, %v2279
        %2281 = vmatmul.bf16.gmra.mxu0 %v2189
        %v2282 = vpop.f32.mrf.mxu0
        %v2283 = vadd.f32 %v1910, %v2282
        %v2284 = vpop.f32.mrf.mxu0
        %v2285 = vadd.f32 %v1912, %v2284
        %2286 = vdwg.mxu0
        %2287 = vmatpush.bf16.msra.mxu0 0
        %2288 = vmatpush.bf16.msra.mxu0 0
        %2289 = vmatpush.bf16.msra.mxu0 0
        %2290 = vmatpush.bf16.msra.mxu0 0
        %2291 = vmatpush.bf16.msra.mxu0 0
        %2292 = vmatpush.bf16.msra.mxu0 0
        %2293 = vmatpush.bf16.msra.mxu0 0
        %2294 = vmatpush.bf16.msra.mxu0 %v2196
        %2295 = vmatmul.bf16.gmra.mxu0 %v2144
        %v2296 = vpop.f32.mrf.mxu0
        %v2297 = vadd.f32 %v1851, %v2296
        %v2298 = vpop.f32.mrf.mxu0
        %v2299 = vadd.f32 %v1853, %v2298
        %2300 = vmatmul.bf16.gmra.mxu0 %v2147
        %v2301 = vpop.f32.mrf.mxu0
        %v2302 = vadd.f32 %v1855, %v2301
        %v2303 = vpop.f32.mrf.mxu0
        %v2304 = vadd.f32 %v1857, %v2303
        %2305 = vmatmul.bf16.gmra.mxu0 %v2150
        %v2306 = vpop.f32.mrf.mxu0
        %v2307 = vadd.f32 %v1859, %v2306
        %v2308 = vpop.f32.mrf.mxu0
        %v2309 = vadd.f32 %v1861, %v2308
        %2310 = vmatmul.bf16.gmra.mxu0 %v2153
        %v2311 = vpop.f32.mrf.mxu0
        %v2312 = vadd.f32 %v1863, %v2311
        %v2313 = vpop.f32.mrf.mxu0
        %v2314 = vadd.f32 %v1865, %v2313
        %2315 = vmatmul.bf16.gmra.mxu0 %v2156
        %v2316 = vpop.f32.mrf.mxu0
        %v2317 = vadd.f32 %v1867, %v2316
        %v2318 = vpop.f32.mrf.mxu0
        %v2319 = vadd.f32 %v1869, %v2318
        %2320 = vmatmul.bf16.gmra.mxu0 %v2159
        %v2321 = vpop.f32.mrf.mxu0
        %v2322 = vadd.f32 %v1871, %v2321
        %v2323 = vpop.f32.mrf.mxu0
        %v2324 = vadd.f32 %v1873, %v2323
        %2325 = vmatmul.bf16.gmra.mxu0 %v2162
        %v2326 = vpop.f32.mrf.mxu0
        %v2327 = vadd.f32 %v1875, %v2326
        %v2328 = vpop.f32.mrf.mxu0
        %v2329 = vadd.f32 %v1877, %v2328
        %2330 = vmatmul.bf16.gmra.mxu0 %v2165
        %v2331 = vpop.f32.mrf.mxu0
        %v2332 = vadd.f32 %v1879, %v2331
        %v2333 = vpop.f32.mrf.mxu0
        %v2334 = vadd.f32 %v1881, %v2333
        %2335 = vmatmul.bf16.gmra.mxu0 %v2168
        %v2336 = vpop.f32.mrf.mxu0
        %v2337 = vadd.f32 %v1883, %v2336
        %v2338 = vpop.f32.mrf.mxu0
        %v2339 = vadd.f32 %v1885, %v2338
        %2340 = vmatmul.bf16.gmra.mxu0 %v2171
        %v2341 = vpop.f32.mrf.mxu0
        %v2342 = vadd.f32 %v1887, %v2341
        %v2343 = vpop.f32.mrf.mxu0
        %v2344 = vadd.f32 %v1889, %v2343
        %2345 = vmatmul.bf16.gmra.mxu0 %v2174
        %v2346 = vpop.f32.mrf.mxu0
        %v2347 = vadd.f32 %v1891, %v2346
        %v2348 = vpop.f32.mrf.mxu0
        %v2349 = vadd.f32 %v1893, %v2348
        %2350 = vmatmul.bf16.gmra.mxu0 %v2177
        %v2351 = vpop.f32.mrf.mxu0
        %v2352 = vadd.f32 %v1895, %v2351
        %v2353 = vpop.f32.mrf.mxu0
        %v2354 = vadd.f32 %v1897, %v2353
        %2355 = vmatmul.bf16.gmra.mxu0 %v2180
        %v2356 = vpop.f32.mrf.mxu0
        %v2357 = vadd.f32 %v1899, %v2356
        %v2358 = vpop.f32.mrf.mxu0
        %v2359 = vadd.f32 %v1901, %v2358
        %2360 = vmatmul.bf16.gmra.mxu0 %v2183
        %v2361 = vpop.f32.mrf.mxu0
        %v2362 = vadd.f32 %v1903, %v2361
        %v2363 = vpop.f32.mrf.mxu0
        %v2364 = vadd.f32 %v1905, %v2363
        %2365 = vmatmul.bf16.gmra.mxu0 %v2186
        %v2366 = vpop.f32.mrf.mxu0
        %v2367 = vadd.f32 %v1907, %v2366
        %v2368 = vpop.f32.mrf.mxu0
        %v2369 = vadd.f32 %v1909, %v2368
        %2370 = vmatmul.bf16.gmra.mxu0 %v2189
        %v2371 = vpop.f32.mrf.mxu0
        %v2372 = vadd.f32 %v1911, %v2371
        %v2373 = vpop.f32.mrf.mxu0
        %v2374 = vadd.f32 %v1913, %v2373
        %2375 = vdwg.mxu0
        %v2377 = vunpack.c.l.b16 %v1711
        %v2378 = vunpack.c.h.b16 %v1711
        %v2379 = vpack.c.b16 %v2377, %v2377
        %v2380 = vpack.c.b16 %v2378, %v2378
        %2383 = vxpose.binary.xlu0.c.b16.start [1/16] %v2380, %v2379, 128
        %2384 = vxpose.binary.xlu0.c.b16.cont [2/16] 0, 0, 128
        %2385 = vxpose.binary.xlu0.c.b16.cont [3/16] 0, 0, 128
        %2386 = vxpose.binary.xlu0.c.b16.cont [4/16] 0, 0, 128
        %2387 = vxpose.binary.xlu0.c.b16.cont [5/16] 0, 0, 128
        %2388 = vxpose.binary.xlu0.c.b16.cont [6/16] 0, 0, 128
        %2389 = vxpose.binary.xlu0.c.b16.cont [7/16] 0, 0, 128
        %2390 = vxpose.binary.xlu0.c.b16.end [8/16] 0, 0, 128
        %v2391 = vpop.trf.xlu0
        %v2392 = vpop.trf.xlu0
        %v2393 = vpop.trf.xlu0
        %v2394 = vpop.trf.xlu0
        %v2395 = vpop.trf.xlu0
        %v2396 = vpop.trf.xlu0
        %v2397 = vpop.trf.xlu0
        %v2398 = vpop.trf.xlu0
        %v2399 = vpop.trf.xlu0
        %v2400 = vpop.trf.xlu0
        %v2401 = vpop.trf.xlu0
        %v2402 = vpop.trf.xlu0
        %v2403 = vpop.trf.xlu0
        %v2404 = vpop.trf.xlu0
        %v2405 = vpop.trf.xlu0
        %v2406 = vpop.trf.xlu0
        %v2408 = vunpack.c.l.b16 %v1715
        %v2409 = vunpack.c.h.b16 %v1715
        %v2410 = vpack.c.b16 %v2408, %v2408
        %v2411 = vpack.c.b16 %v2409, %v2409
        %v2413 = vsel %vm2142, %v2391, 0
        %v2416 = vsel %vm2142, %v2393, 0
        %v2419 = vsel %vm2142, %v2395, 0
        %v2422 = vsel %vm2142, %v2397, 0
        %v2425 = vsel %vm2142, %v2399, 0
        %v2428 = vsel %vm2142, %v2401, 0
        %v2431 = vsel %vm2142, %v2403, 0
        %v2434 = vsel %vm2142, %v2405, 0
        %v2437 = vsel %vm2142, %v2392, 0
        %v2440 = vsel %vm2142, %v2394, 0
        %v2443 = vsel %vm2142, %v2396, 0
        %v2446 = vsel %vm2142, %v2398, 0
        %v2449 = vsel %vm2142, %v2400, 0
        %v2452 = vsel %vm2142, %v2402, 0
        %v2455 = vsel %vm2142, %v2404, 0
        %v2458 = vsel %vm2142, %v2406, 0
        %v2461 = vsel %vm2191, %v2410, 0
        %v2464 = vsel %vm2191, %v2411, 0
        %2466 = vmatpush.bf16.msra.mxu0 0
        %2467 = vmatpush.bf16.msra.mxu0 0
        %2468 = vmatpush.bf16.msra.mxu0 0
        %2469 = vmatpush.bf16.msra.mxu0 0
        %2470 = vmatpush.bf16.msra.mxu0 0
        %2471 = vmatpush.bf16.msra.mxu0 0
        %2472 = vmatpush.bf16.msra.mxu0 0
        %2473 = vmatpush.bf16.msra.mxu0 %v2461
        %2474 = vmatmul.bf16.gmra.mxu0 %v2413
        %v2475 = vpop.f32.mrf.mxu0
        %v2476 = vadd.f32 %v1914, %v2475
        %v2477 = vpop.f32.mrf.mxu0
        %v2478 = vadd.f32 %v1916, %v2477
        %2479 = vmatmul.bf16.gmra.mxu0 %v2416
        %v2480 = vpop.f32.mrf.mxu0
        %v2481 = vadd.f32 %v1918, %v2480
        %v2482 = vpop.f32.mrf.mxu0
        %v2483 = vadd.f32 %v1920, %v2482
        %2484 = vmatmul.bf16.gmra.mxu0 %v2419
        %v2485 = vpop.f32.mrf.mxu0
        %v2486 = vadd.f32 %v1922, %v2485
        %v2487 = vpop.f32.mrf.mxu0
        %v2488 = vadd.f32 %v1924, %v2487
        %2489 = vmatmul.bf16.gmra.mxu0 %v2422
        %v2490 = vpop.f32.mrf.mxu0
        %v2491 = vadd.f32 %v1926, %v2490
        %v2492 = vpop.f32.mrf.mxu0
        %v2493 = vadd.f32 %v1928, %v2492
        %2494 = vmatmul.bf16.gmra.mxu0 %v2425
        %v2495 = vpop.f32.mrf.mxu0
        %v2496 = vadd.f32 %v1930, %v2495
        %v2497 = vpop.f32.mrf.mxu0
        %v2498 = vadd.f32 %v1932, %v2497
        %2499 = vmatmul.bf16.gmra.mxu0 %v2428
        %v2500 = vpop.f32.mrf.mxu0
        %v2501 = vadd.f32 %v1934, %v2500
        %v2502 = vpop.f32.mrf.mxu0
        %v2503 = vadd.f32 %v1936, %v2502
        %2504 = vmatmul.bf16.gmra.mxu0 %v2431
        %v2505 = vpop.f32.mrf.mxu0
        %v2506 = vadd.f32 %v1938, %v2505
        %v2507 = vpop.f32.mrf.mxu0
        %v2508 = vadd.f32 %v1940, %v2507
        %2509 = vmatmul.bf16.gmra.mxu0 %v2434
        %v2510 = vpop.f32.mrf.mxu0
        %v2511 = vadd.f32 %v1942, %v2510
        %v2512 = vpop.f32.mrf.mxu0
        %v2513 = vadd.f32 %v1944, %v2512
        %2514 = vmatmul.bf16.gmra.mxu0 %v2437
        %v2515 = vpop.f32.mrf.mxu0
        %v2516 = vadd.f32 %v1946, %v2515
        %v2517 = vpop.f32.mrf.mxu0
        %v2518 = vadd.f32 %v1948, %v2517
        %2519 = vmatmul.bf16.gmra.mxu0 %v2440
        %v2520 = vpop.f32.mrf.mxu0
        %v2521 = vadd.f32 %v1950, %v2520
        %v2522 = vpop.f32.mrf.mxu0
        %v2523 = vadd.f32 %v1952, %v2522
        %2524 = vmatmul.bf16.gmra.mxu0 %v2443
        %v2525 = vpop.f32.mrf.mxu0
        %v2526 = vadd.f32 %v1954, %v2525
        %v2527 = vpop.f32.mrf.mxu0
        %v2528 = vadd.f32 %v1956, %v2527
        %2529 = vmatmul.bf16.gmra.mxu0 %v2446
        %v2530 = vpop.f32.mrf.mxu0
        %v2531 = vadd.f32 %v1958, %v2530
        %v2532 = vpop.f32.mrf.mxu0
        %v2533 = vadd.f32 %v1960, %v2532
        %2534 = vmatmul.bf16.gmra.mxu0 %v2449
        %v2535 = vpop.f32.mrf.mxu0
        %v2536 = vadd.f32 %v1962, %v2535
        %v2537 = vpop.f32.mrf.mxu0
        %v2538 = vadd.f32 %v1964, %v2537
        %2539 = vmatmul.bf16.gmra.mxu0 %v2452
        %v2540 = vpop.f32.mrf.mxu0
        %v2541 = vadd.f32 %v1966, %v2540
        %v2542 = vpop.f32.mrf.mxu0
        %v2543 = vadd.f32 %v1968, %v2542
        %2544 = vmatmul.bf16.gmra.mxu0 %v2455
        %v2545 = vpop.f32.mrf.mxu0
        %v2546 = vadd.f32 %v1970, %v2545
        %v2547 = vpop.f32.mrf.mxu0
        %v2548 = vadd.f32 %v1972, %v2547
        %2549 = vmatmul.bf16.gmra.mxu0 %v2458
        %v2550 = vpop.f32.mrf.mxu0
        %v2551 = vadd.f32 %v1974, %v2550
        %v2552 = vpop.f32.mrf.mxu0
        %v2553 = vadd.f32 %v1976, %v2552
        %2554 = vdwg.mxu0
        %2555 = vmatpush.bf16.msra.mxu0 0
        %2556 = vmatpush.bf16.msra.mxu0 0
        %2557 = vmatpush.bf16.msra.mxu0 0
        %2558 = vmatpush.bf16.msra.mxu0 0
        %2559 = vmatpush.bf16.msra.mxu0 0
        %2560 = vmatpush.bf16.msra.mxu0 0
        %2561 = vmatpush.bf16.msra.mxu0 0
        %2562 = vmatpush.bf16.msra.mxu0 %v2464
        %2563 = vmatmul.bf16.gmra.mxu0 %v2413
        %v2564 = vpop.f32.mrf.mxu0
        %v2565 = vadd.f32 %v1915, %v2564
        %v2566 = vpop.f32.mrf.mxu0
        %v2567 = vadd.f32 %v1917, %v2566
        %2568 = vmatmul.bf16.gmra.mxu0 %v2416
        %v2569 = vpop.f32.mrf.mxu0
        %v2570 = vadd.f32 %v1919, %v2569
        %v2571 = vpop.f32.mrf.mxu0
        %v2572 = vadd.f32 %v1921, %v2571
        %2573 = vmatmul.bf16.gmra.mxu0 %v2419
        %v2574 = vpop.f32.mrf.mxu0
        %v2575 = vadd.f32 %v1923, %v2574
        %v2576 = vpop.f32.mrf.mxu0
        %v2577 = vadd.f32 %v1925, %v2576
        %2578 = vmatmul.bf16.gmra.mxu0 %v2422
        %v2579 = vpop.f32.mrf.mxu0
        %v2580 = vadd.f32 %v1927, %v2579
        %v2581 = vpop.f32.mrf.mxu0
        %v2582 = vadd.f32 %v1929, %v2581
        %2583 = vmatmul.bf16.gmra.mxu0 %v2425
        %v2584 = vpop.f32.mrf.mxu0
        %v2585 = vadd.f32 %v1931, %v2584
        %v2586 = vpop.f32.mrf.mxu0
        %v2587 = vadd.f32 %v1933, %v2586
        %2588 = vmatmul.bf16.gmra.mxu0 %v2428
        %v2589 = vpop.f32.mrf.mxu0
        %v2590 = vadd.f32 %v1935, %v2589
        %v2591 = vpop.f32.mrf.mxu0
        %v2592 = vadd.f32 %v1937, %v2591
        %2593 = vmatmul.bf16.gmra.mxu0 %v2431
        %v2594 = vpop.f32.mrf.mxu0
        %v2595 = vadd.f32 %v1939, %v2594
        %v2596 = vpop.f32.mrf.mxu0
        %v2597 = vadd.f32 %v1941, %v2596
        %2598 = vmatmul.bf16.gmra.mxu0 %v2434
        %v2599 = vpop.f32.mrf.mxu0
        %v2600 = vadd.f32 %v1943, %v2599
        %v2601 = vpop.f32.mrf.mxu0
        %v2602 = vadd.f32 %v1945, %v2601
        %2603 = vmatmul.bf16.gmra.mxu0 %v2437
        %v2604 = vpop.f32.mrf.mxu0
        %v2605 = vadd.f32 %v1947, %v2604
        %v2606 = vpop.f32.mrf.mxu0
        %v2607 = vadd.f32 %v1949, %v2606
        %2608 = vmatmul.bf16.gmra.mxu0 %v2440
        %v2609 = vpop.f32.mrf.mxu0
        %v2610 = vadd.f32 %v1951, %v2609
        %v2611 = vpop.f32.mrf.mxu0
        %v2612 = vadd.f32 %v1953, %v2611
        %2613 = vmatmul.bf16.gmra.mxu0 %v2443
        %v2614 = vpop.f32.mrf.mxu0
        %v2615 = vadd.f32 %v1955, %v2614
        %v2616 = vpop.f32.mrf.mxu0
        %v2617 = vadd.f32 %v1957, %v2616
        %2618 = vmatmul.bf16.gmra.mxu0 %v2446
        %v2619 = vpop.f32.mrf.mxu0
        %v2620 = vadd.f32 %v1959, %v2619
        %v2621 = vpop.f32.mrf.mxu0
        %v2622 = vadd.f32 %v1961, %v2621
        %2623 = vmatmul.bf16.gmra.mxu0 %v2449
        %v2624 = vpop.f32.mrf.mxu0
        %v2625 = vadd.f32 %v1963, %v2624
        %v2626 = vpop.f32.mrf.mxu0
        %v2627 = vadd.f32 %v1965, %v2626
        %2628 = vmatmul.bf16.gmra.mxu0 %v2452
        %v2629 = vpop.f32.mrf.mxu0
        %v2630 = vadd.f32 %v1967, %v2629
        %v2631 = vpop.f32.mrf.mxu0
        %v2632 = vadd.f32 %v1969, %v2631
        %2633 = vmatmul.bf16.gmra.mxu0 %v2455
        %v2634 = vpop.f32.mrf.mxu0
        %v2635 = vadd.f32 %v1971, %v2634
        %v2636 = vpop.f32.mrf.mxu0
        %v2637 = vadd.f32 %v1973, %v2636
        %2638 = vmatmul.bf16.gmra.mxu0 %v2458
        %v2639 = vpop.f32.mrf.mxu0
        %v2640 = vadd.f32 %v1975, %v2639
        %v2641 = vpop.f32.mrf.mxu0
        %v2642 = vadd.f32 %v1977, %v2641
        %2643 = vdwg.mxu0
        %v2645 = vunpack.c.l.b16 %v1712
        %v2646 = vunpack.c.h.b16 %v1712
        %v2647 = vpack.c.b16 %v2645, %v2645
        %v2648 = vpack.c.b16 %v2646, %v2646
        %2651 = vxpose.binary.xlu0.c.b16.start [1/16] %v2648, %v2647, 128
        %2652 = vxpose.binary.xlu0.c.b16.cont [2/16] 0, 0, 128
        %2653 = vxpose.binary.xlu0.c.b16.cont [3/16] 0, 0, 128
        %2654 = vxpose.binary.xlu0.c.b16.cont [4/16] 0, 0, 128
        %2655 = vxpose.binary.xlu0.c.b16.cont [5/16] 0, 0, 128
        %2656 = vxpose.binary.xlu0.c.b16.cont [6/16] 0, 0, 128
        %2657 = vxpose.binary.xlu0.c.b16.cont [7/16] 0, 0, 128
        %2658 = vxpose.binary.xlu0.c.b16.end [8/16] 0, 0, 128
        %v2659 = vpop.trf.xlu0
        %v2660 = vpop.trf.xlu0
        %v2661 = vpop.trf.xlu0
        %v2662 = vpop.trf.xlu0
        %v2663 = vpop.trf.xlu0
        %v2664 = vpop.trf.xlu0
        %v2665 = vpop.trf.xlu0
        %v2666 = vpop.trf.xlu0
        %v2667 = vpop.trf.xlu0
        %v2668 = vpop.trf.xlu0
        %v2669 = vpop.trf.xlu0
        %v2670 = vpop.trf.xlu0
        %v2671 = vpop.trf.xlu0
        %v2672 = vpop.trf.xlu0
        %v2673 = vpop.trf.xlu0
        %v2674 = vpop.trf.xlu0
        %v2676 = vunpack.c.l.b16 %v1716
        %v2677 = vunpack.c.h.b16 %v1716
        %v2678 = vpack.c.b16 %v2676, %v2676
        %v2679 = vpack.c.b16 %v2677, %v2677
        %v2681 = vsel %vm2142, %v2659, 0
        %v2684 = vsel %vm2142, %v2661, 0
        %v2687 = vsel %vm2142, %v2663, 0
        %v2690 = vsel %vm2142, %v2665, 0
        %v2693 = vsel %vm2142, %v2667, 0
        %v2696 = vsel %vm2142, %v2669, 0
        %v2699 = vsel %vm2142, %v2671, 0
        %v2702 = vsel %vm2142, %v2673, 0
        %v2705 = vsel %vm2142, %v2660, 0
        %v2708 = vsel %vm2142, %v2662, 0
        %v2711 = vsel %vm2142, %v2664, 0
        %v2714 = vsel %vm2142, %v2666, 0
        %v2717 = vsel %vm2142, %v2668, 0
        %v2720 = vsel %vm2142, %v2670, 0
        %v2723 = vsel %vm2142, %v2672, 0
        %v2726 = vsel %vm2142, %v2674, 0
        %v2729 = vsel %vm2191, %v2678, 0
        %v2732 = vsel %vm2191, %v2679, 0
        %2734 = vmatpush.bf16.msra.mxu0 0
        %2735 = vmatpush.bf16.msra.mxu0 0
        %2736 = vmatpush.bf16.msra.mxu0 0
        %2737 = vmatpush.bf16.msra.mxu0 0
        %2738 = vmatpush.bf16.msra.mxu0 0
        %2739 = vmatpush.bf16.msra.mxu0 0
        %2740 = vmatpush.bf16.msra.mxu0 0
        %2741 = vmatpush.bf16.msra.mxu0 %v2729
        %2742 = vmatmul.bf16.gmra.mxu0 %v2681
        %v2743 = vpop.f32.mrf.mxu0
        %v2744 = vadd.f32 %v1978, %v2743
        %v2745 = vpop.f32.mrf.mxu0
        %v2746 = vadd.f32 %v1980, %v2745
        %2747 = vmatmul.bf16.gmra.mxu0 %v2684
        %v2748 = vpop.f32.mrf.mxu0
        %v2749 = vadd.f32 %v1982, %v2748
        %v2750 = vpop.f32.mrf.mxu0
        %v2751 = vadd.f32 %v1984, %v2750
        %2752 = vmatmul.bf16.gmra.mxu0 %v2687
        %v2753 = vpop.f32.mrf.mxu0
        %v2754 = vadd.f32 %v1986, %v2753
        %v2755 = vpop.f32.mrf.mxu0
        %v2756 = vadd.f32 %v1988, %v2755
        %2757 = vmatmul.bf16.gmra.mxu0 %v2690
        %v2758 = vpop.f32.mrf.mxu0
        %v2759 = vadd.f32 %v1990, %v2758
        %v2760 = vpop.f32.mrf.mxu0
        %v2761 = vadd.f32 %v1992, %v2760
        %2762 = vmatmul.bf16.gmra.mxu0 %v2693
        %v2763 = vpop.f32.mrf.mxu0
        %v2764 = vadd.f32 %v1994, %v2763
        %v2765 = vpop.f32.mrf.mxu0
        %v2766 = vadd.f32 %v1996, %v2765
        %2767 = vmatmul.bf16.gmra.mxu0 %v2696
        %v2768 = vpop.f32.mrf.mxu0
        %v2769 = vadd.f32 %v1998, %v2768
        %v2770 = vpop.f32.mrf.mxu0
        %v2771 = vadd.f32 %v2000, %v2770
        %2772 = vmatmul.bf16.gmra.mxu0 %v2699
        %v2773 = vpop.f32.mrf.mxu0
        %v2774 = vadd.f32 %v2002, %v2773
        %v2775 = vpop.f32.mrf.mxu0
        %v2776 = vadd.f32 %v2004, %v2775
        %2777 = vmatmul.bf16.gmra.mxu0 %v2702
        %v2778 = vpop.f32.mrf.mxu0
        %v2779 = vadd.f32 %v2006, %v2778
        %v2780 = vpop.f32.mrf.mxu0
        %v2781 = vadd.f32 %v2008, %v2780
        %2782 = vmatmul.bf16.gmra.mxu0 %v2705
        %v2783 = vpop.f32.mrf.mxu0
        %v2784 = vadd.f32 %v2010, %v2783
        %v2785 = vpop.f32.mrf.mxu0
        %v2786 = vadd.f32 %v2012, %v2785
        %2787 = vmatmul.bf16.gmra.mxu0 %v2708
        %v2788 = vpop.f32.mrf.mxu0
        %v2789 = vadd.f32 %v2014, %v2788
        %v2790 = vpop.f32.mrf.mxu0
        %v2791 = vadd.f32 %v2016, %v2790
        %2792 = vmatmul.bf16.gmra.mxu0 %v2711
        %v2793 = vpop.f32.mrf.mxu0
        %v2794 = vadd.f32 %v2018, %v2793
        %v2795 = vpop.f32.mrf.mxu0
        %v2796 = vadd.f32 %v2020, %v2795
        %2797 = vmatmul.bf16.gmra.mxu0 %v2714
        %v2798 = vpop.f32.mrf.mxu0
        %v2799 = vadd.f32 %v2022, %v2798
        %v2800 = vpop.f32.mrf.mxu0
        %v2801 = vadd.f32 %v2024, %v2800
        %2802 = vmatmul.bf16.gmra.mxu0 %v2717
        %v2803 = vpop.f32.mrf.mxu0
        %v2804 = vadd.f32 %v2026, %v2803
        %v2805 = vpop.f32.mrf.mxu0
        %v2806 = vadd.f32 %v2028, %v2805
        %2807 = vmatmul.bf16.gmra.mxu0 %v2720
        %v2808 = vpop.f32.mrf.mxu0
        %v2809 = vadd.f32 %v2030, %v2808
        %v2810 = vpop.f32.mrf.mxu0
        %v2811 = vadd.f32 %v2032, %v2810
        %2812 = vmatmul.bf16.gmra.mxu0 %v2723
        %v2813 = vpop.f32.mrf.mxu0
        %v2814 = vadd.f32 %v2034, %v2813
        %v2815 = vpop.f32.mrf.mxu0
        %v2816 = vadd.f32 %v2036, %v2815
        %2817 = vmatmul.bf16.gmra.mxu0 %v2726
        %v2818 = vpop.f32.mrf.mxu0
        %v2819 = vadd.f32 %v2038, %v2818
        %v2820 = vpop.f32.mrf.mxu0
        %v2821 = vadd.f32 %v2040, %v2820
        %2822 = vdwg.mxu0
        %2823 = vmatpush.bf16.msra.mxu0 0
        %2824 = vmatpush.bf16.msra.mxu0 0
        %2825 = vmatpush.bf16.msra.mxu0 0
        %2826 = vmatpush.bf16.msra.mxu0 0
        %2827 = vmatpush.bf16.msra.mxu0 0
        %2828 = vmatpush.bf16.msra.mxu0 0
        %2829 = vmatpush.bf16.msra.mxu0 0
        %2830 = vmatpush.bf16.msra.mxu0 %v2732
        %2831 = vmatmul.bf16.gmra.mxu0 %v2681
        %v2832 = vpop.f32.mrf.mxu0
        %v2833 = vadd.f32 %v1979, %v2832
        %v2834 = vpop.f32.mrf.mxu0
        %v2835 = vadd.f32 %v1981, %v2834
        %2836 = vmatmul.bf16.gmra.mxu0 %v2684
        %v2837 = vpop.f32.mrf.mxu0
        %v2838 = vadd.f32 %v1983, %v2837
        %v2839 = vpop.f32.mrf.mxu0
        %v2840 = vadd.f32 %v1985, %v2839
        %2841 = vmatmul.bf16.gmra.mxu0 %v2687
        %v2842 = vpop.f32.mrf.mxu0
        %v2843 = vadd.f32 %v1987, %v2842
        %v2844 = vpop.f32.mrf.mxu0
        %v2845 = vadd.f32 %v1989, %v2844
        %2846 = vmatmul.bf16.gmra.mxu0 %v2690
        %v2847 = vpop.f32.mrf.mxu0
        %v2848 = vadd.f32 %v1991, %v2847
        %v2849 = vpop.f32.mrf.mxu0
        %v2850 = vadd.f32 %v1993, %v2849
        %2851 = vmatmul.bf16.gmra.mxu0 %v2693
        %v2852 = vpop.f32.mrf.mxu0
        %v2853 = vadd.f32 %v1995, %v2852
        %v2854 = vpop.f32.mrf.mxu0
        %v2855 = vadd.f32 %v1997, %v2854
        %2856 = vmatmul.bf16.gmra.mxu0 %v2696
        %v2857 = vpop.f32.mrf.mxu0
        %v2858 = vadd.f32 %v1999, %v2857
        %v2859 = vpop.f32.mrf.mxu0
        %v2860 = vadd.f32 %v2001, %v2859
        %2861 = vmatmul.bf16.gmra.mxu0 %v2699
        %v2862 = vpop.f32.mrf.mxu0
        %v2863 = vadd.f32 %v2003, %v2862
        %v2864 = vpop.f32.mrf.mxu0
        %v2865 = vadd.f32 %v2005, %v2864
        %2866 = vmatmul.bf16.gmra.mxu0 %v2702
        %v2867 = vpop.f32.mrf.mxu0
        %v2868 = vadd.f32 %v2007, %v2867
        %v2869 = vpop.f32.mrf.mxu0
        %v2870 = vadd.f32 %v2009, %v2869
        %2871 = vmatmul.bf16.gmra.mxu0 %v2705
        %v2872 = vpop.f32.mrf.mxu0
        %v2873 = vadd.f32 %v2011, %v2872
        %v2874 = vpop.f32.mrf.mxu0
        %v2875 = vadd.f32 %v2013, %v2874
        %2876 = vmatmul.bf16.gmra.mxu0 %v2708
        %v2877 = vpop.f32.mrf.mxu0
        %v2878 = vadd.f32 %v2015, %v2877
        %v2879 = vpop.f32.mrf.mxu0
        %v2880 = vadd.f32 %v2017, %v2879
        %2881 = vmatmul.bf16.gmra.mxu0 %v2711
        %v2882 = vpop.f32.mrf.mxu0
        %v2883 = vadd.f32 %v2019, %v2882
        %v2884 = vpop.f32.mrf.mxu0
        %v2885 = vadd.f32 %v2021, %v2884
        %2886 = vmatmul.bf16.gmra.mxu0 %v2714
        %v2887 = vpop.f32.mrf.mxu0
        %v2888 = vadd.f32 %v2023, %v2887
        %v2889 = vpop.f32.mrf.mxu0
        %v2890 = vadd.f32 %v2025, %v2889
        %2891 = vmatmul.bf16.gmra.mxu0 %v2717
        %v2892 = vpop.f32.mrf.mxu0
        %v2893 = vadd.f32 %v2027, %v2892
        %v2894 = vpop.f32.mrf.mxu0
        %v2895 = vadd.f32 %v2029, %v2894
        %2896 = vmatmul.bf16.gmra.mxu0 %v2720
        %v2897 = vpop.f32.mrf.mxu0
        %v2898 = vadd.f32 %v2031, %v2897
        %v2899 = vpop.f32.mrf.mxu0
        %v2900 = vadd.f32 %v2033, %v2899
        %2901 = vmatmul.bf16.gmra.mxu0 %v2723
        %v2902 = vpop.f32.mrf.mxu0
        %v2903 = vadd.f32 %v2035, %v2902
        %v2904 = vpop.f32.mrf.mxu0
        %v2905 = vadd.f32 %v2037, %v2904
        %2906 = vmatmul.bf16.gmra.mxu0 %v2726
        %v2907 = vpop.f32.mrf.mxu0
        %v2908 = vadd.f32 %v2039, %v2907
        %v2909 = vpop.f32.mrf.mxu0
        %v2910 = vadd.f32 %v2041, %v2909
        %2911 = vdwg.mxu0
        %v2913 = vunpack.c.l.b16 %v1713
        %v2914 = vunpack.c.h.b16 %v1713
        %v2915 = vpack.c.b16 %v2913, %v2913
        %v2916 = vpack.c.b16 %v2914, %v2914
        %2919 = vxpose.binary.xlu0.c.b16.start [1/16] %v2916, %v2915, 128
        %2920 = vxpose.binary.xlu0.c.b16.cont [2/16] 0, 0, 128
        %2921 = vxpose.binary.xlu0.c.b16.cont [3/16] 0, 0, 128
        %2922 = vxpose.binary.xlu0.c.b16.cont [4/16] 0, 0, 128
        %2923 = vxpose.binary.xlu0.c.b16.cont [5/16] 0, 0, 128
        %2924 = vxpose.binary.xlu0.c.b16.cont [6/16] 0, 0, 128
        %2925 = vxpose.binary.xlu0.c.b16.cont [7/16] 0, 0, 128
        %2926 = vxpose.binary.xlu0.c.b16.end [8/16] 0, 0, 128
        %v2927 = vpop.trf.xlu0
        %v2928 = vpop.trf.xlu0
        %v2929 = vpop.trf.xlu0
        %v2930 = vpop.trf.xlu0
        %v2931 = vpop.trf.xlu0
        %v2932 = vpop.trf.xlu0
        %v2933 = vpop.trf.xlu0
        %v2934 = vpop.trf.xlu0
        %v2935 = vpop.trf.xlu0
        %v2936 = vpop.trf.xlu0
        %v2937 = vpop.trf.xlu0
        %v2938 = vpop.trf.xlu0
        %v2939 = vpop.trf.xlu0
        %v2940 = vpop.trf.xlu0
        %v2941 = vpop.trf.xlu0
        %v2942 = vpop.trf.xlu0
        %v2944 = vunpack.c.l.b16 %v1717
        %v2945 = vunpack.c.h.b16 %v1717
        %v2946 = vpack.c.b16 %v2944, %v2944
        %v2947 = vpack.c.b16 %v2945, %v2945
        %v2949 = vsel %vm2142, %v2927, 0
        %v2952 = vsel %vm2142, %v2929, 0
        %v2955 = vsel %vm2142, %v2931, 0
        %v2958 = vsel %vm2142, %v2933, 0
        %v2961 = vsel %vm2142, %v2935, 0
        %v2964 = vsel %vm2142, %v2937, 0
        %v2967 = vsel %vm2142, %v2939, 0
        %v2970 = vsel %vm2142, %v2941, 0
        %v2973 = vsel %vm2142, %v2928, 0
        %v2976 = vsel %vm2142, %v2930, 0
        %v2979 = vsel %vm2142, %v2932, 0
        %v2982 = vsel %vm2142, %v2934, 0
        %v2985 = vsel %vm2142, %v2936, 0
        %v2988 = vsel %vm2142, %v2938, 0
        %v2991 = vsel %vm2142, %v2940, 0
        %v2994 = vsel %vm2142, %v2942, 0
        %v2997 = vsel %vm2191, %v2946, 0
        %v3000 = vsel %vm2191, %v2947, 0
        %3002 = vmatpush.bf16.msra.mxu0 0
        %3003 = vmatpush.bf16.msra.mxu0 0
        %3004 = vmatpush.bf16.msra.mxu0 0
        %3005 = vmatpush.bf16.msra.mxu0 0
        %3006 = vmatpush.bf16.msra.mxu0 0
        %3007 = vmatpush.bf16.msra.mxu0 0
        %3008 = vmatpush.bf16.msra.mxu0 0
        %3009 = vmatpush.bf16.msra.mxu0 %v2997
        %3010 = vmatmul.bf16.gmra.mxu0 %v2949
        %v3011 = vpop.f32.mrf.mxu0
        %v3012 = vadd.f32 %v2042, %v3011
        %v3013 = vpop.f32.mrf.mxu0
        %v3014 = vadd.f32 %v2044, %v3013
        %3015 = vmatmul.bf16.gmra.mxu0 %v2952
        %v3016 = vpop.f32.mrf.mxu0
        %v3017 = vadd.f32 %v2046, %v3016
        %v3018 = vpop.f32.mrf.mxu0
        %v3019 = vadd.f32 %v2048, %v3018
        %3020 = vmatmul.bf16.gmra.mxu0 %v2955
        %v3021 = vpop.f32.mrf.mxu0
        %v3022 = vadd.f32 %v2050, %v3021
        %v3023 = vpop.f32.mrf.mxu0
        %v3024 = vadd.f32 %v2052, %v3023
        %3025 = vmatmul.bf16.gmra.mxu0 %v2958
        %v3026 = vpop.f32.mrf.mxu0
        %v3027 = vadd.f32 %v2054, %v3026
        %v3028 = vpop.f32.mrf.mxu0
        %v3029 = vadd.f32 %v2056, %v3028
        %3030 = vmatmul.bf16.gmra.mxu0 %v2961
        %v3031 = vpop.f32.mrf.mxu0
        %v3032 = vadd.f32 %v2058, %v3031
        %v3033 = vpop.f32.mrf.mxu0
        %v3034 = vadd.f32 %v2060, %v3033
        %3035 = vmatmul.bf16.gmra.mxu0 %v2964
        %v3036 = vpop.f32.mrf.mxu0
        %v3037 = vadd.f32 %v2062, %v3036
        %v3038 = vpop.f32.mrf.mxu0
        %v3039 = vadd.f32 %v2064, %v3038
        %3040 = vmatmul.bf16.gmra.mxu0 %v2967
        %v3041 = vpop.f32.mrf.mxu0
        %v3042 = vadd.f32 %v2066, %v3041
        %v3043 = vpop.f32.mrf.mxu0
        %v3044 = vadd.f32 %v2068, %v3043
        %3045 = vmatmul.bf16.gmra.mxu0 %v2970
        %v3046 = vpop.f32.mrf.mxu0
        %v3047 = vadd.f32 %v2070, %v3046
        %v3048 = vpop.f32.mrf.mxu0
        %v3049 = vadd.f32 %v2072, %v3048
        %3050 = vmatmul.bf16.gmra.mxu0 %v2973
        %v3051 = vpop.f32.mrf.mxu0
        %v3052 = vadd.f32 %v2074, %v3051
        %v3053 = vpop.f32.mrf.mxu0
        %v3054 = vadd.f32 %v2076, %v3053
        %3055 = vmatmul.bf16.gmra.mxu0 %v2976
        %v3056 = vpop.f32.mrf.mxu0
        %v3057 = vadd.f32 %v2078, %v3056
        %v3058 = vpop.f32.mrf.mxu0
        %v3059 = vadd.f32 %v2080, %v3058
        %3060 = vmatmul.bf16.gmra.mxu0 %v2979
        %v3061 = vpop.f32.mrf.mxu0
        %v3062 = vadd.f32 %v2082, %v3061
        %v3063 = vpop.f32.mrf.mxu0
        %v3064 = vadd.f32 %v2084, %v3063
        %3065 = vmatmul.bf16.gmra.mxu0 %v2982
        %v3066 = vpop.f32.mrf.mxu0
        %v3067 = vadd.f32 %v2086, %v3066
        %v3068 = vpop.f32.mrf.mxu0
        %v3069 = vadd.f32 %v2088, %v3068
        %3070 = vmatmul.bf16.gmra.mxu0 %v2985
        %v3071 = vpop.f32.mrf.mxu0
        %v3072 = vadd.f32 %v2090, %v3071
        %v3073 = vpop.f32.mrf.mxu0
        %v3074 = vadd.f32 %v2092, %v3073
        %3075 = vmatmul.bf16.gmra.mxu0 %v2988
        %v3076 = vpop.f32.mrf.mxu0
        %v3077 = vadd.f32 %v2094, %v3076
        %v3078 = vpop.f32.mrf.mxu0
        %v3079 = vadd.f32 %v2096, %v3078
        %3080 = vmatmul.bf16.gmra.mxu0 %v2991
        %v3081 = vpop.f32.mrf.mxu0
        %v3082 = vadd.f32 %v2098, %v3081
        %v3083 = vpop.f32.mrf.mxu0
        %v3084 = vadd.f32 %v2100, %v3083
        %3085 = vmatmul.bf16.gmra.mxu0 %v2994
        %v3086 = vpop.f32.mrf.mxu0
        %v3087 = vadd.f32 %v2102, %v3086
        %v3088 = vpop.f32.mrf.mxu0
        %v3089 = vadd.f32 %v2104, %v3088
        %3090 = vdwg.mxu0
        %3091 = vmatpush.bf16.msra.mxu0 0
        %3092 = vmatpush.bf16.msra.mxu0 0
        %3093 = vmatpush.bf16.msra.mxu0 0
        %3094 = vmatpush.bf16.msra.mxu0 0
        %3095 = vmatpush.bf16.msra.mxu0 0
        %3096 = vmatpush.bf16.msra.mxu0 0
        %3097 = vmatpush.bf16.msra.mxu0 0
        %3098 = vmatpush.bf16.msra.mxu0 %v3000
        %3099 = vmatmul.bf16.gmra.mxu0 %v2949
        %v3100 = vpop.f32.mrf.mxu0
        %v3101 = vadd.f32 %v2043, %v3100
        %v3102 = vpop.f32.mrf.mxu0
        %v3103 = vadd.f32 %v2045, %v3102
        %3104 = vmatmul.bf16.gmra.mxu0 %v2952
        %v3105 = vpop.f32.mrf.mxu0
        %v3106 = vadd.f32 %v2047, %v3105
        %v3107 = vpop.f32.mrf.mxu0
        %v3108 = vadd.f32 %v2049, %v3107
        %3109 = vmatmul.bf16.gmra.mxu0 %v2955
        %v3110 = vpop.f32.mrf.mxu0
        %v3111 = vadd.f32 %v2051, %v3110
        %v3112 = vpop.f32.mrf.mxu0
        %v3113 = vadd.f32 %v2053, %v3112
        %3114 = vmatmul.bf16.gmra.mxu0 %v2958
        %v3115 = vpop.f32.mrf.mxu0
        %v3116 = vadd.f32 %v2055, %v3115
        %v3117 = vpop.f32.mrf.mxu0
        %v3118 = vadd.f32 %v2057, %v3117
        %3119 = vmatmul.bf16.gmra.mxu0 %v2961
        %v3120 = vpop.f32.mrf.mxu0
        %v3121 = vadd.f32 %v2059, %v3120
        %v3122 = vpop.f32.mrf.mxu0
        %v3123 = vadd.f32 %v2061, %v3122
        %3124 = vmatmul.bf16.gmra.mxu0 %v2964
        %v3125 = vpop.f32.mrf.mxu0
        %v3126 = vadd.f32 %v2063, %v3125
        %v3127 = vpop.f32.mrf.mxu0
        %v3128 = vadd.f32 %v2065, %v3127
        %3129 = vmatmul.bf16.gmra.mxu0 %v2967
        %v3130 = vpop.f32.mrf.mxu0
        %v3131 = vadd.f32 %v2067, %v3130
        %v3132 = vpop.f32.mrf.mxu0
        %v3133 = vadd.f32 %v2069, %v3132
        %3134 = vmatmul.bf16.gmra.mxu0 %v2970
        %v3135 = vpop.f32.mrf.mxu0
        %v3136 = vadd.f32 %v2071, %v3135
        %v3137 = vpop.f32.mrf.mxu0
        %v3138 = vadd.f32 %v2073, %v3137
        %3139 = vmatmul.bf16.gmra.mxu0 %v2973
        %v3140 = vpop.f32.mrf.mxu0
        %v3141 = vadd.f32 %v2075, %v3140
        %v3142 = vpop.f32.mrf.mxu0
        %v3143 = vadd.f32 %v2077, %v3142
        %3144 = vmatmul.bf16.gmra.mxu0 %v2976
        %v3145 = vpop.f32.mrf.mxu0
        %v3146 = vadd.f32 %v2079, %v3145
        %v3147 = vpop.f32.mrf.mxu0
        %v3148 = vadd.f32 %v2081, %v3147
        %3149 = vmatmul.bf16.gmra.mxu0 %v2979
        %v3150 = vpop.f32.mrf.mxu0
        %v3151 = vadd.f32 %v2083, %v3150
        %v3152 = vpop.f32.mrf.mxu0
        %v3153 = vadd.f32 %v2085, %v3152
        %3154 = vmatmul.bf16.gmra.mxu0 %v2982
        %v3155 = vpop.f32.mrf.mxu0
        %v3156 = vadd.f32 %v2087, %v3155
        %v3157 = vpop.f32.mrf.mxu0
        %v3158 = vadd.f32 %v2089, %v3157
        %3159 = vmatmul.bf16.gmra.mxu0 %v2985
        %v3160 = vpop.f32.mrf.mxu0
        %v3161 = vadd.f32 %v2091, %v3160
        %v3162 = vpop.f32.mrf.mxu0
        %v3163 = vadd.f32 %v2093, %v3162
        %3164 = vmatmul.bf16.gmra.mxu0 %v2988
        %v3165 = vpop.f32.mrf.mxu0
        %v3166 = vadd.f32 %v2095, %v3165
        %v3167 = vpop.f32.mrf.mxu0
        %v3168 = vadd.f32 %v2097, %v3167
        %3169 = vmatmul.bf16.gmra.mxu0 %v2991
        %v3170 = vpop.f32.mrf.mxu0
        %v3171 = vadd.f32 %v2099, %v3170
        %v3172 = vpop.f32.mrf.mxu0
        %v3173 = vadd.f32 %v2101, %v3172
        %3174 = vmatmul.bf16.gmra.mxu0 %v2994
        %v3175 = vpop.f32.mrf.mxu0
        %v3176 = vadd.f32 %v2103, %v3175
        %v3177 = vpop.f32.mrf.mxu0
        %v3178 = vadd.f32 %v2105, %v3177
        %3179 = vdwg.mxu0
        %v3180 = vmax.f32 %v2208, %v2297
        %3181 = vmax.xlane.f32.xlu0 %v3180
        %v3182 = vpop.xlane.xlu0 %3181
        %v3183 = vmax.f32 %v2210, %v2299
        %3184 = vmax.xlane.f32.xlu0 %v3183
        %v3185 = vpop.xlane.xlu0 %3184
        %v3186 = vmax.f32 %v2213, %v2302
        %3187 = vmax.xlane.f32.xlu0 %v3186
        %v3188 = vpop.xlane.xlu0 %3187
        %v3189 = vmax.f32 %v2215, %v2304
        %3190 = vmax.xlane.f32.xlu0 %v3189
        %v3191 = vpop.xlane.xlu0 %3190
        %v3192 = vmax.f32 %v2218, %v2307
        %3193 = vmax.xlane.f32.xlu0 %v3192
        %v3194 = vpop.xlane.xlu0 %3193
        %v3195 = vmax.f32 %v2220, %v2309
        %3196 = vmax.xlane.f32.xlu0 %v3195
        %v3197 = vpop.xlane.xlu0 %3196
        %v3198 = vmax.f32 %v2223, %v2312
        %3199 = vmax.xlane.f32.xlu0 %v3198
        %v3200 = vpop.xlane.xlu0 %3199
        %v3201 = vmax.f32 %v2225, %v2314
        %3202 = vmax.xlane.f32.xlu0 %v3201
        %v3203 = vpop.xlane.xlu0 %3202
        %v3204 = vmax.f32 %v2228, %v2317
        %3205 = vmax.xlane.f32.xlu0 %v3204
        %v3206 = vpop.xlane.xlu0 %3205
        %v3207 = vmax.f32 %v2230, %v2319
        %3208 = vmax.xlane.f32.xlu0 %v3207
        %v3209 = vpop.xlane.xlu0 %3208
        %v3210 = vmax.f32 %v2233, %v2322
        %3211 = vmax.xlane.f32.xlu0 %v3210
        %v3212 = vpop.xlane.xlu0 %3211
        %v3213 = vmax.f32 %v2235, %v2324
        %3214 = vmax.xlane.f32.xlu0 %v3213
        %v3215 = vpop.xlane.xlu0 %3214
        %v3216 = vmax.f32 %v2238, %v2327
        %3217 = vmax.xlane.f32.xlu0 %v3216
        %v3218 = vpop.xlane.xlu0 %3217
        %v3219 = vmax.f32 %v2240, %v2329
        %3220 = vmax.xlane.f32.xlu0 %v3219
        %v3221 = vpop.xlane.xlu0 %3220
        %v3222 = vmax.f32 %v2243, %v2332
        %3223 = vmax.xlane.f32.xlu0 %v3222
        %v3224 = vpop.xlane.xlu0 %3223
        %v3225 = vmax.f32 %v2245, %v2334
        %3226 = vmax.xlane.f32.xlu0 %v3225
        %v3227 = vpop.xlane.xlu0 %3226
        %v3228 = vmax.f32 %v2248, %v2337
        %3229 = vmax.xlane.f32.xlu0 %v3228
        %v3230 = vpop.xlane.xlu0 %3229
        %v3231 = vmax.f32 %v2250, %v2339
        %3232 = vmax.xlane.f32.xlu0 %v3231
        %v3233 = vpop.xlane.xlu0 %3232
        %v3234 = vmax.f32 %v2253, %v2342
        %3235 = vmax.xlane.f32.xlu0 %v3234
        %v3236 = vpop.xlane.xlu0 %3235
        %v3237 = vmax.f32 %v2255, %v2344
        %3238 = vmax.xlane.f32.xlu0 %v3237
        %v3239 = vpop.xlane.xlu0 %3238
        %v3240 = vmax.f32 %v2258, %v2347
        %3241 = vmax.xlane.f32.xlu0 %v3240
        %v3242 = vpop.xlane.xlu0 %3241
        %v3243 = vmax.f32 %v2260, %v2349
        %3244 = vmax.xlane.f32.xlu0 %v3243
        %v3245 = vpop.xlane.xlu0 %3244
        %v3246 = vmax.f32 %v2263, %v2352
        %3247 = vmax.xlane.f32.xlu0 %v3246
        %v3248 = vpop.xlane.xlu0 %3247
        %v3249 = vmax.f32 %v2265, %v2354
        %3250 = vmax.xlane.f32.xlu0 %v3249
        %v3251 = vpop.xlane.xlu0 %3250
        %v3252 = vmax.f32 %v2268, %v2357
        %3253 = vmax.xlane.f32.xlu0 %v3252
        %v3254 = vpop.xlane.xlu0 %3253
        %v3255 = vmax.f32 %v2270, %v2359
        %3256 = vmax.xlane.f32.xlu0 %v3255
        %v3257 = vpop.xlane.xlu0 %3256
        %v3258 = vmax.f32 %v2273, %v2362
        %3259 = vmax.xlane.f32.xlu0 %v3258
        %v3260 = vpop.xlane.xlu0 %3259
        %v3261 = vmax.f32 %v2275, %v2364
        %3262 = vmax.xlane.f32.xlu0 %v3261
        %v3263 = vpop.xlane.xlu0 %3262
        %v3264 = vmax.f32 %v2278, %v2367
        %3265 = vmax.xlane.f32.xlu0 %v3264
        %v3266 = vpop.xlane.xlu0 %3265
        %v3267 = vmax.f32 %v2280, %v2369
        %3268 = vmax.xlane.f32.xlu0 %v3267
        %v3269 = vpop.xlane.xlu0 %3268
        %v3270 = vmax.f32 %v2283, %v2372
        %3271 = vmax.xlane.f32.xlu0 %v3270
        %v3272 = vpop.xlane.xlu0 %3271
        %v3273 = vmax.f32 %v2285, %v2374
        %3274 = vmax.xlane.f32.xlu0 %v3273
        %v3275 = vpop.xlane.xlu0 %3274
        %v3276 = vmax.f32 %v2476, %v2565
        %3277 = vmax.xlane.f32.xlu0 %v3276
        %v3278 = vpop.xlane.xlu0 %3277
        %v3279 = vmax.f32 %v2478, %v2567
        %3280 = vmax.xlane.f32.xlu0 %v3279
        %v3281 = vpop.xlane.xlu0 %3280
        %v3282 = vmax.f32 %v2481, %v2570
        %3283 = vmax.xlane.f32.xlu0 %v3282
        %v3284 = vpop.xlane.xlu0 %3283
        %v3285 = vmax.f32 %v2483, %v2572
        %3286 = vmax.xlane.f32.xlu0 %v3285
        %v3287 = vpop.xlane.xlu0 %3286
        %v3288 = vmax.f32 %v2486, %v2575
        %3289 = vmax.xlane.f32.xlu0 %v3288
        %v3290 = vpop.xlane.xlu0 %3289
        %v3291 = vmax.f32 %v2488, %v2577
        %3292 = vmax.xlane.f32.xlu0 %v3291
        %v3293 = vpop.xlane.xlu0 %3292
        %v3294 = vmax.f32 %v2491, %v2580
        %3295 = vmax.xlane.f32.xlu0 %v3294
        %v3296 = vpop.xlane.xlu0 %3295
        %v3297 = vmax.f32 %v2493, %v2582
        %3298 = vmax.xlane.f32.xlu0 %v3297
        %v3299 = vpop.xlane.xlu0 %3298
        %v3300 = vmax.f32 %v2496, %v2585
        %3301 = vmax.xlane.f32.xlu0 %v3300
        %v3302 = vpop.xlane.xlu0 %3301
        %v3303 = vmax.f32 %v2498, %v2587
        %3304 = vmax.xlane.f32.xlu0 %v3303
        %v3305 = vpop.xlane.xlu0 %3304
        %v3306 = vmax.f32 %v2501, %v2590
        %3307 = vmax.xlane.f32.xlu0 %v3306
        %v3308 = vpop.xlane.xlu0 %3307
        %v3309 = vmax.f32 %v2503, %v2592
        %3310 = vmax.xlane.f32.xlu0 %v3309
        %v3311 = vpop.xlane.xlu0 %3310
        %v3312 = vmax.f32 %v2506, %v2595
        %3313 = vmax.xlane.f32.xlu0 %v3312
        %v3314 = vpop.xlane.xlu0 %3313
        %v3315 = vmax.f32 %v2508, %v2597
        %3316 = vmax.xlane.f32.xlu0 %v3315
        %v3317 = vpop.xlane.xlu0 %3316
        %v3318 = vmax.f32 %v2511, %v2600
        %3319 = vmax.xlane.f32.xlu0 %v3318
        %v3320 = vpop.xlane.xlu0 %3319
        %v3321 = vmax.f32 %v2513, %v2602
        %3322 = vmax.xlane.f32.xlu0 %v3321
        %v3323 = vpop.xlane.xlu0 %3322
        %v3324 = vmax.f32 %v2516, %v2605
        %3325 = vmax.xlane.f32.xlu0 %v3324
        %v3326 = vpop.xlane.xlu0 %3325
        %v3327 = vmax.f32 %v2518, %v2607
        %3328 = vmax.xlane.f32.xlu0 %v3327
        %v3329 = vpop.xlane.xlu0 %3328
        %v3330 = vmax.f32 %v2521, %v2610
        %3331 = vmax.xlane.f32.xlu0 %v3330
        %v3332 = vpop.xlane.xlu0 %3331
        %v3333 = vmax.f32 %v2523, %v2612
        %3334 = vmax.xlane.f32.xlu0 %v3333
        %v3335 = vpop.xlane.xlu0 %3334
        %v3336 = vmax.f32 %v2526, %v2615
        %3337 = vmax.xlane.f32.xlu0 %v3336
        %v3338 = vpop.xlane.xlu0 %3337
        %v3339 = vmax.f32 %v2528, %v2617
        %3340 = vmax.xlane.f32.xlu0 %v3339
        %v3341 = vpop.xlane.xlu0 %3340
        %v3342 = vmax.f32 %v2531, %v2620
        %3343 = vmax.xlane.f32.xlu0 %v3342
        %v3344 = vpop.xlane.xlu0 %3343
        %v3345 = vmax.f32 %v2533, %v2622
        %3346 = vmax.xlane.f32.xlu0 %v3345
        %v3347 = vpop.xlane.xlu0 %3346
        %v3348 = vmax.f32 %v2536, %v2625
        %3349 = vmax.xlane.f32.xlu0 %v3348
        %v3350 = vpop.xlane.xlu0 %3349
        %v3351 = vmax.f32 %v2538, %v2627
        %3352 = vmax.xlane.f32.xlu0 %v3351
        %v3353 = vpop.xlane.xlu0 %3352
        %v3354 = vmax.f32 %v2541, %v2630
        %3355 = vmax.xlane.f32.xlu0 %v3354
        %v3356 = vpop.xlane.xlu0 %3355
        %v3357 = vmax.f32 %v2543, %v2632
        %3358 = vmax.xlane.f32.xlu0 %v3357
        %v3359 = vpop.xlane.xlu0 %3358
        %v3360 = vmax.f32 %v2546, %v2635
        %3361 = vmax.xlane.f32.xlu0 %v3360
        %v3362 = vpop.xlane.xlu0 %3361
        %v3363 = vmax.f32 %v2548, %v2637
        %3364 = vmax.xlane.f32.xlu0 %v3363
        %v3365 = vpop.xlane.xlu0 %3364
        %v3366 = vmax.f32 %v2551, %v2640
        %3367 = vmax.xlane.f32.xlu0 %v3366
        %v3368 = vpop.xlane.xlu0 %3367
        %v3369 = vmax.f32 %v2553, %v2642
        %3370 = vmax.xlane.f32.xlu0 %v3369
        %v3371 = vpop.xlane.xlu0 %3370
        %v3372 = vmax.f32 %v2744, %v2833
        %3373 = vmax.xlane.f32.xlu0 %v3372
        %v3374 = vpop.xlane.xlu0 %3373
        %v3375 = vmax.f32 %v2746, %v2835
        %3376 = vmax.xlane.f32.xlu0 %v3375
        %v3377 = vpop.xlane.xlu0 %3376
        %v3378 = vmax.f32 %v2749, %v2838
        %3379 = vmax.xlane.f32.xlu0 %v3378
        %v3380 = vpop.xlane.xlu0 %3379
        %v3381 = vmax.f32 %v2751, %v2840
        %3382 = vmax.xlane.f32.xlu0 %v3381
        %v3383 = vpop.xlane.xlu0 %3382
        %v3384 = vmax.f32 %v2754, %v2843
        %3385 = vmax.xlane.f32.xlu0 %v3384
        %v3386 = vpop.xlane.xlu0 %3385
        %v3387 = vmax.f32 %v2756, %v2845
        %3388 = vmax.xlane.f32.xlu0 %v3387
        %v3389 = vpop.xlane.xlu0 %3388
        %v3390 = vmax.f32 %v2759, %v2848
        %3391 = vmax.xlane.f32.xlu0 %v3390
        %v3392 = vpop.xlane.xlu0 %3391
        %v3393 = vmax.f32 %v2761, %v2850
        %3394 = vmax.xlane.f32.xlu0 %v3393
        %v3395 = vpop.xlane.xlu0 %3394
        %v3396 = vmax.f32 %v2764, %v2853
        %3397 = vmax.xlane.f32.xlu0 %v3396
        %v3398 = vpop.xlane.xlu0 %3397
        %v3399 = vmax.f32 %v2766, %v2855
        %3400 = vmax.xlane.f32.xlu0 %v3399
        %v3401 = vpop.xlane.xlu0 %3400
        %v3402 = vmax.f32 %v2769, %v2858
        %3403 = vmax.xlane.f32.xlu0 %v3402
        %v3404 = vpop.xlane.xlu0 %3403
        %v3405 = vmax.f32 %v2771, %v2860
        %3406 = vmax.xlane.f32.xlu0 %v3405
        %v3407 = vpop.xlane.xlu0 %3406
        %v3408 = vmax.f32 %v2774, %v2863
        %3409 = vmax.xlane.f32.xlu0 %v3408
        %v3410 = vpop.xlane.xlu0 %3409
        %v3411 = vmax.f32 %v2776, %v2865
        %3412 = vmax.xlane.f32.xlu0 %v3411
        %v3413 = vpop.xlane.xlu0 %3412
        %v3414 = vmax.f32 %v2779, %v2868
        %3415 = vmax.xlane.f32.xlu0 %v3414
        %v3416 = vpop.xlane.xlu0 %3415
        %v3417 = vmax.f32 %v2781, %v2870
        %3418 = vmax.xlane.f32.xlu0 %v3417
        %v3419 = vpop.xlane.xlu0 %3418
        %v3420 = vmax.f32 %v2784, %v2873
        %3421 = vmax.xlane.f32.xlu0 %v3420
        %v3422 = vpop.xlane.xlu0 %3421
        %v3423 = vmax.f32 %v2786, %v2875
        %3424 = vmax.xlane.f32.xlu0 %v3423
        %v3425 = vpop.xlane.xlu0 %3424
        %v3426 = vmax.f32 %v2789, %v2878
        %3427 = vmax.xlane.f32.xlu0 %v3426
        %v3428 = vpop.xlane.xlu0 %3427
        %v3429 = vmax.f32 %v2791, %v2880
        %3430 = vmax.xlane.f32.xlu0 %v3429
        %v3431 = vpop.xlane.xlu0 %3430
        %v3432 = vmax.f32 %v2794, %v2883
        %3433 = vmax.xlane.f32.xlu0 %v3432
        %v3434 = vpop.xlane.xlu0 %3433
        %v3435 = vmax.f32 %v2796, %v2885
        %3436 = vmax.xlane.f32.xlu0 %v3435
        %v3437 = vpop.xlane.xlu0 %3436
        %v3438 = vmax.f32 %v2799, %v2888
        %3439 = vmax.xlane.f32.xlu0 %v3438
        %v3440 = vpop.xlane.xlu0 %3439
        %v3441 = vmax.f32 %v2801, %v2890
        %3442 = vmax.xlane.f32.xlu0 %v3441
        %v3443 = vpop.xlane.xlu0 %3442
        %v3444 = vmax.f32 %v2804, %v2893
        %3445 = vmax.xlane.f32.xlu0 %v3444
        %v3446 = vpop.xlane.xlu0 %3445
        %v3447 = vmax.f32 %v2806, %v2895
        %3448 = vmax.xlane.f32.xlu0 %v3447
        %v3449 = vpop.xlane.xlu0 %3448
        %v3450 = vmax.f32 %v2809, %v2898
        %3451 = vmax.xlane.f32.xlu0 %v3450
        %v3452 = vpop.xlane.xlu0 %3451
        %v3453 = vmax.f32 %v2811, %v2900
        %3454 = vmax.xlane.f32.xlu0 %v3453
        %v3455 = vpop.xlane.xlu0 %3454
        %v3456 = vmax.f32 %v2814, %v2903
        %3457 = vmax.xlane.f32.xlu0 %v3456
        %v3458 = vpop.xlane.xlu0 %3457
        %v3459 = vmax.f32 %v2816, %v2905
        %3460 = vmax.xlane.f32.xlu0 %v3459
        %v3461 = vpop.xlane.xlu0 %3460
        %v3462 = vmax.f32 %v2819, %v2908
        %3463 = vmax.xlane.f32.xlu0 %v3462
        %v3464 = vpop.xlane.xlu0 %3463
        %v3465 = vmax.f32 %v2821, %v2910
        %3466 = vmax.xlane.f32.xlu0 %v3465
        %v3467 = vpop.xlane.xlu0 %3466
        %v3468 = vmax.f32 %v3012, %v3101
        %3469 = vmax.xlane.f32.xlu0 %v3468
        %v3470 = vpop.xlane.xlu0 %3469
        %v3471 = vmax.f32 %v3014, %v3103
        %3472 = vmax.xlane.f32.xlu0 %v3471
        %v3473 = vpop.xlane.xlu0 %3472
        %v3474 = vmax.f32 %v3017, %v3106
        %3475 = vmax.xlane.f32.xlu0 %v3474
        %v3476 = vpop.xlane.xlu0 %3475
        %v3477 = vmax.f32 %v3019, %v3108
        %3478 = vmax.xlane.f32.xlu0 %v3477
        %v3479 = vpop.xlane.xlu0 %3478
        %v3480 = vmax.f32 %v3022, %v3111
        %3481 = vmax.xlane.f32.xlu0 %v3480
        %v3482 = vpop.xlane.xlu0 %3481
        %v3483 = vmax.f32 %v3024, %v3113
        %3484 = vmax.xlane.f32.xlu0 %v3483
        %v3485 = vpop.xlane.xlu0 %3484
        %v3486 = vmax.f32 %v3027, %v3116
        %3487 = vmax.xlane.f32.xlu0 %v3486
        %v3488 = vpop.xlane.xlu0 %3487
        %v3489 = vmax.f32 %v3029, %v3118
        %3490 = vmax.xlane.f32.xlu0 %v3489
        %v3491 = vpop.xlane.xlu0 %3490
        %v3492 = vmax.f32 %v3032, %v3121
        %3493 = vmax.xlane.f32.xlu0 %v3492
        %v3494 = vpop.xlane.xlu0 %3493
        %v3495 = vmax.f32 %v3034, %v3123
        %3496 = vmax.xlane.f32.xlu0 %v3495
        %v3497 = vpop.xlane.xlu0 %3496
        %v3498 = vmax.f32 %v3037, %v3126
        %3499 = vmax.xlane.f32.xlu0 %v3498
        %v3500 = vpop.xlane.xlu0 %3499
        %v3501 = vmax.f32 %v3039, %v3128
        %3502 = vmax.xlane.f32.xlu0 %v3501
        %v3503 = vpop.xlane.xlu0 %3502
        %v3504 = vmax.f32 %v3042, %v3131
        %3505 = vmax.xlane.f32.xlu0 %v3504
        %v3506 = vpop.xlane.xlu0 %3505
        %v3507 = vmax.f32 %v3044, %v3133
        %3508 = vmax.xlane.f32.xlu0 %v3507
        %v3509 = vpop.xlane.xlu0 %3508
        %v3510 = vmax.f32 %v3047, %v3136
        %3511 = vmax.xlane.f32.xlu0 %v3510
        %v3512 = vpop.xlane.xlu0 %3511
        %v3513 = vmax.f32 %v3049, %v3138
        %3514 = vmax.xlane.f32.xlu0 %v3513
        %v3515 = vpop.xlane.xlu0 %3514
        %v3516 = vmax.f32 %v3052, %v3141
        %3517 = vmax.xlane.f32.xlu0 %v3516
        %v3518 = vpop.xlane.xlu0 %3517
        %v3519 = vmax.f32 %v3054, %v3143
        %3520 = vmax.xlane.f32.xlu0 %v3519
        %v3521 = vpop.xlane.xlu0 %3520
        %v3522 = vmax.f32 %v3057, %v3146
        %3523 = vmax.xlane.f32.xlu0 %v3522
        %v3524 = vpop.xlane.xlu0 %3523
        %v3525 = vmax.f32 %v3059, %v3148
        %3526 = vmax.xlane.f32.xlu0 %v3525
        %v3527 = vpop.xlane.xlu0 %3526
        %v3528 = vmax.f32 %v3062, %v3151
        %3529 = vmax.xlane.f32.xlu0 %v3528
        %v3530 = vpop.xlane.xlu0 %3529
        %v3531 = vmax.f32 %v3064, %v3153
        %3532 = vmax.xlane.f32.xlu0 %v3531
        %v3533 = vpop.xlane.xlu0 %3532
        %v3534 = vmax.f32 %v3067, %v3156
        %3535 = vmax.xlane.f32.xlu0 %v3534
        %v3536 = vpop.xlane.xlu0 %3535
        %v3537 = vmax.f32 %v3069, %v3158
        %3538 = vmax.xlane.f32.xlu0 %v3537
        %v3539 = vpop.xlane.xlu0 %3538
        %v3540 = vmax.f32 %v3072, %v3161
        %3541 = vmax.xlane.f32.xlu0 %v3540
        %v3542 = vpop.xlane.xlu0 %3541
        %v3543 = vmax.f32 %v3074, %v3163
        %3544 = vmax.xlane.f32.xlu0 %v3543
        %v3545 = vpop.xlane.xlu0 %3544
        %v3546 = vmax.f32 %v3077, %v3166
        %3547 = vmax.xlane.f32.xlu0 %v3546
        %v3548 = vpop.xlane.xlu0 %3547
        %v3549 = vmax.f32 %v3079, %v3168
        %3550 = vmax.xlane.f32.xlu0 %v3549
        %v3551 = vpop.xlane.xlu0 %3550
        %v3552 = vmax.f32 %v3082, %v3171
        %3553 = vmax.xlane.f32.xlu0 %v3552
        %v3554 = vpop.xlane.xlu0 %3553
        %v3555 = vmax.f32 %v3084, %v3173
        %3556 = vmax.xlane.f32.xlu0 %v3555
        %v3557 = vpop.xlane.xlu0 %3556
        %v3558 = vmax.f32 %v3087, %v3176
        %3559 = vmax.xlane.f32.xlu0 %v3558
        %v3560 = vpop.xlane.xlu0 %3559
        %v3561 = vmax.f32 %v3089, %v3178
        %3562 = vmax.xlane.f32.xlu0 %v3561
        %v3563 = vpop.xlane.xlu0 %3562
        %v3564 = vsub.f32 %v2208, %v3182
        %v3565 = vsub.f32 %v2297, %v3182
        %v3566 = vsub.f32 %v2210, %v3185
        %v3567 = vsub.f32 %v2299, %v3185
        %v3568 = vsub.f32 %v2213, %v3188
        %v3569 = vsub.f32 %v2302, %v3188
        %v3570 = vsub.f32 %v2215, %v3191
        %v3571 = vsub.f32 %v2304, %v3191
        %v3572 = vsub.f32 %v2218, %v3194
        %v3573 = vsub.f32 %v2307, %v3194
        %v3574 = vsub.f32 %v2220, %v3197
        %v3575 = vsub.f32 %v2309, %v3197
        %v3576 = vsub.f32 %v2223, %v3200
        %v3577 = vsub.f32 %v2312, %v3200
        %v3578 = vsub.f32 %v2225, %v3203
        %v3579 = vsub.f32 %v2314, %v3203
        %v3580 = vsub.f32 %v2228, %v3206
        %v3581 = vsub.f32 %v2317, %v3206
        %v3582 = vsub.f32 %v2230, %v3209
        %v3583 = vsub.f32 %v2319, %v3209
        %v3584 = vsub.f32 %v2233, %v3212
        %v3585 = vsub.f32 %v2322, %v3212
        %v3586 = vsub.f32 %v2235, %v3215
        %v3587 = vsub.f32 %v2324, %v3215
        %v3588 = vsub.f32 %v2238, %v3218
        %v3589 = vsub.f32 %v2327, %v3218
        %v3590 = vsub.f32 %v2240, %v3221
        %v3591 = vsub.f32 %v2329, %v3221
        %v3592 = vsub.f32 %v2243, %v3224
        %v3593 = vsub.f32 %v2332, %v3224
        %v3594 = vsub.f32 %v2245, %v3227
        %v3595 = vsub.f32 %v2334, %v3227
        %v3596 = vsub.f32 %v2248, %v3230
        %v3597 = vsub.f32 %v2337, %v3230
        %v3598 = vsub.f32 %v2250, %v3233
        %v3599 = vsub.f32 %v2339, %v3233
        %v3600 = vsub.f32 %v2253, %v3236
        %v3601 = vsub.f32 %v2342, %v3236
        %v3602 = vsub.f32 %v2255, %v3239
        %v3603 = vsub.f32 %v2344, %v3239
        %v3604 = vsub.f32 %v2258, %v3242
        %v3605 = vsub.f32 %v2347, %v3242
        %v3606 = vsub.f32 %v2260, %v3245
        %v3607 = vsub.f32 %v2349, %v3245
        %v3608 = vsub.f32 %v2263, %v3248
        %v3609 = vsub.f32 %v2352, %v3248
        %v3610 = vsub.f32 %v2265, %v3251
        %v3611 = vsub.f32 %v2354, %v3251
        %v3612 = vsub.f32 %v2268, %v3254
        %v3613 = vsub.f32 %v2357, %v3254
        %v3614 = vsub.f32 %v2270, %v3257
        %v3615 = vsub.f32 %v2359, %v3257
        %v3616 = vsub.f32 %v2273, %v3260
        %v3617 = vsub.f32 %v2362, %v3260
        %v3618 = vsub.f32 %v2275, %v3263
        %v3619 = vsub.f32 %v2364, %v3263
        %v3620 = vsub.f32 %v2278, %v3266
        %v3621 = vsub.f32 %v2367, %v3266
        %v3622 = vsub.f32 %v2280, %v3269
        %v3623 = vsub.f32 %v2369, %v3269
        %v3624 = vsub.f32 %v2283, %v3272
        %v3625 = vsub.f32 %v2372, %v3272
        %v3626 = vsub.f32 %v2285, %v3275
        %v3627 = vsub.f32 %v2374, %v3275
        %v3628 = vsub.f32 %v2476, %v3278
        %v3629 = vsub.f32 %v2565, %v3278
        %v3630 = vsub.f32 %v2478, %v3281
        %v3631 = vsub.f32 %v2567, %v3281
        %v3632 = vsub.f32 %v2481, %v3284
        %v3633 = vsub.f32 %v2570, %v3284
        %v3634 = vsub.f32 %v2483, %v3287
        %v3635 = vsub.f32 %v2572, %v3287
        %v3636 = vsub.f32 %v2486, %v3290
        %v3637 = vsub.f32 %v2575, %v3290
        %v3638 = vsub.f32 %v2488, %v3293
        %v3639 = vsub.f32 %v2577, %v3293
        %v3640 = vsub.f32 %v2491, %v3296
        %v3641 = vsub.f32 %v2580, %v3296
        %v3642 = vsub.f32 %v2493, %v3299
        %v3643 = vsub.f32 %v2582, %v3299
        %v3644 = vsub.f32 %v2496, %v3302
        %v3645 = vsub.f32 %v2585, %v3302
        %v3646 = vsub.f32 %v2498, %v3305
        %v3647 = vsub.f32 %v2587, %v3305
        %v3648 = vsub.f32 %v2501, %v3308
        %v3649 = vsub.f32 %v2590, %v3308
        %v3650 = vsub.f32 %v2503, %v3311
        %v3651 = vsub.f32 %v2592, %v3311
        %v3652 = vsub.f32 %v2506, %v3314
        %v3653 = vsub.f32 %v2595, %v3314
        %v3654 = vsub.f32 %v2508, %v3317
        %v3655 = vsub.f32 %v2597, %v3317
        %v3656 = vsub.f32 %v2511, %v3320
        %v3657 = vsub.f32 %v2600, %v3320
        %v3658 = vsub.f32 %v2513, %v3323
        %v3659 = vsub.f32 %v2602, %v3323
        %v3660 = vsub.f32 %v2516, %v3326
        %v3661 = vsub.f32 %v2605, %v3326
        %v3662 = vsub.f32 %v2518, %v3329
        %v3663 = vsub.f32 %v2607, %v3329
        %v3664 = vsub.f32 %v2521, %v3332
        %v3665 = vsub.f32 %v2610, %v3332
        %v3666 = vsub.f32 %v2523, %v3335
        %v3667 = vsub.f32 %v2612, %v3335
        %v3668 = vsub.f32 %v2526, %v3338
        %v3669 = vsub.f32 %v2615, %v3338
        %v3670 = vsub.f32 %v2528, %v3341
        %v3671 = vsub.f32 %v2617, %v3341
        %v3672 = vsub.f32 %v2531, %v3344
        %v3673 = vsub.f32 %v2620, %v3344
        %v3674 = vsub.f32 %v2533, %v3347
        %v3675 = vsub.f32 %v2622, %v3347
        %v3676 = vsub.f32 %v2536, %v3350
        %v3677 = vsub.f32 %v2625, %v3350
        %v3678 = vsub.f32 %v2538, %v3353
        %v3679 = vsub.f32 %v2627, %v3353
        %v3680 = vsub.f32 %v2541, %v3356
        %v3681 = vsub.f32 %v2630, %v3356
        %v3682 = vsub.f32 %v2543, %v3359
        %v3683 = vsub.f32 %v2632, %v3359
        %v3684 = vsub.f32 %v2546, %v3362
        %v3685 = vsub.f32 %v2635, %v3362
        %v3686 = vsub.f32 %v2548, %v3365
        %v3687 = vsub.f32 %v2637, %v3365
        %v3688 = vsub.f32 %v2551, %v3368
        %v3689 = vsub.f32 %v2640, %v3368
        %v3690 = vsub.f32 %v2553, %v3371
        %v3691 = vsub.f32 %v2642, %v3371
        %v3692 = vsub.f32 %v2744, %v3374
        %v3693 = vsub.f32 %v2833, %v3374
        %v3694 = vsub.f32 %v2746, %v3377
        %v3695 = vsub.f32 %v2835, %v3377
        %v3696 = vsub.f32 %v2749, %v3380
        %v3697 = vsub.f32 %v2838, %v3380
        %v3698 = vsub.f32 %v2751, %v3383
        %v3699 = vsub.f32 %v2840, %v3383
        %v3700 = vsub.f32 %v2754, %v3386
        %v3701 = vsub.f32 %v2843, %v3386
        %v3702 = vsub.f32 %v2756, %v3389
        %v3703 = vsub.f32 %v2845, %v3389
        %v3704 = vsub.f32 %v2759, %v3392
        %v3705 = vsub.f32 %v2848, %v3392
        %v3706 = vsub.f32 %v2761, %v3395
        %v3707 = vsub.f32 %v2850, %v3395
        %v3708 = vsub.f32 %v2764, %v3398
        %v3709 = vsub.f32 %v2853, %v3398
        %v3710 = vsub.f32 %v2766, %v3401
        %v3711 = vsub.f32 %v2855, %v3401
        %v3712 = vsub.f32 %v2769, %v3404
        %v3713 = vsub.f32 %v2858, %v3404
        %v3714 = vsub.f32 %v2771, %v3407
        %v3715 = vsub.f32 %v2860, %v3407
        %v3716 = vsub.f32 %v2774, %v3410
        %v3717 = vsub.f32 %v2863, %v3410
        %v3718 = vsub.f32 %v2776, %v3413
        %v3719 = vsub.f32 %v2865, %v3413
        %v3720 = vsub.f32 %v2779, %v3416
        %v3721 = vsub.f32 %v2868, %v3416
        %v3722 = vsub.f32 %v2781, %v3419
        %v3723 = vsub.f32 %v2870, %v3419
        %v3724 = vsub.f32 %v2784, %v3422
        %v3725 = vsub.f32 %v2873, %v3422
        %v3726 = vsub.f32 %v2786, %v3425
        %v3727 = vsub.f32 %v2875, %v3425
        %v3728 = vsub.f32 %v2789, %v3428
        %v3729 = vsub.f32 %v2878, %v3428
        %v3730 = vsub.f32 %v2791, %v3431
        %v3731 = vsub.f32 %v2880, %v3431
        %v3732 = vsub.f32 %v2794, %v3434
        %v3733 = vsub.f32 %v2883, %v3434
        %v3734 = vsub.f32 %v2796, %v3437
        %v3735 = vsub.f32 %v2885, %v3437
        %v3736 = vsub.f32 %v2799, %v3440
        %v3737 = vsub.f32 %v2888, %v3440
        %v3738 = vsub.f32 %v2801, %v3443
        %v3739 = vsub.f32 %v2890, %v3443
        %v3740 = vsub.f32 %v2804, %v3446
        %v3741 = vsub.f32 %v2893, %v3446
        %v3742 = vsub.f32 %v2806, %v3449
        %v3743 = vsub.f32 %v2895, %v3449
        %v3744 = vsub.f32 %v2809, %v3452
        %v3745 = vsub.f32 %v2898, %v3452
        %v3746 = vsub.f32 %v2811, %v3455
        %v3747 = vsub.f32 %v2900, %v3455
        %v3748 = vsub.f32 %v2814, %v3458
        %v3749 = vsub.f32 %v2903, %v3458
        %v3750 = vsub.f32 %v2816, %v3461
        %v3751 = vsub.f32 %v2905, %v3461
        %v3752 = vsub.f32 %v2819, %v3464
        %v3753 = vsub.f32 %v2908, %v3464
        %v3754 = vsub.f32 %v2821, %v3467
        %v3755 = vsub.f32 %v2910, %v3467
        %v3756 = vsub.f32 %v3012, %v3470
        %v3757 = vsub.f32 %v3101, %v3470
        %v3758 = vsub.f32 %v3014, %v3473
        %v3759 = vsub.f32 %v3103, %v3473
        %v3760 = vsub.f32 %v3017, %v3476
        %v3761 = vsub.f32 %v3106, %v3476
        %v3762 = vsub.f32 %v3019, %v3479
        %v3763 = vsub.f32 %v3108, %v3479
        %v3764 = vsub.f32 %v3022, %v3482
        %v3765 = vsub.f32 %v3111, %v3482
        %v3766 = vsub.f32 %v3024, %v3485
        %v3767 = vsub.f32 %v3113, %v3485
        %v3768 = vsub.f32 %v3027, %v3488
        %v3769 = vsub.f32 %v3116, %v3488
        %v3770 = vsub.f32 %v3029, %v3491
        %v3771 = vsub.f32 %v3118, %v3491
        %v3772 = vsub.f32 %v3032, %v3494
        %v3773 = vsub.f32 %v3121, %v3494
        %v3774 = vsub.f32 %v3034, %v3497
        %v3775 = vsub.f32 %v3123, %v3497
        %v3776 = vsub.f32 %v3037, %v3500
        %v3777 = vsub.f32 %v3126, %v3500
        %v3778 = vsub.f32 %v3039, %v3503
        %v3779 = vsub.f32 %v3128, %v3503
        %v3780 = vsub.f32 %v3042, %v3506
        %v3781 = vsub.f32 %v3131, %v3506
        %v3782 = vsub.f32 %v3044, %v3509
        %v3783 = vsub.f32 %v3133, %v3509
        %v3784 = vsub.f32 %v3047, %v3512
        %v3785 = vsub.f32 %v3136, %v3512
        %v3786 = vsub.f32 %v3049, %v3515
        %v3787 = vsub.f32 %v3138, %v3515
        %v3788 = vsub.f32 %v3052, %v3518
        %v3789 = vsub.f32 %v3141, %v3518
        %v3790 = vsub.f32 %v3054, %v3521
        %v3791 = vsub.f32 %v3143, %v3521
        %v3792 = vsub.f32 %v3057, %v3524
        %v3793 = vsub.f32 %v3146, %v3524
        %v3794 = vsub.f32 %v3059, %v3527
        %v3795 = vsub.f32 %v3148, %v3527
        %v3796 = vsub.f32 %v3062, %v3530
        %v3797 = vsub.f32 %v3151, %v3530
        %v3798 = vsub.f32 %v3064, %v3533
        %v3799 = vsub.f32 %v3153, %v3533
        %v3800 = vsub.f32 %v3067, %v3536
        %v3801 = vsub.f32 %v3156, %v3536
        %v3802 = vsub.f32 %v3069, %v3539
        %v3803 = vsub.f32 %v3158, %v3539
        %v3804 = vsub.f32 %v3072, %v3542
        %v3805 = vsub.f32 %v3161, %v3542
        %v3806 = vsub.f32 %v3074, %v3545
        %v3807 = vsub.f32 %v3163, %v3545
        %v3808 = vsub.f32 %v3077, %v3548
        %v3809 = vsub.f32 %v3166, %v3548
        %v3810 = vsub.f32 %v3079, %v3551
        %v3811 = vsub.f32 %v3168, %v3551
        %v3812 = vsub.f32 %v3082, %v3554
        %v3813 = vsub.f32 %v3171, %v3554
        %v3814 = vsub.f32 %v3084, %v3557
        %v3815 = vsub.f32 %v3173, %v3557
        %v3816 = vsub.f32 %v3087, %v3560
        %v3817 = vsub.f32 %v3176, %v3560
        %v3818 = vsub.f32 %v3089, %v3563
        %v3819 = vsub.f32 %v3178, %v3563
        %v3820 = vmul.f32 %v3564, 1.442695
        %v3821 = vpow.pop %v3820
        %v3822 = vmul.f32 %v3565, 1.442695
        %v3823 = vpow.pop %v3822
        %v3824 = vmul.f32 %v3566, 1.442695
        %v3825 = vpow.pop %v3824
        %v3826 = vmul.f32 %v3567, 1.442695
        %v3827 = vpow.pop %v3826
        %v3828 = vmul.f32 %v3568, 1.442695
        %v3829 = vpow.pop %v3828
        %v3830 = vmul.f32 %v3569, 1.442695
        %v3831 = vpow.pop %v3830
        %v3832 = vmul.f32 %v3570, 1.442695
        %v3833 = vpow.pop %v3832
        %v3834 = vmul.f32 %v3571, 1.442695
        %v3835 = vpow.pop %v3834
        %v3836 = vmul.f32 %v3572, 1.442695
        %v3837 = vpow.pop %v3836
        %v3838 = vmul.f32 %v3573, 1.442695
        %v3839 = vpow.pop %v3838
        %v3840 = vmul.f32 %v3574, 1.442695
        %v3841 = vpow.pop %v3840
        %v3842 = vmul.f32 %v3575, 1.442695
        %v3843 = vpow.pop %v3842
        %v3844 = vmul.f32 %v3576, 1.442695
        %v3845 = vpow.pop %v3844
        %v3846 = vmul.f32 %v3577, 1.442695
        %v3847 = vpow.pop %v3846
        %v3848 = vmul.f32 %v3578, 1.442695
        %v3849 = vpow.pop %v3848
        %v3850 = vmul.f32 %v3579, 1.442695
        %v3851 = vpow.pop %v3850
        %v3852 = vmul.f32 %v3580, 1.442695
        %v3853 = vpow.pop %v3852
        %v3854 = vmul.f32 %v3581, 1.442695
        %v3855 = vpow.pop %v3854
        %v3856 = vmul.f32 %v3582, 1.442695
        %v3857 = vpow.pop %v3856
        %v3858 = vmul.f32 %v3583, 1.442695
        %v3859 = vpow.pop %v3858
        %v3860 = vmul.f32 %v3584, 1.442695
        %v3861 = vpow.pop %v3860
        %v3862 = vmul.f32 %v3585, 1.442695
        %v3863 = vpow.pop %v3862
        %v3864 = vmul.f32 %v3586, 1.442695
        %v3865 = vpow.pop %v3864
        %v3866 = vmul.f32 %v3587, 1.442695
        %v3867 = vpow.pop %v3866
        %v3868 = vmul.f32 %v3588, 1.442695
        %v3869 = vpow.pop %v3868
        %v3870 = vmul.f32 %v3589, 1.442695
        %v3871 = vpow.pop %v3870
        %v3872 = vmul.f32 %v3590, 1.442695
        %v3873 = vpow.pop %v3872
        %v3874 = vmul.f32 %v3591, 1.442695
        %v3875 = vpow.pop %v3874
        %v3876 = vmul.f32 %v3592, 1.442695
        %v3877 = vpow.pop %v3876
        %v3878 = vmul.f32 %v3593, 1.442695
        %v3879 = vpow.pop %v3878
        %v3880 = vmul.f32 %v3594, 1.442695
        %v3881 = vpow.pop %v3880
        %v3882 = vmul.f32 %v3595, 1.442695
        %v3883 = vpow.pop %v3882
        %v3884 = vmul.f32 %v3596, 1.442695
        %v3885 = vpow.pop %v3884
        %v3886 = vmul.f32 %v3597, 1.442695
        %v3887 = vpow.pop %v3886
        %v3888 = vmul.f32 %v3598, 1.442695
        %v3889 = vpow.pop %v3888
        %v3890 = vmul.f32 %v3599, 1.442695
        %v3891 = vpow.pop %v3890
        %v3892 = vmul.f32 %v3600, 1.442695
        %v3893 = vpow.pop %v3892
        %v3894 = vmul.f32 %v3601, 1.442695
        %v3895 = vpow.pop %v3894
        %v3896 = vmul.f32 %v3602, 1.442695
        %v3897 = vpow.pop %v3896
        %v3898 = vmul.f32 %v3603, 1.442695
        %v3899 = vpow.pop %v3898
        %v3900 = vmul.f32 %v3604, 1.442695
        %v3901 = vpow.pop %v3900
        %v3902 = vmul.f32 %v3605, 1.442695
        %v3903 = vpow.pop %v3902
        %v3904 = vmul.f32 %v3606, 1.442695
        %v3905 = vpow.pop %v3904
        %v3906 = vmul.f32 %v3607, 1.442695
        %v3907 = vpow.pop %v3906
        %v3908 = vmul.f32 %v3608, 1.442695
        %v3909 = vpow.pop %v3908
        %v3910 = vmul.f32 %v3609, 1.442695
        %v3911 = vpow.pop %v3910
        %v3912 = vmul.f32 %v3610, 1.442695
        %v3913 = vpow.pop %v3912
        %v3914 = vmul.f32 %v3611, 1.442695
        %v3915 = vpow.pop %v3914
        %v3916 = vmul.f32 %v3612, 1.442695
        %v3917 = vpow.pop %v3916
        %v3918 = vmul.f32 %v3613, 1.442695
        %v3919 = vpow.pop %v3918
        %v3920 = vmul.f32 %v3614, 1.442695
        %v3921 = vpow.pop %v3920
        %v3922 = vmul.f32 %v3615, 1.442695
        %v3923 = vpow.pop %v3922
        %v3924 = vmul.f32 %v3616, 1.442695
        %v3925 = vpow.pop %v3924
        %v3926 = vmul.f32 %v3617, 1.442695
        %v3927 = vpow.pop %v3926
        %v3928 = vmul.f32 %v3618, 1.442695
        %v3929 = vpow.pop %v3928
        %v3930 = vmul.f32 %v3619, 1.442695
        %v3931 = vpow.pop %v3930
        %v3932 = vmul.f32 %v3620, 1.442695
        %v3933 = vpow.pop %v3932
        %v3934 = vmul.f32 %v3621, 1.442695
        %v3935 = vpow.pop %v3934
        %v3936 = vmul.f32 %v3622, 1.442695
        %v3937 = vpow.pop %v3936
        %v3938 = vmul.f32 %v3623, 1.442695
        %v3939 = vpow.pop %v3938
        %v3940 = vmul.f32 %v3624, 1.442695
        %v3941 = vpow.pop %v3940
        %v3942 = vmul.f32 %v3625, 1.442695
        %v3943 = vpow.pop %v3942
        %v3944 = vmul.f32 %v3626, 1.442695
        %v3945 = vpow.pop %v3944
        %v3946 = vmul.f32 %v3627, 1.442695
        %v3947 = vpow.pop %v3946
        %v3948 = vmul.f32 %v3628, 1.442695
        %v3949 = vpow.pop %v3948
        %v3950 = vmul.f32 %v3629, 1.442695
        %v3951 = vpow.pop %v3950
        %v3952 = vmul.f32 %v3630, 1.442695
        %v3953 = vpow.pop %v3952
        %v3954 = vmul.f32 %v3631, 1.442695
        %v3955 = vpow.pop %v3954
        %v3956 = vmul.f32 %v3632, 1.442695
        %v3957 = vpow.pop %v3956
        %v3958 = vmul.f32 %v3633, 1.442695
        %v3959 = vpow.pop %v3958
        %v3960 = vmul.f32 %v3634, 1.442695
        %v3961 = vpow.pop %v3960
        %v3962 = vmul.f32 %v3635, 1.442695
        %v3963 = vpow.pop %v3962
        %v3964 = vmul.f32 %v3636, 1.442695
        %v3965 = vpow.pop %v3964
        %v3966 = vmul.f32 %v3637, 1.442695
        %v3967 = vpow.pop %v3966
        %v3968 = vmul.f32 %v3638, 1.442695
        %v3969 = vpow.pop %v3968
        %v3970 = vmul.f32 %v3639, 1.442695
        %v3971 = vpow.pop %v3970
        %v3972 = vmul.f32 %v3640, 1.442695
        %v3973 = vpow.pop %v3972
        %v3974 = vmul.f32 %v3641, 1.442695
        %v3975 = vpow.pop %v3974
        %v3976 = vmul.f32 %v3642, 1.442695
        %v3977 = vpow.pop %v3976
        %v3978 = vmul.f32 %v3643, 1.442695
        %v3979 = vpow.pop %v3978
        %v3980 = vmul.f32 %v3644, 1.442695
        %v3981 = vpow.pop %v3980
        %v3982 = vmul.f32 %v3645, 1.442695
        %v3983 = vpow.pop %v3982
        %v3984 = vmul.f32 %v3646, 1.442695
        %v3985 = vpow.pop %v3984
        %v3986 = vmul.f32 %v3647, 1.442695
        %v3987 = vpow.pop %v3986
        %v3988 = vmul.f32 %v3648, 1.442695
        %v3989 = vpow.pop %v3988
        %v3990 = vmul.f32 %v3649, 1.442695
        %v3991 = vpow.pop %v3990
        %v3992 = vmul.f32 %v3650, 1.442695
        %v3993 = vpow.pop %v3992
        %v3994 = vmul.f32 %v3651, 1.442695
        %v3995 = vpow.pop %v3994
        %v3996 = vmul.f32 %v3652, 1.442695
        %v3997 = vpow.pop %v3996
        %v3998 = vmul.f32 %v3653, 1.442695
        %v3999 = vpow.pop %v3998
        %v4000 = vmul.f32 %v3654, 1.442695
        %v4001 = vpow.pop %v4000
        %v4002 = vmul.f32 %v3655, 1.442695
        %v4003 = vpow.pop %v4002
        %v4004 = vmul.f32 %v3656, 1.442695
        %v4005 = vpow.pop %v4004
        %v4006 = vmul.f32 %v3657, 1.442695
        %v4007 = vpow.pop %v4006
        %v4008 = vmul.f32 %v3658, 1.442695
        %v4009 = vpow.pop %v4008
        %v4010 = vmul.f32 %v3659, 1.442695
        %v4011 = vpow.pop %v4010
        %v4012 = vmul.f32 %v3660, 1.442695
        %v4013 = vpow.pop %v4012
        %v4014 = vmul.f32 %v3661, 1.442695
        %v4015 = vpow.pop %v4014
        %v4016 = vmul.f32 %v3662, 1.442695
        %v4017 = vpow.pop %v4016
        %v4018 = vmul.f32 %v3663, 1.442695
        %v4019 = vpow.pop %v4018
        %v4020 = vmul.f32 %v3664, 1.442695
        %v4021 = vpow.pop %v4020
        %v4022 = vmul.f32 %v3665, 1.442695
        %v4023 = vpow.pop %v4022
        %v4024 = vmul.f32 %v3666, 1.442695
        %v4025 = vpow.pop %v4024
        %v4026 = vmul.f32 %v3667, 1.442695
        %v4027 = vpow.pop %v4026
        %v4028 = vmul.f32 %v3668, 1.442695
        %v4029 = vpow.pop %v4028
        %v4030 = vmul.f32 %v3669, 1.442695
        %v4031 = vpow.pop %v4030
        %v4032 = vmul.f32 %v3670, 1.442695
        %v4033 = vpow.pop %v4032
        %v4034 = vmul.f32 %v3671, 1.442695
        %v4035 = vpow.pop %v4034
        %v4036 = vmul.f32 %v3672, 1.442695
        %v4037 = vpow.pop %v4036
        %v4038 = vmul.f32 %v3673, 1.442695
        %v4039 = vpow.pop %v4038
        %v4040 = vmul.f32 %v3674, 1.442695
        %v4041 = vpow.pop %v4040
        %v4042 = vmul.f32 %v3675, 1.442695
        %v4043 = vpow.pop %v4042
        %v4044 = vmul.f32 %v3676, 1.442695
        %v4045 = vpow.pop %v4044
        %v4046 = vmul.f32 %v3677, 1.442695
        %v4047 = vpow.pop %v4046
        %v4048 = vmul.f32 %v3678, 1.442695
        %v4049 = vpow.pop %v4048
        %v4050 = vmul.f32 %v3679, 1.442695
        %v4051 = vpow.pop %v4050
        %v4052 = vmul.f32 %v3680, 1.442695
        %v4053 = vpow.pop %v4052
        %v4054 = vmul.f32 %v3681, 1.442695
        %v4055 = vpow.pop %v4054
        %v4056 = vmul.f32 %v3682, 1.442695
        %v4057 = vpow.pop %v4056
        %v4058 = vmul.f32 %v3683, 1.442695
        %v4059 = vpow.pop %v4058
        %v4060 = vmul.f32 %v3684, 1.442695
        %v4061 = vpow.pop %v4060
        %v4062 = vmul.f32 %v3685, 1.442695
        %v4063 = vpow.pop %v4062
        %v4064 = vmul.f32 %v3686, 1.442695
        %v4065 = vpow.pop %v4064
        %v4066 = vmul.f32 %v3687, 1.442695
        %v4067 = vpow.pop %v4066
        %v4068 = vmul.f32 %v3688, 1.442695
        %v4069 = vpow.pop %v4068
        %v4070 = vmul.f32 %v3689, 1.442695
        %v4071 = vpow.pop %v4070
        %v4072 = vmul.f32 %v3690, 1.442695
        %v4073 = vpow.pop %v4072
        %v4074 = vmul.f32 %v3691, 1.442695
        %v4075 = vpow.pop %v4074
        %v4076 = vmul.f32 %v3692, 1.442695
        %v4077 = vpow.pop %v4076
        %v4078 = vmul.f32 %v3693, 1.442695
        %v4079 = vpow.pop %v4078
        %v4080 = vmul.f32 %v3694, 1.442695
        %v4081 = vpow.pop %v4080
        %v4082 = vmul.f32 %v3695, 1.442695
        %v4083 = vpow.pop %v4082
        %v4084 = vmul.f32 %v3696, 1.442695
        %v4085 = vpow.pop %v4084
        %v4086 = vmul.f32 %v3697, 1.442695
        %v4087 = vpow.pop %v4086
        %v4088 = vmul.f32 %v3698, 1.442695
        %v4089 = vpow.pop %v4088
        %v4090 = vmul.f32 %v3699, 1.442695
        %v4091 = vpow.pop %v4090
        %v4092 = vmul.f32 %v3700, 1.442695
        %v4093 = vpow.pop %v4092
        %v4094 = vmul.f32 %v3701, 1.442695
        %v4095 = vpow.pop %v4094
        %v4096 = vmul.f32 %v3702, 1.442695
        %v4097 = vpow.pop %v4096
        %v4098 = vmul.f32 %v3703, 1.442695
        %v4099 = vpow.pop %v4098
        %v4100 = vmul.f32 %v3704, 1.442695
        %v4101 = vpow.pop %v4100
        %v4102 = vmul.f32 %v3705, 1.442695
        %v4103 = vpow.pop %v4102
        %v4104 = vmul.f32 %v3706, 1.442695
        %v4105 = vpow.pop %v4104
        %v4106 = vmul.f32 %v3707, 1.442695
        %v4107 = vpow.pop %v4106
        %v4108 = vmul.f32 %v3708, 1.442695
        %v4109 = vpow.pop %v4108
        %v4110 = vmul.f32 %v3709, 1.442695
        %v4111 = vpow.pop %v4110
        %v4112 = vmul.f32 %v3710, 1.442695
        %v4113 = vpow.pop %v4112
        %v4114 = vmul.f32 %v3711, 1.442695
        %v4115 = vpow.pop %v4114
        %v4116 = vmul.f32 %v3712, 1.442695
        %v4117 = vpow.pop %v4116
        %v4118 = vmul.f32 %v3713, 1.442695
        %v4119 = vpow.pop %v4118
        %v4120 = vmul.f32 %v3714, 1.442695
        %v4121 = vpow.pop %v4120
        %v4122 = vmul.f32 %v3715, 1.442695
        %v4123 = vpow.pop %v4122
        %v4124 = vmul.f32 %v3716, 1.442695
        %v4125 = vpow.pop %v4124
        %v4126 = vmul.f32 %v3717, 1.442695
        %v4127 = vpow.pop %v4126
        %v4128 = vmul.f32 %v3718, 1.442695
        %v4129 = vpow.pop %v4128
        %v4130 = vmul.f32 %v3719, 1.442695
        %v4131 = vpow.pop %v4130
        %v4132 = vmul.f32 %v3720, 1.442695
        %v4133 = vpow.pop %v4132
        %v4134 = vmul.f32 %v3721, 1.442695
        %v4135 = vpow.pop %v4134
        %v4136 = vmul.f32 %v3722, 1.442695
        %v4137 = vpow.pop %v4136
        %v4138 = vmul.f32 %v3723, 1.442695
        %v4139 = vpow.pop %v4138
        %v4140 = vmul.f32 %v3724, 1.442695
        %v4141 = vpow.pop %v4140
        %v4142 = vmul.f32 %v3725, 1.442695
        %v4143 = vpow.pop %v4142
        %v4144 = vmul.f32 %v3726, 1.442695
        %v4145 = vpow.pop %v4144
        %v4146 = vmul.f32 %v3727, 1.442695
        %v4147 = vpow.pop %v4146
        %v4148 = vmul.f32 %v3728, 1.442695
        %v4149 = vpow.pop %v4148
        %v4150 = vmul.f32 %v3729, 1.442695
        %v4151 = vpow.pop %v4150
        %v4152 = vmul.f32 %v3730, 1.442695
        %v4153 = vpow.pop %v4152
        %v4154 = vmul.f32 %v3731, 1.442695
        %v4155 = vpow.pop %v4154
        %v4156 = vmul.f32 %v3732, 1.442695
        %v4157 = vpow.pop %v4156
        %v4158 = vmul.f32 %v3733, 1.442695
        %v4159 = vpow.pop %v4158
        %v4160 = vmul.f32 %v3734, 1.442695
        %v4161 = vpow.pop %v4160
        %v4162 = vmul.f32 %v3735, 1.442695
        %v4163 = vpow.pop %v4162
        %v4164 = vmul.f32 %v3736, 1.442695
        %v4165 = vpow.pop %v4164
        %v4166 = vmul.f32 %v3737, 1.442695
        %v4167 = vpow.pop %v4166
        %v4168 = vmul.f32 %v3738, 1.442695
        %v4169 = vpow.pop %v4168
        %v4170 = vmul.f32 %v3739, 1.442695
        %v4171 = vpow.pop %v4170
        %v4172 = vmul.f32 %v3740, 1.442695
        %v4173 = vpow.pop %v4172
        %v4174 = vmul.f32 %v3741, 1.442695
        %v4175 = vpow.pop %v4174
        %v4176 = vmul.f32 %v3742, 1.442695
        %v4177 = vpow.pop %v4176
        %v4178 = vmul.f32 %v3743, 1.442695
        %v4179 = vpow.pop %v4178
        %v4180 = vmul.f32 %v3744, 1.442695
        %v4181 = vpow.pop %v4180
        %v4182 = vmul.f32 %v3745, 1.442695
        %v4183 = vpow.pop %v4182
        %v4184 = vmul.f32 %v3746, 1.442695
        %v4185 = vpow.pop %v4184
        %v4186 = vmul.f32 %v3747, 1.442695
        %v4187 = vpow.pop %v4186
        %v4188 = vmul.f32 %v3748, 1.442695
        %v4189 = vpow.pop %v4188
        %v4190 = vmul.f32 %v3749, 1.442695
        %v4191 = vpow.pop %v4190
        %v4192 = vmul.f32 %v3750, 1.442695
        %v4193 = vpow.pop %v4192
        %v4194 = vmul.f32 %v3751, 1.442695
        %v4195 = vpow.pop %v4194
        %v4196 = vmul.f32 %v3752, 1.442695
        %v4197 = vpow.pop %v4196
        %v4198 = vmul.f32 %v3753, 1.442695
        %v4199 = vpow.pop %v4198
        %v4200 = vmul.f32 %v3754, 1.442695
        %v4201 = vpow.pop %v4200
        %v4202 = vmul.f32 %v3755, 1.442695
        %v4203 = vpow.pop %v4202
        %v4204 = vmul.f32 %v3756, 1.442695
        %v4205 = vpow.pop %v4204
        %v4206 = vmul.f32 %v3757, 1.442695
        %v4207 = vpow.pop %v4206
        %v4208 = vmul.f32 %v3758, 1.442695
        %v4209 = vpow.pop %v4208
        %v4210 = vmul.f32 %v3759, 1.442695
        %v4211 = vpow.pop %v4210
        %v4212 = vmul.f32 %v3760, 1.442695
        %v4213 = vpow.pop %v4212
        %v4214 = vmul.f32 %v3761, 1.442695
        %v4215 = vpow.pop %v4214
        %v4216 = vmul.f32 %v3762, 1.442695
        %v4217 = vpow.pop %v4216
        %v4218 = vmul.f32 %v3763, 1.442695
        %v4219 = vpow.pop %v4218
        %v4220 = vmul.f32 %v3764, 1.442695
        %v4221 = vpow.pop %v4220
        %v4222 = vmul.f32 %v3765, 1.442695
        %v4223 = vpow.pop %v4222
        %v4224 = vmul.f32 %v3766, 1.442695
        %v4225 = vpow.pop %v4224
        %v4226 = vmul.f32 %v3767, 1.442695
        %v4227 = vpow.pop %v4226
        %v4228 = vmul.f32 %v3768, 1.442695
        %v4229 = vpow.pop %v4228
        %v4230 = vmul.f32 %v3769, 1.442695
        %v4231 = vpow.pop %v4230
        %v4232 = vmul.f32 %v3770, 1.442695
        %v4233 = vpow.pop %v4232
        %v4234 = vmul.f32 %v3771, 1.442695
        %v4235 = vpow.pop %v4234
        %v4236 = vmul.f32 %v3772, 1.442695
        %v4237 = vpow.pop %v4236
        %v4238 = vmul.f32 %v3773, 1.442695
        %v4239 = vpow.pop %v4238
        %v4240 = vmul.f32 %v3774, 1.442695
        %v4241 = vpow.pop %v4240
        %v4242 = vmul.f32 %v3775, 1.442695
        %v4243 = vpow.pop %v4242
        %v4244 = vmul.f32 %v3776, 1.442695
        %v4245 = vpow.pop %v4244
        %v4246 = vmul.f32 %v3777, 1.442695
        %v4247 = vpow.pop %v4246
        %v4248 = vmul.f32 %v3778, 1.442695
        %v4249 = vpow.pop %v4248
        %v4250 = vmul.f32 %v3779, 1.442695
        %v4251 = vpow.pop %v4250
        %v4252 = vmul.f32 %v3780, 1.442695
        %v4253 = vpow.pop %v4252
        %v4254 = vmul.f32 %v3781, 1.442695
        %v4255 = vpow.pop %v4254
        %v4256 = vmul.f32 %v3782, 1.442695
        %v4257 = vpow.pop %v4256
        %v4258 = vmul.f32 %v3783, 1.442695
        %v4259 = vpow.pop %v4258
        %v4260 = vmul.f32 %v3784, 1.442695
        %v4261 = vpow.pop %v4260
        %v4262 = vmul.f32 %v3785, 1.442695
        %v4263 = vpow.pop %v4262
        %v4264 = vmul.f32 %v3786, 1.442695
        %v4265 = vpow.pop %v4264
        %v4266 = vmul.f32 %v3787, 1.442695
        %v4267 = vpow.pop %v4266
        %v4268 = vmul.f32 %v3788, 1.442695
        %v4269 = vpow.pop %v4268
        %v4270 = vmul.f32 %v3789, 1.442695
        %v4271 = vpow.pop %v4270
        %v4272 = vmul.f32 %v3790, 1.442695
        %v4273 = vpow.pop %v4272
        %v4274 = vmul.f32 %v3791, 1.442695
        %v4275 = vpow.pop %v4274
        %v4276 = vmul.f32 %v3792, 1.442695
        %v4277 = vpow.pop %v4276
        %v4278 = vmul.f32 %v3793, 1.442695
        %v4279 = vpow.pop %v4278
        %v4280 = vmul.f32 %v3794, 1.442695
        %v4281 = vpow.pop %v4280
        %v4282 = vmul.f32 %v3795, 1.442695
        %v4283 = vpow.pop %v4282
        %v4284 = vmul.f32 %v3796, 1.442695
        %v4285 = vpow.pop %v4284
        %v4286 = vmul.f32 %v3797, 1.442695
        %v4287 = vpow.pop %v4286
        %v4288 = vmul.f32 %v3798, 1.442695
        %v4289 = vpow.pop %v4288
        %v4290 = vmul.f32 %v3799, 1.442695
        %v4291 = vpow.pop %v4290
        %v4292 = vmul.f32 %v3800, 1.442695
        %v4293 = vpow.pop %v4292
        %v4294 = vmul.f32 %v3801, 1.442695
        %v4295 = vpow.pop %v4294
        %v4296 = vmul.f32 %v3802, 1.442695
        %v4297 = vpow.pop %v4296
        %v4298 = vmul.f32 %v3803, 1.442695
        %v4299 = vpow.pop %v4298
        %v4300 = vmul.f32 %v3804, 1.442695
        %v4301 = vpow.pop %v4300
        %v4302 = vmul.f32 %v3805, 1.442695
        %v4303 = vpow.pop %v4302
        %v4304 = vmul.f32 %v3806, 1.442695
        %v4305 = vpow.pop %v4304
        %v4306 = vmul.f32 %v3807, 1.442695
        %v4307 = vpow.pop %v4306
        %v4308 = vmul.f32 %v3808, 1.442695
        %v4309 = vpow.pop %v4308
        %v4310 = vmul.f32 %v3809, 1.442695
        %v4311 = vpow.pop %v4310
        %v4312 = vmul.f32 %v3810, 1.442695
        %v4313 = vpow.pop %v4312
        %v4314 = vmul.f32 %v3811, 1.442695
        %v4315 = vpow.pop %v4314
        %v4316 = vmul.f32 %v3812, 1.442695
        %v4317 = vpow.pop %v4316
        %v4318 = vmul.f32 %v3813, 1.442695
        %v4319 = vpow.pop %v4318
        %v4320 = vmul.f32 %v3814, 1.442695
        %v4321 = vpow.pop %v4320
        %v4322 = vmul.f32 %v3815, 1.442695
        %v4323 = vpow.pop %v4322
        %v4324 = vmul.f32 %v3816, 1.442695
        %v4325 = vpow.pop %v4324
        %v4326 = vmul.f32 %v3817, 1.442695
        %v4327 = vpow.pop %v4326
        %v4328 = vmul.f32 %v3818, 1.442695
        %v4329 = vpow.pop %v4328
        %v4330 = vmul.f32 %v3819, 1.442695
        %v4331 = vpow.pop %v4330
        %v4332 = vpack.c.bf16 %v3823, %v3821
        %v4333 = vpack.c.bf16 %v3827, %v3825
        %v4334 = vpack.c.bf16 %v3831, %v3829
        %v4335 = vpack.c.bf16 %v3835, %v3833
        %v4336 = vpack.c.bf16 %v3839, %v3837
        %v4337 = vpack.c.bf16 %v3843, %v3841
        %v4338 = vpack.c.bf16 %v3847, %v3845
        %v4339 = vpack.c.bf16 %v3851, %v3849
        %v4340 = vpack.c.bf16 %v3855, %v3853
        %v4341 = vpack.c.bf16 %v3859, %v3857
        %v4342 = vpack.c.bf16 %v3863, %v3861
        %v4343 = vpack.c.bf16 %v3867, %v3865
        %v4344 = vpack.c.bf16 %v3871, %v3869
        %v4345 = vpack.c.bf16 %v3875, %v3873
        %v4346 = vpack.c.bf16 %v3879, %v3877
        %v4347 = vpack.c.bf16 %v3883, %v3881
        %v4348 = vpack.c.bf16 %v3887, %v3885
        %v4349 = vpack.c.bf16 %v3891, %v3889
        %v4350 = vpack.c.bf16 %v3895, %v3893
        %v4351 = vpack.c.bf16 %v3899, %v3897
        %v4352 = vpack.c.bf16 %v3903, %v3901
        %v4353 = vpack.c.bf16 %v3907, %v3905
        %v4354 = vpack.c.bf16 %v3911, %v3909
        %v4355 = vpack.c.bf16 %v3915, %v3913
        %v4356 = vpack.c.bf16 %v3919, %v3917
        %v4357 = vpack.c.bf16 %v3923, %v3921
        %v4358 = vpack.c.bf16 %v3927, %v3925
        %v4359 = vpack.c.bf16 %v3931, %v3929
        %v4360 = vpack.c.bf16 %v3935, %v3933
        %v4361 = vpack.c.bf16 %v3939, %v3937
        %v4362 = vpack.c.bf16 %v3943, %v3941
        %v4363 = vpack.c.bf16 %v3947, %v3945
        %v4364 = vpack.c.bf16 %v3951, %v3949
        %v4365 = vpack.c.bf16 %v3955, %v3953
        %v4366 = vpack.c.bf16 %v3959, %v3957
        %v4367 = vpack.c.bf16 %v3963, %v3961
        %v4368 = vpack.c.bf16 %v3967, %v3965
        %v4369 = vpack.c.bf16 %v3971, %v3969
        %v4370 = vpack.c.bf16 %v3975, %v3973
        %v4371 = vpack.c.bf16 %v3979, %v3977
        %v4372 = vpack.c.bf16 %v3983, %v3981
        %v4373 = vpack.c.bf16 %v3987, %v3985
        %v4374 = vpack.c.bf16 %v3991, %v3989
        %v4375 = vpack.c.bf16 %v3995, %v3993
        %v4376 = vpack.c.bf16 %v3999, %v3997
        %v4377 = vpack.c.bf16 %v4003, %v4001
        %v4378 = vpack.c.bf16 %v4007, %v4005
        %v4379 = vpack.c.bf16 %v4011, %v4009
        %v4380 = vpack.c.bf16 %v4015, %v4013
        %v4381 = vpack.c.bf16 %v4019, %v4017
        %v4382 = vpack.c.bf16 %v4023, %v4021
        %v4383 = vpack.c.bf16 %v4027, %v4025
        %v4384 = vpack.c.bf16 %v4031, %v4029
        %v4385 = vpack.c.bf16 %v4035, %v4033
        %v4386 = vpack.c.bf16 %v4039, %v4037
        %v4387 = vpack.c.bf16 %v4043, %v4041
        %v4388 = vpack.c.bf16 %v4047, %v4045
        %v4389 = vpack.c.bf16 %v4051, %v4049
        %v4390 = vpack.c.bf16 %v4055, %v4053
        %v4391 = vpack.c.bf16 %v4059, %v4057
        %v4392 = vpack.c.bf16 %v4063, %v4061
        %v4393 = vpack.c.bf16 %v4067, %v4065
        %v4394 = vpack.c.bf16 %v4071, %v4069
        %v4395 = vpack.c.bf16 %v4075, %v4073
        %v4396 = vpack.c.bf16 %v4079, %v4077
        %v4397 = vpack.c.bf16 %v4083, %v4081
        %v4398 = vpack.c.bf16 %v4087, %v4085
        %v4399 = vpack.c.bf16 %v4091, %v4089
        %v4400 = vpack.c.bf16 %v4095, %v4093
        %v4401 = vpack.c.bf16 %v4099, %v4097
        %v4402 = vpack.c.bf16 %v4103, %v4101
        %v4403 = vpack.c.bf16 %v4107, %v4105
        %v4404 = vpack.c.bf16 %v4111, %v4109
        %v4405 = vpack.c.bf16 %v4115, %v4113
        %v4406 = vpack.c.bf16 %v4119, %v4117
        %v4407 = vpack.c.bf16 %v4123, %v4121
        %v4408 = vpack.c.bf16 %v4127, %v4125
        %v4409 = vpack.c.bf16 %v4131, %v4129
        %v4410 = vpack.c.bf16 %v4135, %v4133
        %v4411 = vpack.c.bf16 %v4139, %v4137
        %v4412 = vpack.c.bf16 %v4143, %v4141
        %v4413 = vpack.c.bf16 %v4147, %v4145
        %v4414 = vpack.c.bf16 %v4151, %v4149
        %v4415 = vpack.c.bf16 %v4155, %v4153
        %v4416 = vpack.c.bf16 %v4159, %v4157
        %v4417 = vpack.c.bf16 %v4163, %v4161
        %v4418 = vpack.c.bf16 %v4167, %v4165
        %v4419 = vpack.c.bf16 %v4171, %v4169
        %v4420 = vpack.c.bf16 %v4175, %v4173
        %v4421 = vpack.c.bf16 %v4179, %v4177
        %v4422 = vpack.c.bf16 %v4183, %v4181
        %v4423 = vpack.c.bf16 %v4187, %v4185
        %v4424 = vpack.c.bf16 %v4191, %v4189
        %v4425 = vpack.c.bf16 %v4195, %v4193
        %v4426 = vpack.c.bf16 %v4199, %v4197
        %v4427 = vpack.c.bf16 %v4203, %v4201
        %v4428 = vpack.c.bf16 %v4207, %v4205
        %v4429 = vpack.c.bf16 %v4211, %v4209
        %v4430 = vpack.c.bf16 %v4215, %v4213
        %v4431 = vpack.c.bf16 %v4219, %v4217
        %v4432 = vpack.c.bf16 %v4223, %v4221
        %v4433 = vpack.c.bf16 %v4227, %v4225
        %v4434 = vpack.c.bf16 %v4231, %v4229
        %v4435 = vpack.c.bf16 %v4235, %v4233
        %v4436 = vpack.c.bf16 %v4239, %v4237
        %v4437 = vpack.c.bf16 %v4243, %v4241
        %v4438 = vpack.c.bf16 %v4247, %v4245
        %v4439 = vpack.c.bf16 %v4251, %v4249
        %v4440 = vpack.c.bf16 %v4255, %v4253
        %v4441 = vpack.c.bf16 %v4259, %v4257
        %v4442 = vpack.c.bf16 %v4263, %v4261
        %v4443 = vpack.c.bf16 %v4267, %v4265
        %v4444 = vpack.c.bf16 %v4271, %v4269
        %v4445 = vpack.c.bf16 %v4275, %v4273
        %v4446 = vpack.c.bf16 %v4279, %v4277
        %v4447 = vpack.c.bf16 %v4283, %v4281
        %v4448 = vpack.c.bf16 %v4287, %v4285
        %v4449 = vpack.c.bf16 %v4291, %v4289
        %v4450 = vpack.c.bf16 %v4295, %v4293
        %v4451 = vpack.c.bf16 %v4299, %v4297
        %v4452 = vpack.c.bf16 %v4303, %v4301
        %v4453 = vpack.c.bf16 %v4307, %v4305
        %v4454 = vpack.c.bf16 %v4311, %v4309
        %v4455 = vpack.c.bf16 %v4315, %v4313
        %v4456 = vpack.c.bf16 %v4319, %v4317
        %v4457 = vpack.c.bf16 %v4323, %v4321
        %v4458 = vpack.c.bf16 %v4327, %v4325
        %v4459 = vpack.c.bf16 %v4331, %v4329
        %v4461 = vunpack.c.l.b16 %v1718
        %v4462 = vunpack.c.h.b16 %v1718
        %v4463 = vpack.c.b16 %v4461, %v4461
        %v4464 = vpack.c.b16 %v4462, %v4462
        %v4499 = vunpack.c.l.b16 %v4332
        %v4500 = vunpack.c.h.b16 %v4332
        %v4501 = vunpack.c.l.b16 %v4333
        %v4502 = vunpack.c.h.b16 %v4333
        %v4503 = vunpack.c.l.b16 %v4334
        %v4504 = vunpack.c.h.b16 %v4334
        %v4505 = vunpack.c.l.b16 %v4335
        %v4506 = vunpack.c.h.b16 %v4335
        %v4507 = vunpack.c.l.b16 %v4336
        %v4508 = vunpack.c.h.b16 %v4336
        %v4509 = vunpack.c.l.b16 %v4337
        %v4510 = vunpack.c.h.b16 %v4337
        %v4511 = vunpack.c.l.b16 %v4338
        %v4512 = vunpack.c.h.b16 %v4338
        %v4513 = vunpack.c.l.b16 %v4339
        %v4514 = vunpack.c.h.b16 %v4339
        %v4515 = vunpack.c.l.b16 %v4340
        %v4516 = vunpack.c.h.b16 %v4340
        %v4517 = vunpack.c.l.b16 %v4341
        %v4518 = vunpack.c.h.b16 %v4341
        %v4519 = vunpack.c.l.b16 %v4342
        %v4520 = vunpack.c.h.b16 %v4342
        %v4521 = vunpack.c.l.b16 %v4343
        %v4522 = vunpack.c.h.b16 %v4343
        %v4523 = vunpack.c.l.b16 %v4344
        %v4524 = vunpack.c.h.b16 %v4344
        %v4525 = vunpack.c.l.b16 %v4345
        %v4526 = vunpack.c.h.b16 %v4345
        %v4527 = vunpack.c.l.b16 %v4346
        %v4528 = vunpack.c.h.b16 %v4346
        %v4529 = vunpack.c.l.b16 %v4347
        %v4530 = vunpack.c.h.b16 %v4347
        %v4531 = vunpack.c.l.b16 %v4348
        %v4532 = vunpack.c.h.b16 %v4348
        %v4533 = vunpack.c.l.b16 %v4349
        %v4534 = vunpack.c.h.b16 %v4349
        %v4535 = vunpack.c.l.b16 %v4350
        %v4536 = vunpack.c.h.b16 %v4350
        %v4537 = vunpack.c.l.b16 %v4351
        %v4538 = vunpack.c.h.b16 %v4351
        %v4539 = vunpack.c.l.b16 %v4352
        %v4540 = vunpack.c.h.b16 %v4352
        %v4541 = vunpack.c.l.b16 %v4353
        %v4542 = vunpack.c.h.b16 %v4353
        %v4543 = vunpack.c.l.b16 %v4354
        %v4544 = vunpack.c.h.b16 %v4354
        %v4545 = vunpack.c.l.b16 %v4355
        %v4546 = vunpack.c.h.b16 %v4355
        %v4547 = vunpack.c.l.b16 %v4356
        %v4548 = vunpack.c.h.b16 %v4356
        %v4549 = vunpack.c.l.b16 %v4357
        %v4550 = vunpack.c.h.b16 %v4357
        %v4551 = vunpack.c.l.b16 %v4358
        %v4552 = vunpack.c.h.b16 %v4358
        %v4553 = vunpack.c.l.b16 %v4359
        %v4554 = vunpack.c.h.b16 %v4359
        %v4555 = vunpack.c.l.b16 %v4360
        %v4556 = vunpack.c.h.b16 %v4360
        %v4557 = vunpack.c.l.b16 %v4361
        %v4558 = vunpack.c.h.b16 %v4361
        %v4559 = vunpack.c.l.b16 %v4362
        %v4560 = vunpack.c.h.b16 %v4362
        %v4561 = vunpack.c.l.b16 %v4363
        %v4562 = vunpack.c.h.b16 %v4363
        %v4563 = vpack.c.b16 %v4501, %v4499
        %v4564 = vpack.c.b16 %v4502, %v4500
        %v4565 = vpack.c.b16 %v4505, %v4503
        %v4566 = vpack.c.b16 %v4506, %v4504
        %v4567 = vpack.c.b16 %v4509, %v4507
        %v4568 = vpack.c.b16 %v4510, %v4508
        %v4569 = vpack.c.b16 %v4513, %v4511
        %v4570 = vpack.c.b16 %v4514, %v4512
        %v4571 = vpack.c.b16 %v4517, %v4515
        %v4572 = vpack.c.b16 %v4518, %v4516
        %v4573 = vpack.c.b16 %v4521, %v4519
        %v4574 = vpack.c.b16 %v4522, %v4520
        %v4575 = vpack.c.b16 %v4525, %v4523
        %v4576 = vpack.c.b16 %v4526, %v4524
        %v4577 = vpack.c.b16 %v4529, %v4527
        %v4578 = vpack.c.b16 %v4530, %v4528
        %v4579 = vpack.c.b16 %v4533, %v4531
        %v4580 = vpack.c.b16 %v4534, %v4532
        %v4581 = vpack.c.b16 %v4537, %v4535
        %v4582 = vpack.c.b16 %v4538, %v4536
        %v4583 = vpack.c.b16 %v4541, %v4539
        %v4584 = vpack.c.b16 %v4542, %v4540
        %v4585 = vpack.c.b16 %v4545, %v4543
        %v4586 = vpack.c.b16 %v4546, %v4544
        %v4587 = vpack.c.b16 %v4549, %v4547
        %v4588 = vpack.c.b16 %v4550, %v4548
        %v4589 = vpack.c.b16 %v4553, %v4551
        %v4590 = vpack.c.b16 %v4554, %v4552
        %v4591 = vpack.c.b16 %v4557, %v4555
        %v4592 = vpack.c.b16 %v4558, %v4556
        %v4593 = vpack.c.b16 %v4561, %v4559
        %v4594 = vpack.c.b16 %v4562, %v4560
        %4627 = vmatpush.bf16.xpose.msra.mxu0 %v4577
        %4628 = vmatpush.bf16.xpose.msra.mxu0 %v4575
        %4629 = vmatpush.bf16.xpose.msra.mxu0 %v4573
        %4630 = vmatpush.bf16.xpose.msra.mxu0 %v4571
        %4631 = vmatpush.bf16.xpose.msra.mxu0 %v4569
        %4632 = vmatpush.bf16.xpose.msra.mxu0 %v4567
        %4633 = vmatpush.bf16.xpose.msra.mxu0 %v4565
        %4634 = vmatpush.bf16.xpose.msra.mxu0 %v4563
        %4635 = vmatmul.bf16.gmra.mxu0 %v4463
        %v4636 = vpop.f32.mrf.mxu0
        %v4637 = vadd.f32 0.0, %v4636
        %v4638 = vpop.f32.mrf.mxu0
        %4639 = vdwg.mxu0
        %4640 = vmatpush.bf16.xpose.msra.mxu0 %v4578
        %4641 = vmatpush.bf16.xpose.msra.mxu0 %v4576
        %4642 = vmatpush.bf16.xpose.msra.mxu0 %v4574
        %4643 = vmatpush.bf16.xpose.msra.mxu0 %v4572
        %4644 = vmatpush.bf16.xpose.msra.mxu0 %v4570
        %4645 = vmatpush.bf16.xpose.msra.mxu0 %v4568
        %4646 = vmatpush.bf16.xpose.msra.mxu0 %v4566
        %4647 = vmatpush.bf16.xpose.msra.mxu0 %v4564
        %4648 = vmatmul.bf16.gmra.mxu0 %v4464
        %v4649 = vpop.f32.mrf.mxu0
        %v4650 = vadd.f32 %v4637, %v4649
        %v4651 = vpop.f32.mrf.mxu0
        %4652 = vdwg.mxu0
        %4653 = vmatpush.bf16.xpose.msra.mxu0 %v4593
        %4654 = vmatpush.bf16.xpose.msra.mxu0 %v4591
        %4655 = vmatpush.bf16.xpose.msra.mxu0 %v4589
        %4656 = vmatpush.bf16.xpose.msra.mxu0 %v4587
        %4657 = vmatpush.bf16.xpose.msra.mxu0 %v4585
        %4658 = vmatpush.bf16.xpose.msra.mxu0 %v4583
        %4659 = vmatpush.bf16.xpose.msra.mxu0 %v4581
        %4660 = vmatpush.bf16.xpose.msra.mxu0 %v4579
        %4661 = vmatmul.bf16.gmra.mxu0 %v4463
        %v4662 = vpop.f32.mrf.mxu0
        %v4663 = vadd.f32 0.0, %v4662
        %v4664 = vpop.f32.mrf.mxu0
        %4665 = vdwg.mxu0
        %4666 = vmatpush.bf16.xpose.msra.mxu0 %v4594
        %4667 = vmatpush.bf16.xpose.msra.mxu0 %v4592
        %4668 = vmatpush.bf16.xpose.msra.mxu0 %v4590
        %4669 = vmatpush.bf16.xpose.msra.mxu0 %v4588
        %4670 = vmatpush.bf16.xpose.msra.mxu0 %v4586
        %4671 = vmatpush.bf16.xpose.msra.mxu0 %v4584
        %4672 = vmatpush.bf16.xpose.msra.mxu0 %v4582
        %4673 = vmatpush.bf16.xpose.msra.mxu0 %v4580
        %4674 = vmatmul.bf16.gmra.mxu0 %v4464
        %v4675 = vpop.f32.mrf.mxu0
        %v4676 = vadd.f32 %v4663, %v4675
        %v4677 = vpop.f32.mrf.mxu0
        %4678 = vdwg.mxu0
        %v4680 = vunpack.c.l.b16 %v1719
        %v4681 = vunpack.c.h.b16 %v1719
        %v4682 = vpack.c.b16 %v4680, %v4680
        %v4683 = vpack.c.b16 %v4681, %v4681
        %v4718 = vunpack.c.l.b16 %v4364
        %v4719 = vunpack.c.h.b16 %v4364
        %v4720 = vunpack.c.l.b16 %v4365
        %v4721 = vunpack.c.h.b16 %v4365
        %v4722 = vunpack.c.l.b16 %v4366
        %v4723 = vunpack.c.h.b16 %v4366
        %v4724 = vunpack.c.l.b16 %v4367
        %v4725 = vunpack.c.h.b16 %v4367
        %v4726 = vunpack.c.l.b16 %v4368
        %v4727 = vunpack.c.h.b16 %v4368
        %v4728 = vunpack.c.l.b16 %v4369
        %v4729 = vunpack.c.h.b16 %v4369
        %v4730 = vunpack.c.l.b16 %v4370
        %v4731 = vunpack.c.h.b16 %v4370
        %v4732 = vunpack.c.l.b16 %v4371
        %v4733 = vunpack.c.h.b16 %v4371
        %v4734 = vunpack.c.l.b16 %v4372
        %v4735 = vunpack.c.h.b16 %v4372
        %v4736 = vunpack.c.l.b16 %v4373
        %v4737 = vunpack.c.h.b16 %v4373
        %v4738 = vunpack.c.l.b16 %v4374
        %v4739 = vunpack.c.h.b16 %v4374
        %v4740 = vunpack.c.l.b16 %v4375
        %v4741 = vunpack.c.h.b16 %v4375
        %v4742 = vunpack.c.l.b16 %v4376
        %v4743 = vunpack.c.h.b16 %v4376
        %v4744 = vunpack.c.l.b16 %v4377
        %v4745 = vunpack.c.h.b16 %v4377
        %v4746 = vunpack.c.l.b16 %v4378
        %v4747 = vunpack.c.h.b16 %v4378
        %v4748 = vunpack.c.l.b16 %v4379
        %v4749 = vunpack.c.h.b16 %v4379
        %v4750 = vunpack.c.l.b16 %v4380
        %v4751 = vunpack.c.h.b16 %v4380
        %v4752 = vunpack.c.l.b16 %v4381
        %v4753 = vunpack.c.h.b16 %v4381
        %v4754 = vunpack.c.l.b16 %v4382
        %v4755 = vunpack.c.h.b16 %v4382
        %v4756 = vunpack.c.l.b16 %v4383
        %v4757 = vunpack.c.h.b16 %v4383
        %v4758 = vunpack.c.l.b16 %v4384
        %v4759 = vunpack.c.h.b16 %v4384
        %v4760 = vunpack.c.l.b16 %v4385
        %v4761 = vunpack.c.h.b16 %v4385
        %v4762 = vunpack.c.l.b16 %v4386
        %v4763 = vunpack.c.h.b16 %v4386
        %v4764 = vunpack.c.l.b16 %v4387
        %v4765 = vunpack.c.h.b16 %v4387
        %v4766 = vunpack.c.l.b16 %v4388
        %v4767 = vunpack.c.h.b16 %v4388
        %v4768 = vunpack.c.l.b16 %v4389
        %v4769 = vunpack.c.h.b16 %v4389
        %v4770 = vunpack.c.l.b16 %v4390
        %v4771 = vunpack.c.h.b16 %v4390
        %v4772 = vunpack.c.l.b16 %v4391
        %v4773 = vunpack.c.h.b16 %v4391
        %v4774 = vunpack.c.l.b16 %v4392
        %v4775 = vunpack.c.h.b16 %v4392
        %v4776 = vunpack.c.l.b16 %v4393
        %v4777 = vunpack.c.h.b16 %v4393
        %v4778 = vunpack.c.l.b16 %v4394
        %v4779 = vunpack.c.h.b16 %v4394
        %v4780 = vunpack.c.l.b16 %v4395
        %v4781 = vunpack.c.h.b16 %v4395
        %v4782 = vpack.c.b16 %v4720, %v4718
        %v4783 = vpack.c.b16 %v4721, %v4719
        %v4784 = vpack.c.b16 %v4724, %v4722
        %v4785 = vpack.c.b16 %v4725, %v4723
        %v4786 = vpack.c.b16 %v4728, %v4726
        %v4787 = vpack.c.b16 %v4729, %v4727
        %v4788 = vpack.c.b16 %v4732, %v4730
        %v4789 = vpack.c.b16 %v4733, %v4731
        %v4790 = vpack.c.b16 %v4736, %v4734
        %v4791 = vpack.c.b16 %v4737, %v4735
        %v4792 = vpack.c.b16 %v4740, %v4738
        %v4793 = vpack.c.b16 %v4741, %v4739
        %v4794 = vpack.c.b16 %v4744, %v4742
        %v4795 = vpack.c.b16 %v4745, %v4743
        %v4796 = vpack.c.b16 %v4748, %v4746
        %v4797 = vpack.c.b16 %v4749, %v4747
        %v4798 = vpack.c.b16 %v4752, %v4750
        %v4799 = vpack.c.b16 %v4753, %v4751
        %v4800 = vpack.c.b16 %v4756, %v4754
        %v4801 = vpack.c.b16 %v4757, %v4755
        %v4802 = vpack.c.b16 %v4760, %v4758
        %v4803 = vpack.c.b16 %v4761, %v4759
        %v4804 = vpack.c.b16 %v4764, %v4762
        %v4805 = vpack.c.b16 %v4765, %v4763
        %v4806 = vpack.c.b16 %v4768, %v4766
        %v4807 = vpack.c.b16 %v4769, %v4767
        %v4808 = vpack.c.b16 %v4772, %v4770
        %v4809 = vpack.c.b16 %v4773, %v4771
        %v4810 = vpack.c.b16 %v4776, %v4774
        %v4811 = vpack.c.b16 %v4777, %v4775
        %v4812 = vpack.c.b16 %v4780, %v4778
        %v4813 = vpack.c.b16 %v4781, %v4779
        %4846 = vmatpush.bf16.xpose.msra.mxu0 %v4796
        %4847 = vmatpush.bf16.xpose.msra.mxu0 %v4794
        %4848 = vmatpush.bf16.xpose.msra.mxu0 %v4792
        %4849 = vmatpush.bf16.xpose.msra.mxu0 %v4790
        %4850 = vmatpush.bf16.xpose.msra.mxu0 %v4788
        %4851 = vmatpush.bf16.xpose.msra.mxu0 %v4786
        %4852 = vmatpush.bf16.xpose.msra.mxu0 %v4784
        %4853 = vmatpush.bf16.xpose.msra.mxu0 %v4782
        %4854 = vmatmul.bf16.gmra.mxu0 %v4682
        %v4855 = vpop.f32.mrf.mxu0
        %v4856 = vadd.f32 0.0, %v4855
        %v4857 = vpop.f32.mrf.mxu0
        %4858 = vdwg.mxu0
        %4859 = vmatpush.bf16.xpose.msra.mxu0 %v4797
        %4860 = vmatpush.bf16.xpose.msra.mxu0 %v4795
        %4861 = vmatpush.bf16.xpose.msra.mxu0 %v4793
        %4862 = vmatpush.bf16.xpose.msra.mxu0 %v4791
        %4863 = vmatpush.bf16.xpose.msra.mxu0 %v4789
        %4864 = vmatpush.bf16.xpose.msra.mxu0 %v4787
        %4865 = vmatpush.bf16.xpose.msra.mxu0 %v4785
        %4866 = vmatpush.bf16.xpose.msra.mxu0 %v4783
        %4867 = vmatmul.bf16.gmra.mxu0 %v4683
        %v4868 = vpop.f32.mrf.mxu0
        %v4869 = vadd.f32 %v4856, %v4868
        %v4870 = vpop.f32.mrf.mxu0
        %4871 = vdwg.mxu0
        %4872 = vmatpush.bf16.xpose.msra.mxu0 %v4812
        %4873 = vmatpush.bf16.xpose.msra.mxu0 %v4810
        %4874 = vmatpush.bf16.xpose.msra.mxu0 %v4808
        %4875 = vmatpush.bf16.xpose.msra.mxu0 %v4806
        %4876 = vmatpush.bf16.xpose.msra.mxu0 %v4804
        %4877 = vmatpush.bf16.xpose.msra.mxu0 %v4802
        %4878 = vmatpush.bf16.xpose.msra.mxu0 %v4800
        %4879 = vmatpush.bf16.xpose.msra.mxu0 %v4798
        %4880 = vmatmul.bf16.gmra.mxu0 %v4682
        %v4881 = vpop.f32.mrf.mxu0
        %v4882 = vadd.f32 0.0, %v4881
        %v4883 = vpop.f32.mrf.mxu0
        %4884 = vdwg.mxu0
        %4885 = vmatpush.bf16.xpose.msra.mxu0 %v4813
        %4886 = vmatpush.bf16.xpose.msra.mxu0 %v4811
        %4887 = vmatpush.bf16.xpose.msra.mxu0 %v4809
        %4888 = vmatpush.bf16.xpose.msra.mxu0 %v4807
        %4889 = vmatpush.bf16.xpose.msra.mxu0 %v4805
        %4890 = vmatpush.bf16.xpose.msra.mxu0 %v4803
        %4891 = vmatpush.bf16.xpose.msra.mxu0 %v4801
        %4892 = vmatpush.bf16.xpose.msra.mxu0 %v4799
        %4893 = vmatmul.bf16.gmra.mxu0 %v4683
        %v4894 = vpop.f32.mrf.mxu0
        %v4895 = vadd.f32 %v4882, %v4894
        %v4896 = vpop.f32.mrf.mxu0
        %4897 = vdwg.mxu0
        %v4899 = vunpack.c.l.b16 %v1720
        %v4900 = vunpack.c.h.b16 %v1720
        %v4901 = vpack.c.b16 %v4899, %v4899
        %v4902 = vpack.c.b16 %v4900, %v4900
        %v4937 = vunpack.c.l.b16 %v4396
        %v4938 = vunpack.c.h.b16 %v4396
        %v4939 = vunpack.c.l.b16 %v4397
        %v4940 = vunpack.c.h.b16 %v4397
        %v4941 = vunpack.c.l.b16 %v4398
        %v4942 = vunpack.c.h.b16 %v4398
        %v4943 = vunpack.c.l.b16 %v4399
        %v4944 = vunpack.c.h.b16 %v4399
        %v4945 = vunpack.c.l.b16 %v4400
        %v4946 = vunpack.c.h.b16 %v4400
        %v4947 = vunpack.c.l.b16 %v4401
        %v4948 = vunpack.c.h.b16 %v4401
        %v4949 = vunpack.c.l.b16 %v4402
        %v4950 = vunpack.c.h.b16 %v4402
        %v4951 = vunpack.c.l.b16 %v4403
        %v4952 = vunpack.c.h.b16 %v4403
        %v4953 = vunpack.c.l.b16 %v4404
        %v4954 = vunpack.c.h.b16 %v4404
        %v4955 = vunpack.c.l.b16 %v4405
        %v4956 = vunpack.c.h.b16 %v4405
        %v4957 = vunpack.c.l.b16 %v4406
        %v4958 = vunpack.c.h.b16 %v4406
        %v4959 = vunpack.c.l.b16 %v4407
        %v4960 = vunpack.c.h.b16 %v4407
        %v4961 = vunpack.c.l.b16 %v4408
        %v4962 = vunpack.c.h.b16 %v4408
        %v4963 = vunpack.c.l.b16 %v4409
        %v4964 = vunpack.c.h.b16 %v4409
        %v4965 = vunpack.c.l.b16 %v4410
        %v4966 = vunpack.c.h.b16 %v4410
        %v4967 = vunpack.c.l.b16 %v4411
        %v4968 = vunpack.c.h.b16 %v4411
        %v4969 = vunpack.c.l.b16 %v4412
        %v4970 = vunpack.c.h.b16 %v4412
        %v4971 = vunpack.c.l.b16 %v4413
        %v4972 = vunpack.c.h.b16 %v4413
        %v4973 = vunpack.c.l.b16 %v4414
        %v4974 = vunpack.c.h.b16 %v4414
        %v4975 = vunpack.c.l.b16 %v4415
        %v4976 = vunpack.c.h.b16 %v4415
        %v4977 = vunpack.c.l.b16 %v4416
        %v4978 = vunpack.c.h.b16 %v4416
        %v4979 = vunpack.c.l.b16 %v4417
        %v4980 = vunpack.c.h.b16 %v4417
        %v4981 = vunpack.c.l.b16 %v4418
        %v4982 = vunpack.c.h.b16 %v4418
        %v4983 = vunpack.c.l.b16 %v4419
        %v4984 = vunpack.c.h.b16 %v4419
        %v4985 = vunpack.c.l.b16 %v4420
        %v4986 = vunpack.c.h.b16 %v4420
        %v4987 = vunpack.c.l.b16 %v4421
        %v4988 = vunpack.c.h.b16 %v4421
        %v4989 = vunpack.c.l.b16 %v4422
        %v4990 = vunpack.c.h.b16 %v4422
        %v4991 = vunpack.c.l.b16 %v4423
        %v4992 = vunpack.c.h.b16 %v4423
        %v4993 = vunpack.c.l.b16 %v4424
        %v4994 = vunpack.c.h.b16 %v4424
        %v4995 = vunpack.c.l.b16 %v4425
        %v4996 = vunpack.c.h.b16 %v4425
        %v4997 = vunpack.c.l.b16 %v4426
        %v4998 = vunpack.c.h.b16 %v4426
        %v4999 = vunpack.c.l.b16 %v4427
        %v5000 = vunpack.c.h.b16 %v4427
        %v5001 = vpack.c.b16 %v4939, %v4937
        %v5002 = vpack.c.b16 %v4940, %v4938
        %v5003 = vpack.c.b16 %v4943, %v4941
        %v5004 = vpack.c.b16 %v4944, %v4942
        %v5005 = vpack.c.b16 %v4947, %v4945
        %v5006 = vpack.c.b16 %v4948, %v4946
        %v5007 = vpack.c.b16 %v4951, %v4949
        %v5008 = vpack.c.b16 %v4952, %v4950
        %v5009 = vpack.c.b16 %v4955, %v4953
        %v5010 = vpack.c.b16 %v4956, %v4954
        %v5011 = vpack.c.b16 %v4959, %v4957
        %v5012 = vpack.c.b16 %v4960, %v4958
        %v5013 = vpack.c.b16 %v4963, %v4961
        %v5014 = vpack.c.b16 %v4964, %v4962
        %v5015 = vpack.c.b16 %v4967, %v4965
        %v5016 = vpack.c.b16 %v4968, %v4966
        %v5017 = vpack.c.b16 %v4971, %v4969
        %v5018 = vpack.c.b16 %v4972, %v4970
        %v5019 = vpack.c.b16 %v4975, %v4973
        %v5020 = vpack.c.b16 %v4976, %v4974
        %v5021 = vpack.c.b16 %v4979, %v4977
        %v5022 = vpack.c.b16 %v4980, %v4978
        %v5023 = vpack.c.b16 %v4983, %v4981
        %v5024 = vpack.c.b16 %v4984, %v4982
        %v5025 = vpack.c.b16 %v4987, %v4985
        %v5026 = vpack.c.b16 %v4988, %v4986
        %v5027 = vpack.c.b16 %v4991, %v4989
        %v5028 = vpack.c.b16 %v4992, %v4990
        %v5029 = vpack.c.b16 %v4995, %v4993
        %v5030 = vpack.c.b16 %v4996, %v4994
        %v5031 = vpack.c.b16 %v4999, %v4997
        %v5032 = vpack.c.b16 %v5000, %v4998
        %5065 = vmatpush.bf16.xpose.msra.mxu0 %v5015
        %5066 = vmatpush.bf16.xpose.msra.mxu0 %v5013
        %5067 = vmatpush.bf16.xpose.msra.mxu0 %v5011
        %5068 = vmatpush.bf16.xpose.msra.mxu0 %v5009
        %5069 = vmatpush.bf16.xpose.msra.mxu0 %v5007
        %5070 = vmatpush.bf16.xpose.msra.mxu0 %v5005
        %5071 = vmatpush.bf16.xpose.msra.mxu0 %v5003
        %5072 = vmatpush.bf16.xpose.msra.mxu0 %v5001
        %5073 = vmatmul.bf16.gmra.mxu0 %v4901
        %v5074 = vpop.f32.mrf.mxu0
        %v5075 = vadd.f32 0.0, %v5074
        %v5076 = vpop.f32.mrf.mxu0
        %5077 = vdwg.mxu0
        %5078 = vmatpush.bf16.xpose.msra.mxu0 %v5016
        %5079 = vmatpush.bf16.xpose.msra.mxu0 %v5014
        %5080 = vmatpush.bf16.xpose.msra.mxu0 %v5012
        %5081 = vmatpush.bf16.xpose.msra.mxu0 %v5010
        %5082 = vmatpush.bf16.xpose.msra.mxu0 %v5008
        %5083 = vmatpush.bf16.xpose.msra.mxu0 %v5006
        %5084 = vmatpush.bf16.xpose.msra.mxu0 %v5004
        %5085 = vmatpush.bf16.xpose.msra.mxu0 %v5002
        %5086 = vmatmul.bf16.gmra.mxu0 %v4902
        %v5087 = vpop.f32.mrf.mxu0
        %v5088 = vadd.f32 %v5075, %v5087
        %v5089 = vpop.f32.mrf.mxu0
        %5090 = vdwg.mxu0
        %5091 = vmatpush.bf16.xpose.msra.mxu0 %v5031
        %5092 = vmatpush.bf16.xpose.msra.mxu0 %v5029
        %5093 = vmatpush.bf16.xpose.msra.mxu0 %v5027
        %5094 = vmatpush.bf16.xpose.msra.mxu0 %v5025
        %5095 = vmatpush.bf16.xpose.msra.mxu0 %v5023
        %5096 = vmatpush.bf16.xpose.msra.mxu0 %v5021
        %5097 = vmatpush.bf16.xpose.msra.mxu0 %v5019
        %5098 = vmatpush.bf16.xpose.msra.mxu0 %v5017
        %5099 = vmatmul.bf16.gmra.mxu0 %v4901
        %v5100 = vpop.f32.mrf.mxu0
        %v5101 = vadd.f32 0.0, %v5100
        %v5102 = vpop.f32.mrf.mxu0
        %5103 = vdwg.mxu0
        %5104 = vmatpush.bf16.xpose.msra.mxu0 %v5032
        %5105 = vmatpush.bf16.xpose.msra.mxu0 %v5030
        %5106 = vmatpush.bf16.xpose.msra.mxu0 %v5028
        %5107 = vmatpush.bf16.xpose.msra.mxu0 %v5026
        %5108 = vmatpush.bf16.xpose.msra.mxu0 %v5024
        %5109 = vmatpush.bf16.xpose.msra.mxu0 %v5022
        %5110 = vmatpush.bf16.xpose.msra.mxu0 %v5020
        %5111 = vmatpush.bf16.xpose.msra.mxu0 %v5018
        %5112 = vmatmul.bf16.gmra.mxu0 %v4902
        %v5113 = vpop.f32.mrf.mxu0
        %v5114 = vadd.f32 %v5101, %v5113
        %v5115 = vpop.f32.mrf.mxu0
        %5116 = vdwg.mxu0
        %v5118 = vunpack.c.l.b16 %v1721
        %v5119 = vunpack.c.h.b16 %v1721
        %v5120 = vpack.c.b16 %v5118, %v5118
        %v5121 = vpack.c.b16 %v5119, %v5119
        %v5156 = vunpack.c.l.b16 %v4428
        %v5157 = vunpack.c.h.b16 %v4428
        %v5158 = vunpack.c.l.b16 %v4429
        %v5159 = vunpack.c.h.b16 %v4429
        %v5160 = vunpack.c.l.b16 %v4430
        %v5161 = vunpack.c.h.b16 %v4430
        %v5162 = vunpack.c.l.b16 %v4431
        %v5163 = vunpack.c.h.b16 %v4431
        %v5164 = vunpack.c.l.b16 %v4432
        %v5165 = vunpack.c.h.b16 %v4432
        %v5166 = vunpack.c.l.b16 %v4433
        %v5167 = vunpack.c.h.b16 %v4433
        %v5168 = vunpack.c.l.b16 %v4434
        %v5169 = vunpack.c.h.b16 %v4434
        %v5170 = vunpack.c.l.b16 %v4435
        %v5171 = vunpack.c.h.b16 %v4435
        %v5172 = vunpack.c.l.b16 %v4436
        %v5173 = vunpack.c.h.b16 %v4436
        %v5174 = vunpack.c.l.b16 %v4437
        %v5175 = vunpack.c.h.b16 %v4437
        %v5176 = vunpack.c.l.b16 %v4438
        %v5177 = vunpack.c.h.b16 %v4438
        %v5178 = vunpack.c.l.b16 %v4439
        %v5179 = vunpack.c.h.b16 %v4439
        %v5180 = vunpack.c.l.b16 %v4440
        %v5181 = vunpack.c.h.b16 %v4440
        %v5182 = vunpack.c.l.b16 %v4441
        %v5183 = vunpack.c.h.b16 %v4441
        %v5184 = vunpack.c.l.b16 %v4442
        %v5185 = vunpack.c.h.b16 %v4442
        %v5186 = vunpack.c.l.b16 %v4443
        %v5187 = vunpack.c.h.b16 %v4443
        %v5188 = vunpack.c.l.b16 %v4444
        %v5189 = vunpack.c.h.b16 %v4444
        %v5190 = vunpack.c.l.b16 %v4445
        %v5191 = vunpack.c.h.b16 %v4445
        %v5192 = vunpack.c.l.b16 %v4446
        %v5193 = vunpack.c.h.b16 %v4446
        %v5194 = vunpack.c.l.b16 %v4447
        %v5195 = vunpack.c.h.b16 %v4447
        %v5196 = vunpack.c.l.b16 %v4448
        %v5197 = vunpack.c.h.b16 %v4448
        %v5198 = vunpack.c.l.b16 %v4449
        %v5199 = vunpack.c.h.b16 %v4449
        %v5200 = vunpack.c.l.b16 %v4450
        %v5201 = vunpack.c.h.b16 %v4450
        %v5202 = vunpack.c.l.b16 %v4451
        %v5203 = vunpack.c.h.b16 %v4451
        %v5204 = vunpack.c.l.b16 %v4452
        %v5205 = vunpack.c.h.b16 %v4452
        %v5206 = vunpack.c.l.b16 %v4453
        %v5207 = vunpack.c.h.b16 %v4453
        %v5208 = vunpack.c.l.b16 %v4454
        %v5209 = vunpack.c.h.b16 %v4454
        %v5210 = vunpack.c.l.b16 %v4455
        %v5211 = vunpack.c.h.b16 %v4455
        %v5212 = vunpack.c.l.b16 %v4456
        %v5213 = vunpack.c.h.b16 %v4456
        %v5214 = vunpack.c.l.b16 %v4457
        %v5215 = vunpack.c.h.b16 %v4457
        %v5216 = vunpack.c.l.b16 %v4458
        %v5217 = vunpack.c.h.b16 %v4458
        %v5218 = vunpack.c.l.b16 %v4459
        %v5219 = vunpack.c.h.b16 %v4459
        %v5220 = vpack.c.b16 %v5158, %v5156
        %v5221 = vpack.c.b16 %v5159, %v5157
        %v5222 = vpack.c.b16 %v5162, %v5160
        %v5223 = vpack.c.b16 %v5163, %v5161
        %v5224 = vpack.c.b16 %v5166, %v5164
        %v5225 = vpack.c.b16 %v5167, %v5165
        %v5226 = vpack.c.b16 %v5170, %v5168
        %v5227 = vpack.c.b16 %v5171, %v5169
        %v5228 = vpack.c.b16 %v5174, %v5172
        %v5229 = vpack.c.b16 %v5175, %v5173
        %v5230 = vpack.c.b16 %v5178, %v5176
        %v5231 = vpack.c.b16 %v5179, %v5177
        %v5232 = vpack.c.b16 %v5182, %v5180
        %v5233 = vpack.c.b16 %v5183, %v5181
        %v5234 = vpack.c.b16 %v5186, %v5184
        %v5235 = vpack.c.b16 %v5187, %v5185
        %v5236 = vpack.c.b16 %v5190, %v5188
        %v5237 = vpack.c.b16 %v5191, %v5189
        %v5238 = vpack.c.b16 %v5194, %v5192
        %v5239 = vpack.c.b16 %v5195, %v5193
        %v5240 = vpack.c.b16 %v5198, %v5196
        %v5241 = vpack.c.b16 %v5199, %v5197
        %v5242 = vpack.c.b16 %v5202, %v5200
        %v5243 = vpack.c.b16 %v5203, %v5201
        %v5244 = vpack.c.b16 %v5206, %v5204
        %v5245 = vpack.c.b16 %v5207, %v5205
        %v5246 = vpack.c.b16 %v5210, %v5208
        %v5247 = vpack.c.b16 %v5211, %v5209
        %v5248 = vpack.c.b16 %v5214, %v5212
        %v5249 = vpack.c.b16 %v5215, %v5213
        %v5250 = vpack.c.b16 %v5218, %v5216
        %v5251 = vpack.c.b16 %v5219, %v5217
        %5284 = vmatpush.bf16.xpose.msra.mxu0 %v5234
        %5285 = vmatpush.bf16.xpose.msra.mxu0 %v5232
        %5286 = vmatpush.bf16.xpose.msra.mxu0 %v5230
        %5287 = vmatpush.bf16.xpose.msra.mxu0 %v5228
        %5288 = vmatpush.bf16.xpose.msra.mxu0 %v5226
        %5289 = vmatpush.bf16.xpose.msra.mxu0 %v5224
        %5290 = vmatpush.bf16.xpose.msra.mxu0 %v5222
        %5291 = vmatpush.bf16.xpose.msra.mxu0 %v5220
        %5292 = vmatmul.bf16.gmra.mxu0 %v5120
        %v5293 = vpop.f32.mrf.mxu0
        %v5294 = vadd.f32 0.0, %v5293
        %v5295 = vpop.f32.mrf.mxu0
        %5296 = vdwg.mxu0
        %5297 = vmatpush.bf16.xpose.msra.mxu0 %v5235
        %5298 = vmatpush.bf16.xpose.msra.mxu0 %v5233
        %5299 = vmatpush.bf16.xpose.msra.mxu0 %v5231
        %5300 = vmatpush.bf16.xpose.msra.mxu0 %v5229
        %5301 = vmatpush.bf16.xpose.msra.mxu0 %v5227
        %5302 = vmatpush.bf16.xpose.msra.mxu0 %v5225
        %5303 = vmatpush.bf16.xpose.msra.mxu0 %v5223
        %5304 = vmatpush.bf16.xpose.msra.mxu0 %v5221
        %5305 = vmatmul.bf16.gmra.mxu0 %v5121
        %v5306 = vpop.f32.mrf.mxu0
        %v5307 = vadd.f32 %v5294, %v5306
        %v5308 = vpop.f32.mrf.mxu0
        %5309 = vdwg.mxu0
        %5310 = vmatpush.bf16.xpose.msra.mxu0 %v5250
        %5311 = vmatpush.bf16.xpose.msra.mxu0 %v5248
        %5312 = vmatpush.bf16.xpose.msra.mxu0 %v5246
        %5313 = vmatpush.bf16.xpose.msra.mxu0 %v5244
        %5314 = vmatpush.bf16.xpose.msra.mxu0 %v5242
        %5315 = vmatpush.bf16.xpose.msra.mxu0 %v5240
        %5316 = vmatpush.bf16.xpose.msra.mxu0 %v5238
        %5317 = vmatpush.bf16.xpose.msra.mxu0 %v5236
        %5318 = vmatmul.bf16.gmra.mxu0 %v5120
        %v5319 = vpop.f32.mrf.mxu0
        %v5320 = vadd.f32 0.0, %v5319
        %v5321 = vpop.f32.mrf.mxu0
        %5322 = vdwg.mxu0
        %5323 = vmatpush.bf16.xpose.msra.mxu0 %v5251
        %5324 = vmatpush.bf16.xpose.msra.mxu0 %v5249
        %5325 = vmatpush.bf16.xpose.msra.mxu0 %v5247
        %5326 = vmatpush.bf16.xpose.msra.mxu0 %v5245
        %5327 = vmatpush.bf16.xpose.msra.mxu0 %v5243
        %5328 = vmatpush.bf16.xpose.msra.mxu0 %v5241
        %5329 = vmatpush.bf16.xpose.msra.mxu0 %v5239
        %5330 = vmatpush.bf16.xpose.msra.mxu0 %v5237
        %5331 = vmatmul.bf16.gmra.mxu0 %v5121
        %v5332 = vpop.f32.mrf.mxu0
        %v5333 = vadd.f32 %v5320, %v5332
        %v5334 = vpop.f32.mrf.mxu0
        %5335 = vdwg.mxu0
        %v5336 = vrcp.pop %v4650
        %v5337 = vrcp.pop %v4676
        %v5338 = vrcp.pop %v4869
        %v5339 = vrcp.pop %v4895
        %v5340 = vrcp.pop %v5088
        %v5341 = vrcp.pop %v5114
        %v5342 = vrcp.pop %v5307
        %v5343 = vrcp.pop %v5333
        %v5344 = vperm.slane %v5336, 0
        %v5345 = vperm.slane %v5337, 0
        %v5346 = vperm.slane %v5338, 0
        %v5347 = vperm.slane %v5339, 0
        %v5348 = vperm.slane %v5340, 0
        %v5349 = vperm.slane %v5341, 0
        %v5350 = vperm.slane %v5342, 0
        %v5351 = vperm.slane %v5343, 0
        %v5352 = vmul.f32 %v4650, %v5344
        %v5353 = vmul.f32 %v4676, %v5345
        %v5354 = vmul.f32 %v4869, %v5346
        %v5355 = vmul.f32 %v4895, %v5347
        %v5356 = vmul.f32 %v5088, %v5348
        %v5357 = vmul.f32 %v5114, %v5349
        %v5358 = vmul.f32 %v5307, %v5350
        %v5359 = vmul.f32 %v5333, %v5351
        %v5360 = vld [vmem:[%s9] sm:$0xff]
        %v5361 = vld [vmem:[%s9 + $0x8] sm:$0xff]
        %v5362 = vld [vmem:[%s10] sm:$0xff]
        %v5363 = vld [vmem:[%s10 + $0x8] sm:$0xff]
        %5365 = vset.pattern.permute.xlu0 0
        %5366 = vperm.xlu0 %5365, %v5362
        %v5367 = vpop.permute.xlu0 %5366
        %5370 = vset.pattern.permute.xlu0 0
        %5371 = vperm.xlu0 %5370, %v5363
        %v5372 = vpop.permute.xlu0 %5371
        %vm5374 = vcmask 261120
        %v5376 = vsel %vm5374, %v5360, 0
        %v5379 = vsel %vm5374, %v5361, 0
        %5381 = vmatpush.msra.mxu0 0.0
        %5382 = vmatpush.msra.mxu0 0.0
        %5383 = vmatpush.msra.mxu0 0.0
        %5384 = vmatpush.msra.mxu0 0.0
        %5385 = vmatpush.msra.mxu0 0.0
        %5386 = vmatpush.msra.mxu0 0.0
        %5387 = vmatpush.msra.mxu0 0.0
        %5388 = vmatpush.msra.mxu0 0.0
        %5389 = vmatpush.msra.mxu0 0.0
        %5390 = vmatpush.msra.mxu0 0.0
        %5391 = vmatpush.msra.mxu0 0.0
        %5392 = vmatpush.msra.mxu0 0.0
        %5393 = vmatpush.msra.mxu0 %v5358
        %5394 = vmatpush.msra.mxu0 %v5356
        %5395 = vmatpush.msra.mxu0 %v5354
        %5396 = vmatpush.msra.mxu0 %v5352
        %5397 = vmatmul.f32.gmra.mxu0 %v5376
        %v5398 = vpop.f32.mrf.mxu0
        %v5399 = vadd.f32 %v5367, %v5398
        %5400 = vmatmul.f32.gmra.mxu0 %v5379
        %v5401 = vpop.f32.mrf.mxu0
        %v5402 = vadd.f32 %v5372, %v5401
        %5403 = vdwg.mxu0
        %5404 = vmatpush.msra.mxu0 0.0
        %5405 = vmatpush.msra.mxu0 0.0
        %5406 = vmatpush.msra.mxu0 0.0
        %5407 = vmatpush.msra.mxu0 0.0
        %5408 = vmatpush.msra.mxu0 0.0
        %5409 = vmatpush.msra.mxu0 0.0
        %5410 = vmatpush.msra.mxu0 0.0
        %5411 = vmatpush.msra.mxu0 0.0
        %5412 = vmatpush.msra.mxu0 0.0
        %5413 = vmatpush.msra.mxu0 0.0
        %5414 = vmatpush.msra.mxu0 0.0
        %5415 = vmatpush.msra.mxu0 0.0
        %5416 = vmatpush.msra.mxu0 %v5359
        %5417 = vmatpush.msra.mxu0 %v5357
        %5418 = vmatpush.msra.mxu0 %v5355
        %5419 = vmatpush.msra.mxu0 %v5353
        %5420 = vmatmul.f32.gmra.mxu0 %v5376
        %v5421 = vpop.f32.mrf.mxu0
        %v5422 = vadd.f32 %v5367, %v5421
        %5423 = vmatmul.f32.gmra.mxu0 %v5379
        %v5424 = vpop.f32.mrf.mxu0
        %v5425 = vadd.f32 %v5372, %v5424
        %5426 = vdwg.mxu0
        %v5427 = vadd.f32 %v1374, %v5399
        %v5428 = vadd.f32 %v1375, %v5422
        %v5429 = vadd.f32 %v1376, %v5402
        %v5430 = vadd.f32 %v1377, %v5425
        %v5431 = vadd.f32 %v5427, %v5429
        %v5432 = vrot.slane %v5431, 4
        %v5433 = vadd.f32 %v5431, %v5432
        %v5434 = vrot.slane %v5433, 2
        %v5435 = vadd.f32 %v5433, %v5434
        %v5436 = vrot.slane %v5435, 1
        %v5437 = vadd.f32 %v5435, %v5436
        %v5438 = vadd.f32 %v5428, %v5430
        %v5439 = vrot.slane %v5438, 4
        %v5440 = vadd.f32 %v5438, %v5439
        %v5441 = vrot.slane %v5440, 2
        %v5442 = vadd.f32 %v5440, %v5441
        %v5443 = vrot.slane %v5442, 1
        %v5444 = vadd.f32 %v5442, %v5443
        %v5445 = vmul.f32 %v5437, %v1398
        %v5446 = vmul.f32 %v5444, %v1398
        %v5447 = vsub.f32 %v5427, %v5445
        %v5448 = vsub.f32 %v5428, %v5446
        %v5449 = vsub.f32 %v5429, %v5445
        %v5450 = vsub.f32 %v5430, %v5446
        %v5451 = vmul.f32 %v5447, %v5447
        %v5452 = vmul.f32 %v5448, %v5448
        %v5453 = vmul.f32 %v5449, %v5449
        %v5454 = vmul.f32 %v5450, %v5450
        %v5455 = vadd.f32 %v5451, %v5453
        %v5456 = vrot.slane %v5455, 4
        %v5457 = vadd.f32 %v5455, %v5456
        %v5458 = vrot.slane %v5457, 2
        %v5459 = vadd.f32 %v5457, %v5458
        %v5460 = vrot.slane %v5459, 1
        %v5461 = vadd.f32 %v5459, %v5460
        %v5462 = vadd.f32 %v5452, %v5454
        %v5463 = vrot.slane %v5462, 4
        %v5464 = vadd.f32 %v5462, %v5463
        %v5465 = vrot.slane %v5464, 2
        %v5466 = vadd.f32 %v5464, %v5465
        %v5467 = vrot.slane %v5466, 1
        %v5468 = vadd.f32 %v5466, %v5467
        %v5469 = vmul.f32 %v5461, %v1398
        %v5470 = vmul.f32 %v5468, %v1398
        %v5471 = vadd.f32 %v5469, 1e-05
        %v5472 = vadd.f32 %v5470, 1e-05
        %v5473 = vrsqrt.pop %v5471
        %v5474 = vmul.f32 %v5473, %v5471
        %v5475 = vmul.f32 %v5474, %v5473
        %v5476 = vmul.f32 0.5, %v5475
        %v5477 = vsub.f32 1.5, %v5476
        %v5478 = vmul.f32 %v5473, %v5477
        %vm5479 = vweird.f32 %v5471
        %vm5480 = vweird.f32 %v5473
        %vm5481 = vmor %vm5479, %vm5480
        %v5482 = vsel %vm5481, %v5473, %v5478
        %v5483 = vrsqrt.pop %v5472
        %v5484 = vmul.f32 %v5483, %v5472
        %v5485 = vmul.f32 %v5484, %v5483
        %v5486 = vmul.f32 0.5, %v5485
        %v5487 = vsub.f32 1.5, %v5486
        %v5488 = vmul.f32 %v5483, %v5487
        %vm5489 = vweird.f32 %v5472
        %vm5490 = vweird.f32 %v5483
        %vm5491 = vmor %vm5489, %vm5490
        %v5492 = vsel %vm5491, %v5483, %v5488
        %v5493 = vmul.f32 %v5447, %v5482
        %v5494 = vmul.f32 %v5448, %v5492
        %v5495 = vmul.f32 %v5449, %v5482
        %v5496 = vmul.f32 %v5450, %v5492
        %v5497 = vld [vmem:[%s11] sm:$0xff]
        %v5498 = vld [vmem:[%s11 + $0x8] sm:$0xff]
        %5500 = vset.pattern.permute.xlu0 0
        %5501 = vperm.xlu0 %5500, %v5497
        %v5502 = vpop.permute.xlu0 %5501
        %5505 = vset.pattern.permute.xlu0 0
        %5506 = vperm.xlu0 %5505, %v5498
        %v5507 = vpop.permute.xlu0 %5506
        %v5509 = vmul.f32 %v5493, %v5502
        %v5510 = vmul.f32 %v5494, %v5502
        %v5511 = vmul.f32 %v5495, %v5507
        %v5512 = vmul.f32 %v5496, %v5507
        %v5513 = vld [vmem:[%s12] sm:$0xff]
        %v5514 = vld [vmem:[%s12 + $0x8] sm:$0xff]
        %5516 = vset.pattern.permute.xlu0 0
        %5517 = vperm.xlu0 %5516, %v5513
        %v5518 = vpop.permute.xlu0 %5517
        %5521 = vset.pattern.permute.xlu0 0
        %5522 = vperm.xlu0 %5521, %v5514
        %v5523 = vpop.permute.xlu0 %5522
        %v5525 = vadd.f32 %v5509, %v5518
        %v5526 = vadd.f32 %v5510, %v5518
        %v5527 = vadd.f32 %v5511, %v5523
        %v5528 = vadd.f32 %v5512, %v5523
        %v5529 = vld [vmem:[%s13] sm:$0xff]
        %v5530 = vld [vmem:[%s13 + $0x8] sm:$0xff]
        %v5531 = vld [vmem:[%s13 + $0x10] sm:$0xff]
        %v5532 = vld [vmem:[%s13 + $0x18] sm:$0xff]
        %v5533 = vld [vmem:[%s13 + $0x20] sm:$0xff]
        %v5534 = vld [vmem:[%s13 + $0x28] sm:$0xff]
        %v5535 = vld [vmem:[%s13 + $0x30] sm:$0xff]
        %v5536 = vld [vmem:[%s13 + $0x38] sm:$0xff]
        %v5537 = vld [vmem:[%s14] sm:$0xff]
        %v5538 = vld [vmem:[%s14 + $0x8] sm:$0xff]
        %v5539 = vld [vmem:[%s14 + $0x10] sm:$0xff]
        %v5540 = vld [vmem:[%s14 + $0x18] sm:$0xff]
        %v5541 = vld [vmem:[%s14 + $0x20] sm:$0xff]
        %v5542 = vld [vmem:[%s14 + $0x28] sm:$0xff]
        %v5543 = vld [vmem:[%s14 + $0x30] sm:$0xff]
        %v5544 = vld [vmem:[%s14 + $0x38] sm:$0xff]
        %5546 = vset.pattern.permute.xlu0 0
        %5547 = vperm.xlu0 %5546, %v5537
        %v5548 = vpop.permute.xlu0 %5547
        %5551 = vset.pattern.permute.xlu0 0
        %5552 = vperm.xlu0 %5551, %v5538
        %v5553 = vpop.permute.xlu0 %5552
        %5556 = vset.pattern.permute.xlu0 0
        %5557 = vperm.xlu0 %5556, %v5539
        %v5558 = vpop.permute.xlu0 %5557
        %5561 = vset.pattern.permute.xlu0 0
        %5562 = vperm.xlu0 %5561, %v5540
        %v5563 = vpop.permute.xlu0 %5562
        %5566 = vset.pattern.permute.xlu0 0
        %5567 = vperm.xlu0 %5566, %v5541
        %v5568 = vpop.permute.xlu0 %5567
        %5571 = vset.pattern.permute.xlu0 0
        %5572 = vperm.xlu0 %5571, %v5542
        %v5573 = vpop.permute.xlu0 %5572
        %5576 = vset.pattern.permute.xlu0 0
        %5577 = vperm.xlu0 %5576, %v5543
        %v5578 = vpop.permute.xlu0 %5577
        %5581 = vset.pattern.permute.xlu0 0
        %5582 = vperm.xlu0 %5581, %v5544
        %v5583 = vpop.permute.xlu0 %5582
        %v5586 = vsel %vm1567, %v5529, 0
        %v5589 = vsel %vm1567, %v5530, 0
        %v5592 = vsel %vm1567, %v5531, 0
        %v5595 = vsel %vm1567, %v5532, 0
        %v5598 = vsel %vm1567, %v5533, 0
        %v5601 = vsel %vm1567, %v5534, 0
        %v5604 = vsel %vm1567, %v5535, 0
        %v5607 = vsel %vm1567, %v5536, 0
        %5609 = vmatpush.msra.mxu0 0.0
        %5610 = vmatpush.msra.mxu0 0.0
        %5611 = vmatpush.msra.mxu0 0.0
        %5612 = vmatpush.msra.mxu0 0.0
        %5613 = vmatpush.msra.mxu0 0.0
        %5614 = vmatpush.msra.mxu0 0.0
        %5615 = vmatpush.msra.mxu0 0.0
        %5616 = vmatpush.msra.mxu0 0.0
        %5617 = vmatpush.msra.mxu0 0.0
        %5618 = vmatpush.msra.mxu0 0.0
        %5619 = vmatpush.msra.mxu0 0.0
        %5620 = vmatpush.msra.mxu0 0.0
        %5621 = vmatpush.msra.mxu0 0.0
        %5622 = vmatpush.msra.mxu0 0.0
        %5623 = vmatpush.msra.mxu0 %v5527
        %5624 = vmatpush.msra.mxu0 %v5525
        %5625 = vmatmul.f32.gmra.mxu0 %v5586
        %v5626 = vpop.f32.mrf.mxu0
        %v5627 = vadd.f32 %v5548, %v5626
        %5628 = vmatmul.f32.gmra.mxu0 %v5589
        %v5629 = vpop.f32.mrf.mxu0
        %v5630 = vadd.f32 %v5553, %v5629
        %5631 = vmatmul.f32.gmra.mxu0 %v5592
        %v5632 = vpop.f32.mrf.mxu0
        %v5633 = vadd.f32 %v5558, %v5632
        %5634 = vmatmul.f32.gmra.mxu0 %v5595
        %v5635 = vpop.f32.mrf.mxu0
        %v5636 = vadd.f32 %v5563, %v5635
        %5637 = vmatmul.f32.gmra.mxu0 %v5598
        %v5638 = vpop.f32.mrf.mxu0
        %v5639 = vadd.f32 %v5568, %v5638
        %5640 = vmatmul.f32.gmra.mxu0 %v5601
        %v5641 = vpop.f32.mrf.mxu0
        %v5642 = vadd.f32 %v5573, %v5641
        %5643 = vmatmul.f32.gmra.mxu0 %v5604
        %v5644 = vpop.f32.mrf.mxu0
        %v5645 = vadd.f32 %v5578, %v5644
        %5646 = vmatmul.f32.gmra.mxu0 %v5607
        %v5647 = vpop.f32.mrf.mxu0
        %v5648 = vadd.f32 %v5583, %v5647
        %5649 = vdwg.mxu0
        %5650 = vmatpush.msra.mxu0 0.0
        %5651 = vmatpush.msra.mxu0 0.0
        %5652 = vmatpush.msra.mxu0 0.0
        %5653 = vmatpush.msra.mxu0 0.0
        %5654 = vmatpush.msra.mxu0 0.0
        %5655 = vmatpush.msra.mxu0 0.0
        %5656 = vmatpush.msra.mxu0 0.0
        %5657 = vmatpush.msra.mxu0 0.0
        %5658 = vmatpush.msra.mxu0 0.0
        %5659 = vmatpush.msra.mxu0 0.0
        %5660 = vmatpush.msra.mxu0 0.0
        %5661 = vmatpush.msra.mxu0 0.0
        %5662 = vmatpush.msra.mxu0 0.0
        %5663 = vmatpush.msra.mxu0 0.0
        %5664 = vmatpush.msra.mxu0 %v5528
        %5665 = vmatpush.msra.mxu0 %v5526
        %5666 = vmatmul.f32.gmra.mxu0 %v5586
        %v5667 = vpop.f32.mrf.mxu0
        %v5668 = vadd.f32 %v5548, %v5667
        %5669 = vmatmul.f32.gmra.mxu0 %v5589
        %v5670 = vpop.f32.mrf.mxu0
        %v5671 = vadd.f32 %v5553, %v5670
        %5672 = vmatmul.f32.gmra.mxu0 %v5592
        %v5673 = vpop.f32.mrf.mxu0
        %v5674 = vadd.f32 %v5558, %v5673
        %5675 = vmatmul.f32.gmra.mxu0 %v5595
        %v5676 = vpop.f32.mrf.mxu0
        %v5677 = vadd.f32 %v5563, %v5676
        %5678 = vmatmul.f32.gmra.mxu0 %v5598
        %v5679 = vpop.f32.mrf.mxu0
        %v5680 = vadd.f32 %v5568, %v5679
        %5681 = vmatmul.f32.gmra.mxu0 %v5601
        %v5682 = vpop.f32.mrf.mxu0
        %v5683 = vadd.f32 %v5573, %v5682
        %5684 = vmatmul.f32.gmra.mxu0 %v5604
        %v5685 = vpop.f32.mrf.mxu0
        %v5686 = vadd.f32 %v5578, %v5685
        %5687 = vmatmul.f32.gmra.mxu0 %v5607
        %v5688 = vpop.f32.mrf.mxu0
        %v5689 = vadd.f32 %v5583, %v5688
        %5690 = vdwg.mxu0
        %v5691 = vmul.f32 %v5627, 0.5
        %v5692 = vmul.f32 %v5668, 0.5
        %v5693 = vmul.f32 %v5630, 0.5
        %v5694 = vmul.f32 %v5671, 0.5
        %v5695 = vmul.f32 %v5633, 0.5
        %v5696 = vmul.f32 %v5674, 0.5
        %v5697 = vmul.f32 %v5636, 0.5
        %v5698 = vmul.f32 %v5677, 0.5
        %v5699 = vmul.f32 %v5639, 0.5
        %v5700 = vmul.f32 %v5680, 0.5
        %v5701 = vmul.f32 %v5642, 0.5
        %v5702 = vmul.f32 %v5683, 0.5
        %v5703 = vmul.f32 %v5645, 0.5
        %v5704 = vmul.f32 %v5686, 0.5
        %v5705 = vmul.f32 %v5648, 0.5
        %v5706 = vmul.f32 %v5689, 0.5
        %v5707 = vmul.f32 %v5627, 0.044715
        %v5708 = vmul.f32 %v5668, 0.044715
        %v5709 = vmul.f32 %v5630, 0.044715
        %v5710 = vmul.f32 %v5671, 0.044715
        %v5711 = vmul.f32 %v5633, 0.044715
        %v5712 = vmul.f32 %v5674, 0.044715
        %v5713 = vmul.f32 %v5636, 0.044715
        %v5714 = vmul.f32 %v5677, 0.044715
        %v5715 = vmul.f32 %v5639, 0.044715
        %v5716 = vmul.f32 %v5680, 0.044715
        %v5717 = vmul.f32 %v5642, 0.044715
        %v5718 = vmul.f32 %v5683, 0.044715
        %v5719 = vmul.f32 %v5645, 0.044715
        %v5720 = vmul.f32 %v5686, 0.044715
        %v5721 = vmul.f32 %v5648, 0.044715
        %v5722 = vmul.f32 %v5689, 0.044715
        %v5723 = vmul.f32 %v5707, %v5627
        %v5724 = vmul.f32 %v5708, %v5668
        %v5725 = vmul.f32 %v5709, %v5630
        %v5726 = vmul.f32 %v5710, %v5671
        %v5727 = vmul.f32 %v5711, %v5633
        %v5728 = vmul.f32 %v5712, %v5674
        %v5729 = vmul.f32 %v5713, %v5636
        %v5730 = vmul.f32 %v5714, %v5677
        %v5731 = vmul.f32 %v5715, %v5639
        %v5732 = vmul.f32 %v5716, %v5680
        %v5733 = vmul.f32 %v5717, %v5642
        %v5734 = vmul.f32 %v5718, %v5683
        %v5735 = vmul.f32 %v5719, %v5645
        %v5736 = vmul.f32 %v5720, %v5686
        %v5737 = vmul.f32 %v5721, %v5648
        %v5738 = vmul.f32 %v5722, %v5689
        %v5739 = vmul.f32 %v5723, %v5627
        %v5740 = vmul.f32 %v5724, %v5668
        %v5741 = vmul.f32 %v5725, %v5630
        %v5742 = vmul.f32 %v5726, %v5671
        %v5743 = vmul.f32 %v5727, %v5633
        %v5744 = vmul.f32 %v5728, %v5674
        %v5745 = vmul.f32 %v5729, %v5636
        %v5746 = vmul.f32 %v5730, %v5677
        %v5747 = vmul.f32 %v5731, %v5639
        %v5748 = vmul.f32 %v5732, %v5680
        %v5749 = vmul.f32 %v5733, %v5642
        %v5750 = vmul.f32 %v5734, %v5683
        %v5751 = vmul.f32 %v5735, %v5645
        %v5752 = vmul.f32 %v5736, %v5686
        %v5753 = vmul.f32 %v5737, %v5648
        %v5754 = vmul.f32 %v5738, %v5689
        %v5755 = vadd.f32 %v5627, %v5739
        %v5756 = vadd.f32 %v5668, %v5740
        %v5757 = vadd.f32 %v5630, %v5741
        %v5758 = vadd.f32 %v5671, %v5742
        %v5759 = vadd.f32 %v5633, %v5743
        %v5760 = vadd.f32 %v5674, %v5744
        %v5761 = vadd.f32 %v5636, %v5745
        %v5762 = vadd.f32 %v5677, %v5746
        %v5763 = vadd.f32 %v5639, %v5747
        %v5764 = vadd.f32 %v5680, %v5748
        %v5765 = vadd.f32 %v5642, %v5749
        %v5766 = vadd.f32 %v5683, %v5750
        %v5767 = vadd.f32 %v5645, %v5751
        %v5768 = vadd.f32 %v5686, %v5752
        %v5769 = vadd.f32 %v5648, %v5753
        %v5770 = vadd.f32 %v5689, %v5754
        %v5771 = vmul.f32 %v5755, 0.7978846
        %v5772 = vmul.f32 %v5756, 0.7978846
        %v5773 = vmul.f32 %v5757, 0.7978846
        %v5774 = vmul.f32 %v5758, 0.7978846
        %v5775 = vmul.f32 %v5759, 0.7978846
        %v5776 = vmul.f32 %v5760, 0.7978846
        %v5777 = vmul.f32 %v5761, 0.7978846
        %v5778 = vmul.f32 %v5762, 0.7978846
        %v5779 = vmul.f32 %v5763, 0.7978846
        %v5780 = vmul.f32 %v5764, 0.7978846
        %v5781 = vmul.f32 %v5765, 0.7978846
        %v5782 = vmul.f32 %v5766, 0.7978846
        %v5783 = vmul.f32 %v5767, 0.7978846
        %v5784 = vmul.f32 %v5768, 0.7978846
        %v5785 = vmul.f32 %v5769, 0.7978846
        %v5786 = vmul.f32 %v5770, 0.7978846
        %v5787 = vtanh.pop %v5771
        %v5788 = vtanh.pop %v5772
        %v5789 = vtanh.pop %v5773
        %v5790 = vtanh.pop %v5774
        %v5791 = vtanh.pop %v5775
        %v5792 = vtanh.pop %v5776
        %v5793 = vtanh.pop %v5777
        %v5794 = vtanh.pop %v5778
        %v5795 = vtanh.pop %v5779
        %v5796 = vtanh.pop %v5780
        %v5797 = vtanh.pop %v5781
        %v5798 = vtanh.pop %v5782
        %v5799 = vtanh.pop %v5783
        %v5800 = vtanh.pop %v5784
        %v5801 = vtanh.pop %v5785
        %v5802 = vtanh.pop %v5786
        %v5803 = vadd.f32 %v5787, 1.0
        %v5804 = vadd.f32 %v5788, 1.0
        %v5805 = vadd.f32 %v5789, 1.0
        %v5806 = vadd.f32 %v5790, 1.0
        %v5807 = vadd.f32 %v5791, 1.0
        %v5808 = vadd.f32 %v5792, 1.0
        %v5809 = vadd.f32 %v5793, 1.0
        %v5810 = vadd.f32 %v5794, 1.0
        %v5811 = vadd.f32 %v5795, 1.0
        %v5812 = vadd.f32 %v5796, 1.0
        %v5813 = vadd.f32 %v5797, 1.0
        %v5814 = vadd.f32 %v5798, 1.0
        %v5815 = vadd.f32 %v5799, 1.0
        %v5816 = vadd.f32 %v5800, 1.0
        %v5817 = vadd.f32 %v5801, 1.0
        %v5818 = vadd.f32 %v5802, 1.0
        %v5819 = vmul.f32 %v5691, %v5803
        %v5820 = vmul.f32 %v5692, %v5804
        %v5821 = vmul.f32 %v5693, %v5805
        %v5822 = vmul.f32 %v5694, %v5806
        %v5823 = vmul.f32 %v5695, %v5807
        %v5824 = vmul.f32 %v5696, %v5808
        %v5825 = vmul.f32 %v5697, %v5809
        %v5826 = vmul.f32 %v5698, %v5810
        %v5827 = vmul.f32 %v5699, %v5811
        %v5828 = vmul.f32 %v5700, %v5812
        %v5829 = vmul.f32 %v5701, %v5813
        %v5830 = vmul.f32 %v5702, %v5814
        %v5831 = vmul.f32 %v5703, %v5815
        %v5832 = vmul.f32 %v5704, %v5816
        %v5833 = vmul.f32 %v5705, %v5817
        %v5834 = vmul.f32 %v5706, %v5818
        %v5835 = vld [vmem:[%s15] sm:$0xff]
        %v5836 = vld [vmem:[%s15 + $0x8] sm:$0xff]
        %v5837 = vld [vmem:[%s16] sm:$0xff]
        %v5838 = vld [vmem:[%s16 + $0x8] sm:$0xff]
        %5840 = vset.pattern.permute.xlu0 0
        %5841 = vperm.xlu0 %5840, %v5837
        %v5842 = vpop.permute.xlu0 %5841
        %5845 = vset.pattern.permute.xlu0 0
        %5846 = vperm.xlu0 %5845, %v5838
        %v5847 = vpop.permute.xlu0 %5846
        %vm5849 = vcmask 523264
        %v5851 = vsel %vm5849, %v5835, 0
        %v5854 = vsel %vm5849, %v5836, 0
        %5856 = vmatpush.msra.mxu0 0.0
        %5857 = vmatpush.msra.mxu0 0.0
        %5858 = vmatpush.msra.mxu0 0.0
        %5859 = vmatpush.msra.mxu0 0.0
        %5860 = vmatpush.msra.mxu0 0.0
        %5861 = vmatpush.msra.mxu0 0.0
        %5862 = vmatpush.msra.mxu0 0.0
        %5863 = vmatpush.msra.mxu0 0.0
        %5864 = vmatpush.msra.mxu0 %v5833
        %5865 = vmatpush.msra.mxu0 %v5831
        %5866 = vmatpush.msra.mxu0 %v5829
        %5867 = vmatpush.msra.mxu0 %v5827
        %5868 = vmatpush.msra.mxu0 %v5825
        %5869 = vmatpush.msra.mxu0 %v5823
        %5870 = vmatpush.msra.mxu0 %v5821
        %5871 = vmatpush.msra.mxu0 %v5819
        %5872 = vmatmul.f32.gmra.mxu0 %v5851
        %v5873 = vpop.f32.mrf.mxu0
        %v5874 = vadd.f32 %v5842, %v5873
        %5875 = vmatmul.f32.gmra.mxu0 %v5854
        %v5876 = vpop.f32.mrf.mxu0
        %v5877 = vadd.f32 %v5847, %v5876
        %5878 = vdwg.mxu0
        %5879 = vmatpush.msra.mxu0 0.0
        %5880 = vmatpush.msra.mxu0 0.0
        %5881 = vmatpush.msra.mxu0 0.0
        %5882 = vmatpush.msra.mxu0 0.0
        %5883 = vmatpush.msra.mxu0 0.0
        %5884 = vmatpush.msra.mxu0 0.0
        %5885 = vmatpush.msra.mxu0 0.0
        %5886 = vmatpush.msra.mxu0 0.0
        %5887 = vmatpush.msra.mxu0 %v5834
        %5888 = vmatpush.msra.mxu0 %v5832
        %5889 = vmatpush.msra.mxu0 %v5830
        %5890 = vmatpush.msra.mxu0 %v5828
        %5891 = vmatpush.msra.mxu0 %v5826
        %5892 = vmatpush.msra.mxu0 %v5824
        %5893 = vmatpush.msra.mxu0 %v5822
        %5894 = vmatpush.msra.mxu0 %v5820
        %5895 = vmatmul.f32.gmra.mxu0 %v5851
        %v5896 = vpop.f32.mrf.mxu0
        %v5897 = vadd.f32 %v5842, %v5896
        %5898 = vmatmul.f32.gmra.mxu0 %v5854
        %v5899 = vpop.f32.mrf.mxu0
        %v5900 = vadd.f32 %v5847, %v5899
        %5901 = vdwg.mxu0
        %v5902 = vadd.f32 %v5427, %v5874
        %v5903 = vadd.f32 %v5428, %v5897
        %v5904 = vadd.f32 %v5429, %v5877
        %v5905 = vadd.f32 %v5430, %v5900
        %5906 = vst [vmem:[%s572] sm:$0xff] %v5902
        %5907 = vst [vmem:[%s572 + $0x8] sm:$0xff] %v5903
        %5908 = vst [vmem:[%s572 + $0x10] sm:$0xff] %v5904
        %5909 = vst [vmem:[%s572 + $0x18] sm:$0xff] %v5905
        %s5910 = sand.u32 %s398, 1
        %s5911 = sand.u32 %s398, 1
        %s5912 = smul.addr %s5911, 32
        %s5913 = scalar_lea.vmem [#allocation3], %s5912
        // Predicated region
        $region112: #{transformer_block1_forward.1} parent=106 // pred_check
          %p5914 = pneg %p408
        $region113: #{transformer_block1_forward.1} parent=106 // pred_check_branch
          %5916 = sbr.rel (%p5914) target = $region115
        $region114: #{transformer_block1_forward.1} parent=106 // pred_region
          %s5917 = smul.u32 2, %s28
          %s5918 = smul.addr %s5917, 8
          %s5919 = scalar_lea.vmem %s17, %s5918
          // Predicated region
          $region116: #{transformer_block1_forward.1} parent=114 // pred_check
            _
          $region117: #{transformer_block1_forward.1} parent=114 // pred_check_branch
            %5921 = sbr.rel (0) target = $region119
          $region118: #{transformer_block1_forward.1} parent=114 // pred_region
            // Predicated region
            $region120: #{transformer_block1_forward.1} parent=118 // pred_check
              _
            $region121: #{transformer_block1_forward.1} parent=118 // pred_check_branch
              %5923 = sbr.rel (0) target = $region123
            $region122: #{transformer_block1_forward.1} parent=118 // pred_region
              loop: start=0, step=1, limit=1
              $region124: #{transformer_block1_forward.1} parent=122 // loop_pre_header
                _
              $region125: #{transformer_block1_forward.1} parent=122 // loop_header
                %s5925 = sphi 0, %s5929
                %p5926 = scmp.ge.s32.totalorder %s5925, 1
                %s5930 = sphi %s5913, %s5913
                %s5931 = sphi %s5919, %s5919
              $region126: #{transformer_block1_forward.1} parent=122 // loop_header_branch
                %5928 = sbr.rel (%p5926) target = $region130
              $region127: #{transformer_block1_forward.1} parent=122 // loop_body
                %v5932 = vld [vmem:[%s5930] sm:$0xff]
                %5933 = vst [vmem:[%s5931] sm:$0xff] %v5932
                %v5934 = vld [vmem:[%s5930 + $0x8] sm:$0xff]
                %5935 = vst [vmem:[%s5931 + $0x8] sm:$0xff] %v5934
                %v5936 = vld [vmem:[%s5930 + $0x10] sm:$0xff]
                %5937 = vst [vmem:[%s5931 + $0x20] sm:$0xff] %v5936
                %v5938 = vld [vmem:[%s5930 + $0x18] sm:$0xff]
                %5939 = vst [vmem:[%s5931 + $0x28] sm:$0xff] %v5938
              $region128: #{transformer_block1_forward.1} parent=122 // loop_footer
                %s5929 = sadd.s32 1, %s5925
              $region129: #{transformer_block1_forward.1} parent=122 // loop_footer_branch
                %5924 = sbr.rel target = $region125
              $region130: #{transformer_block1_forward.1} parent=122 // loop_exit
                _
            $region123: #{transformer_block1_forward.1} parent=118 // pred_fallthru
              _
            // Predicated region
            $region131: #{transformer_block1_forward.1} parent=118 // pred_check
              _
            $region132: #{transformer_block1_forward.1} parent=118 // pred_check_branch
              %5941 = sbr.rel target = $region134
            $region133: #{transformer_block1_forward.1} parent=118 // pred_region
              _
            $region134: #{transformer_block1_forward.1} parent=118 // pred_fallthru
              _
          $region119: #{transformer_block1_forward.1} parent=114 // pred_fallthru
            _
          %5942 = vnop
        $region115: #{transformer_block1_forward.1} parent=106 // pred_fallthru
          _
      $region107: #{transformer_block1_forward.1} parent=5 // pred_fallthru
        _
      %p5943 = scmp.le.s32.totalorder 2, %s23
      // Predicated region
      $region135: #{transformer_block1_forward.1} parent=5 // pred_check
        %p5944 = pneg %p5943
      $region136: #{transformer_block1_forward.1} parent=5 // pred_check_branch
        %5946 = sbr.rel (%p5944) target = $region138
      $region137: #{transformer_block1_forward.1} parent=5 // pred_region
        %s5947 = ssub.s32 %s23, 2
        // Predicated region
        $region139: #{transformer_block1_forward.1} parent=137 // pred_check
          %p5948 = pneg %p414
        $region140: #{transformer_block1_forward.1} parent=137 // pred_check_branch
          %5950 = sbr.rel (%p5948) target = $region142
        $region141: #{transformer_block1_forward.1} parent=137 // pred_region
          %s5951 = sand.u32 %s399, 1
          %s5952 = sand.u32 %s399, 1
          %s5953 = smul.addr %s5952, 32
          %s5954 = scalar_lea.vmem [#allocation3], %s5953
        $region142: #{transformer_block1_forward.1} parent=137 // pred_fallthru
          _
      $region138: #{transformer_block1_forward.1} parent=5 // pred_fallthru
        _
    $region6: #{transformer_block1_forward.1} parent=1 // loop_footer
      %s27 = sadd.s32 1, %s23
    $region7: #{transformer_block1_forward.1} parent=1 // loop_footer_branch
      %22 = sbr.rel target = $region3
    $region8: #{transformer_block1_forward.1} parent=1 // loop_exit
      _

</llo_original>
